<compile_context>
chip_gen: v6e
topology: v6e:2x2x1
jax: 0.10.0
libtpu: 0.0.40
codegen_flags: <defaults>
</compile_context>

<pallas_src>
import functools

import jax
import jax.numpy as jnp
from jax.experimental import pallas as pl
from jax.experimental.pallas import tpu as pltpu

_LANE = 128
_SUBLANE = 8


def _round_up(x, m):
    return (x + m - 1) // m * m


# ----------------------------------------------------------------------------
# Fused kernel: conv1+BN1+ReLU -> (VMEM) -> conv2+BN2 -> +shortcut -> ReLU
# ----------------------------------------------------------------------------
def _residual_block_kernel(phases_ref, w1_ref, b1_ref, w2_ref, b2_ref,
                           out_ref, y1p_ref, *,
                           h_out, w_out, stride, cin, ph_rows):
    # phases_ref: (B_t, s*s*ph, pw, Cin)      bf16  stride-phase decomposed padded x
    # w1_ref:     (9*Cin, Cout_p)             bf16  conv1 weights (BN1 folded, taps in K)
    # b1_ref:     (1, Cout_p)                 f32   folded conv1+BN1 bias
    # w2_ref:     (9*Cout_p, Cout_p)          bf16  conv2 weights (BN2 folded, taps in K)
    # b2_ref:     (1, Cout_p)                 f32   folded conv2+BN2 bias
    # out_ref:    (B_t, HW, Cout_p)           f32   lane-dense output
    # y1p_ref:    (B_t, H+2, Wpad, Cout_p)    bf16  VMEM scratch for padded y1
    b_tile = out_ref.shape[0]
    cp = out_ref.shape[-1]
    hw = h_out * w_out
    m = b_tile * hw
    s = stride
    w_pad = y1p_ref.shape[2]
    bf16 = y1p_ref.dtype

    # ---- conv1: form the 9 im2col taps with unit-stride slices of the phase
    #      slab and do ONE MXU matmul (K = 9*Cin). ----
    taps1 = []
    for kh in range(3):
        for kw in range(3):
            pidx = (kh % s) * s + (kw % s)
            r0 = pidx * ph_rows + kh // s
            c0 = kw // s
            t = phases_ref[:, r0:r0 + h_out, c0:c0 + w_out, :]
            taps1.append(t.reshape(m, cin))
    p1 = jnp.concatenate(taps1, axis=-1)                       # (M, 9*Cin) bf16
    y1 = jnp.dot(p1, w1_ref[...], preferred_element_type=jnp.float32)
    y1 = jnp.maximum(y1 + b1_ref[...], 0.0)                    # (M, Cout_p) f32

    # ---- PadZero shortcut: stride-s subsample of x, read from the SAME phase
    #      slab -> zero extra HBM traffic for the residual. ----
    if s == 1:
        sp, sr, sc = 0, 1, 1                                   # shortcut = x itself
    else:
        sp, sr, sc = s * s - 1, 0, 0                           # phase (1,1) = x[::2, ::2]
    res = phases_ref[:, sp * ph_rows + sr:sp * ph_rows + sr + h_out,
                     sc:sc + w_out, :]
    res = res.reshape(m, cin).astype(jnp.float32)

    # ---- stage y1 spatially zero-padded in VMEM (never round-trips to HBM).
    #      Only the halo border is zeroed each step (scratch is per-core under
    #      "parallel" sharding, so a one-time init would be wrong). ----
    zrow = jnp.zeros((b_tile, 1, w_pad, cp), bf16)
    y1p_ref[:, 0:1, :, :] = zrow
    y1p_ref[:, h_out + 1:h_out + 2, :, :] = zrow
    y1p_ref[:, 1:h_out + 1, 0:1, :] = jnp.zeros((b_tile, h_out, 1, cp), bf16)
    y1p_ref[:, 1:h_out + 1, w_out + 1:w_pad, :] = (
        jnp.zeros((b_tile, h_out, w_pad - w_out - 1, cp), bf16))
    y1p_ref[:, 1:h_out + 1, 1:w_out + 1, :] = (
        y1.astype(bf16).reshape(b_tile, h_out, w_out, cp))

    # ---- conv2 (stride 1): 9 unit-stride taps of the resident y1 folded into
    #      the contraction dim -> ONE matmul (accumulation stays in the MXU,
    #      no per-tap FIFO pop + f32 VPU adds on v5e/v6e). ----
    taps2 = []
    for kh in range(3):
        for kw in range(3):
            t = y1p_ref[:, kh:kh + h_out, kw:kw + w_out, :]
            taps2.append(t.reshape(m, cp))
    p2 = jnp.concatenate(taps2, axis=-1)                       # (M, 9*Cout_p) bf16
    y2 = jnp.dot(p2, w2_ref[...], preferred_element_type=jnp.float32)
    y2 = y2 + b2_ref[...]

    # ---- residual add (zero-extend channels Cin -> Cout_p) + ReLU ----
    if cp > cin:
        res = jnp.concatenate(
            [res, jnp.zeros((m, cp - cin), jnp.float32)], axis=-1)
    out = jnp.maximum(y2 + res, 0.0)
    out_ref[...] = out.reshape(b_tile, hw, cp).astype(out_ref.dtype)


# ----------------------------------------------------------------------------
# Wrapper: BN folding, stride-phase decomposition, layout plumbing, pallas_call
# ----------------------------------------------------------------------------
def _fold_bn_into_conv(w_oihw, conv_b, gamma, beta, rmean, rvar, eps):
    scale = gamma / jnp.sqrt(rvar + eps)                       # (Cout,)
    w_hwio = jnp.transpose(w_oihw, (2, 3, 1, 0)) * scale       # scale folded over O
    bias = beta + (conv_b - rmean) * scale
    return w_hwio.astype(jnp.float32), bias.astype(jnp.float32)


def residual_block_forward(x_nchw, prm, stride, eps=1e-5):
    n, cin, h, w = x_nchw.shape
    cout = prm["w1"].shape[0]
    cout_p = _round_up(cout, _LANE)
    s = int(stride)
    assert s in (1, 2), "ResidualBlock uses stride 1 or 2"

    x = jnp.transpose(x_nchw, (0, 2, 3, 1)).astype(jnp.float32)    # NCHW -> NHWC

    # Fold BN (eval mode running stats) into conv weights / biases.
    w1_hwio, b1 = _fold_bn_into_conv(prm["w1"], prm["b1"], prm["g1"], prm["be1"],
                                     prm["rm1"], prm["rv1"], eps)
    w2_hwio, b2 = _fold_bn_into_conv(prm["w2"], prm["b2"], prm["g2"], prm["be2"],
                                     prm["rm2"], prm["rv2"], eps)

    h1 = (h - 1) // s + 1
    w1o = (w - 1) // s + 1
    hw = h1 * w1o

    # Spatially padded input decomposed into its s*s stride phases, bf16.  Every
    # conv1 tap (kh,kw) and the PadZero shortcut become unit-stride slices of
    # this single slab in the kernel -> the input is DMA'd once per grid step.
    xp = jnp.pad(x, ((0, 0), (1, 1), (1, 1), (0, 0)))
    ph = h1 + (2 + s - 1) // s
    pw = w1o + (2 + s - 1) // s
    phase_list = []
    for p in range(s):
        for q in range(s):
            ph_arr = xp[:, p::s, q::s, :][:, :ph, :pw, :]
            pad_h, pad_w = ph - ph_arr.shape[1], pw - ph_arr.shape[2]
            if pad_h or pad_w:
                ph_arr = jnp.pad(ph_arr, ((0, 0), (0, pad_h), (0, pad_w), (0, 0)))
            phase_list.append(ph_arr)
    phases = jnp.concatenate(phase_list, axis=1).astype(jnp.bfloat16)  # (N, s*s*ph, pw, Cin)

    # Weights: taps folded into K, output channels padded lane-dense, bf16.
    w1k = w1_hwio.reshape(9 * cin, cout)
    w1k = jnp.pad(w1k, ((0, 0), (0, cout_p - cout))).astype(jnp.bfloat16)
    w2k = jnp.pad(w2_hwio, ((0, 0), (0, 0), (0, cout_p - cout), (0, cout_p - cout)))
    w2k = w2k.reshape(9 * cout_p, cout_p).astype(jnp.bfloat16)
    b1k = jnp.pad(b1, (0, cout_p - cout)).reshape(1, cout_p)
    b2k = jnp.pad(b2, (0, cout_p - cout)).reshape(1, cout_p)

    # Batch-block images per grid step so the matmul M dim fills the MXU
    # (256-wide on v6e/v7x) when the spatial tile is small.
    b_tile = 1
    if hw < 256:
        b_tile = min(n, max(1, 256 // hw))
        while n % b_tile:
            b_tile -= 1

    w_pad = _round_up(w1o + 2, _SUBLANE)

    kernel = functools.partial(_residual_block_kernel, h_out=h1, w_out=w1o,
                               stride=s, cin=cin, ph_rows=ph)

    flops = 2 * n * hw * (9 * cin) * cout_p + 2 * n * hw * (9 * cout_p) * cout_p
    bytes_accessed = (phases.size * 2 + n * hw * cout_p * 4
                      + (w1k.size + w2k.size) * 2 + (b1k.size + b2k.size) * 4)

    # TODO(synk): for feature maps too large for VMEM, add an HW-tile grid axis
    # (1-row halo for the in-kernel taps); that second parallel axis would also
    # keep both v7x TensorCores busy at batch=1.  On v7x the constant weight
    # specs could additionally use pipeline_mode=pl.Buffered(1) to save a buffer.
    out = pl.pallas_call(
        kernel,
        out_shape=jax.ShapeDtypeStruct((n, hw, cout_p), jnp.float32),
        grid=(n // b_tile,),
        in_specs=[
            pl.BlockSpec((b_tile, s * s * ph, pw, cin), lambda i: (i, 0, 0, 0)),
            pl.BlockSpec((9 * cin, cout_p), lambda i: (0, 0)),
            pl.BlockSpec((1, cout_p), lambda i: (0, 0)),
            pl.BlockSpec((9 * cout_p, cout_p), lambda i: (0, 0)),
            pl.BlockSpec((1, cout_p), lambda i: (0, 0)),
        ],
        out_specs=pl.BlockSpec((b_tile, hw, cout_p), lambda i: (i, 0, 0)),
        scratch_shapes=[pltpu.VMEM((b_tile, h1 + 2, w_pad, cout_p), jnp.bfloat16)],
        compiler_params=pltpu.CompilerParams(
            dimension_semantics=("parallel",),
            vmem_limit_bytes=48 * 1024 * 1024),
        cost_estimate=pl.CostEstimate(flops=flops, transcendentals=0,
                                      bytes_accessed=bytes_accessed),
    )(phases, w1k, b1k, w2k, b2k)

    out = out[:, :, :cout].reshape(n, h1, w1o, cout)
    return jnp.transpose(out, (0, 3, 1, 2))                    # NHWC -> NCHW


# ----------------------------------------------------------------------------
# Pure-JAX f32 reference (module semantics) for correctness check
# ----------------------------------------------------------------------------
def _ref_forward(x_nchw, prm, stride, eps=1e-5):
    def conv(xx, wt, b, st):
        y = jax.lax.conv_general_dilated(
            xx, wt, (st, st), ((1, 1), (1, 1)),
            dimension_numbers=("NCHW", "OIHW", "NCHW"),
            precision=jax.lax.Precision.HIGHEST)
        return y + b[None, :, None, None]

    def bn(y, g, be, rm, rv):
        return ((y - rm[None, :, None, None]) / jnp.sqrt(rv[None, :, None, None] + eps)
                * g[None, :, None, None] + be[None, :, None, None])

    h = x_nchw.shape[2]
    y = jax.nn.relu(bn(conv(x_nchw, prm["w1"], prm["b1"], stride),
                       prm["g1"], prm["be1"], prm["rm1"], prm["rv1"]))
    y = bn(conv(y, prm["w2"], prm["b2"], 1),
           prm["g2"], prm["be2"], prm["rm2"], prm["rv2"])
    h2 = y.shape[2]
    cin, cout = prm["w1"].shape[1], prm["w1"].shape[0]
    sc = x_nchw
    if h != h2:
        sc = sc[:, :, ::2, ::2]
    if cin != cout:
        sc = jnp.pad(sc, ((0, 0), (0, cout - cin), (0, 0), (0, 0)))
    return jax.nn.relu(y + sc)


# ----------------------------------------------------------------------------
if __name__ == "__main__":
    N, CIN, COUT, H, W, STRIDE = 2, 4, 8, 16, 16, 2   # exercises both PadZero branches

    key = jax.random.PRNGKey(0)
    ks = jax.random.split(key, 13)
    prm = {
        "w1": 0.1 * jax.random.normal(ks[0], (COUT, CIN, 3, 3), jnp.float32),
        "b1": 0.1 * jax.random.normal(ks[1], (COUT,), jnp.float32),
        "g1": 1.0 + 0.1 * jax.random.normal(ks[2], (COUT,), jnp.float32),
        "be1": 0.1 * jax.random.normal(ks[3], (COUT,), jnp.float32),
        "rm1": 0.1 * jax.random.normal(ks[4], (COUT,), jnp.float32),
        "rv1": jax.random.uniform(ks[5], (COUT,), jnp.float32, 0.5, 1.5),
        "w2": 0.1 * jax.random.normal(ks[6], (COUT, COUT, 3, 3), jnp.float32),
        "b2": 0.1 * jax.random.normal(ks[7], (COUT,), jnp.float32),
        "g2": 1.0 + 0.1 * jax.random.normal(ks[8], (COUT,), jnp.float32),
        "be2": 0.1 * jax.random.normal(ks[9], (COUT,), jnp.float32),
        "rm2": 0.1 * jax.random.normal(ks[10], (COUT,), jnp.float32),
        "rv2": jax.random.uniform(ks[11], (COUT,), jnp.float32, 0.5, 1.5),
    }
    x = jax.random.normal(ks[12], (N, CIN, H, W), jnp.float32)

    out = jax.block_until_ready(residual_block_forward(x, prm, STRIDE))
    ref = _ref_forward(x, prm, STRIDE)

    assert out.shape == ref.shape, (out.shape, ref.shape)
    # bf16 matmul operands, bf16 y1 staging and bf16 shortcut vs. f32 reference:
    # allow bf16-level error.
    err = float(jnp.max(jnp.abs(out - ref)))
    assert err < 1.5e-1, f"max abs err {err}"
    print("KERNEL_OK")
</pallas_src>

<mosaic_0001>
module attributes {stable_mosaic.version = 11 : i64} {
  func.func @_residual_block_kernel(%arg0: i32, %arg1: memref<2x36x9x4xbf16, #tpu.memory_space<vmem>>, %arg2: memref<36x128xbf16, #tpu.memory_space<vmem>>, %arg3: memref<1x128xf32, #tpu.memory_space<vmem>>, %arg4: memref<1152x128xbf16, #tpu.memory_space<vmem>>, %arg5: memref<1x128xf32, #tpu.memory_space<vmem>>, %arg6: memref<2x64x128xf32, #tpu.memory_space<vmem>>, %arg7: memref<2x10x16x128xbf16, #tpu.memory_space<vmem>>) attributes {dimension_semantics = [#tpu.dimension_semantics<parallel>], iteration_bounds = array<i64: 1>, scalar_prefetch = 0 : i64, scratch_operands = 1 : i64, tpu.core_type = #tpu.core_type<tc>, window_params = [{transform_indices = @transform_0, window_bounds = array<i64: 2, 36, 9, 4>}, {pipeline_mode = #tpu.pipeline_mode<synchronous>, transform_indices = @transform_1, window_bounds = array<i64: 36, 128>}, {pipeline_mode = #tpu.pipeline_mode<synchronous>, transform_indices = @transform_2, window_bounds = array<i64: 1, 128>}, {pipeline_mode = #tpu.pipeline_mode<synchronous>, transform_indices = @transform_3, window_bounds = array<i64: 1152, 128>}, {pipeline_mode = #tpu.pipeline_mode<synchronous>, transform_indices = @transform_4, window_bounds = array<i64: 1, 128>}, {transform_indices = @transform_5, window_bounds = array<i64: 2, 64, 128>}]} {
    %c0 = arith.constant 0 : index
    %c0_0 = arith.constant 0 : index
    %c0_1 = arith.constant 0 : index
    %c0_2 = arith.constant 0 : index
    %0 = vector.load %arg1[%c0, %c0_0, %c0_1, %c0_2] : memref<2x36x9x4xbf16, #tpu.memory_space<vmem>>, vector<2x8x8x4xbf16>
    %1 = vector.shape_cast %0 : vector<2x8x8x4xbf16> to vector<128x4xbf16>
    %c0_3 = arith.constant 0 : index
    %c9 = arith.constant 9 : index
    %c0_4 = arith.constant 0 : index
    %c0_5 = arith.constant 0 : index
    %2 = vector.load %arg1[%c0_3, %c9, %c0_4, %c0_5] : memref<2x36x9x4xbf16, #tpu.memory_space<vmem>>, vector<2x8x8x4xbf16>
    %3 = vector.shape_cast %2 : vector<2x8x8x4xbf16> to vector<128x4xbf16>
    %c0_6 = arith.constant 0 : index
    %c0_7 = arith.constant 0 : index
    %c1 = arith.constant 1 : index
    %c0_8 = arith.constant 0 : index
    %4 = vector.load %arg1[%c0_6, %c0_7, %c1, %c0_8] : memref<2x36x9x4xbf16, #tpu.memory_space<vmem>>, vector<2x8x8x4xbf16>
    %5 = vector.shape_cast %4 : vector<2x8x8x4xbf16> to vector<128x4xbf16>
    %c0_9 = arith.constant 0 : index
    %c18 = arith.constant 18 : index
    %c0_10 = arith.constant 0 : index
    %c0_11 = arith.constant 0 : index
    %6 = vector.load %arg1[%c0_9, %c18, %c0_10, %c0_11] : memref<2x36x9x4xbf16, #tpu.memory_space<vmem>>, vector<2x8x8x4xbf16>
    %7 = vector.shape_cast %6 : vector<2x8x8x4xbf16> to vector<128x4xbf16>
    %c0_12 = arith.constant 0 : index
    %c27 = arith.constant 27 : index
    %c0_13 = arith.constant 0 : index
    %c0_14 = arith.constant 0 : index
    %8 = vector.load %arg1[%c0_12, %c27, %c0_13, %c0_14] : memref<2x36x9x4xbf16, #tpu.memory_space<vmem>>, vector<2x8x8x4xbf16>
    %9 = vector.shape_cast %8 : vector<2x8x8x4xbf16> to vector<128x4xbf16>
    %c0_15 = arith.constant 0 : index
    %c18_16 = arith.constant 18 : index
    %c1_17 = arith.constant 1 : index
    %c0_18 = arith.constant 0 : index
    %10 = vector.load %arg1[%c0_15, %c18_16, %c1_17, %c0_18] : memref<2x36x9x4xbf16, #tpu.memory_space<vmem>>, vector<2x8x8x4xbf16>
    %11 = vector.shape_cast %10 : vector<2x8x8x4xbf16> to vector<128x4xbf16>
    %c0_19 = arith.constant 0 : index
    %c1_20 = arith.constant 1 : index
    %c0_21 = arith.constant 0 : index
    %c0_22 = arith.constant 0 : index
    %12 = vector.load %arg1[%c0_19, %c1_20, %c0_21, %c0_22] : memref<2x36x9x4xbf16, #tpu.memory_space<vmem>>, vector<2x8x8x4xbf16>
    %13 = vector.shape_cast %12 : vector<2x8x8x4xbf16> to vector<128x4xbf16>
    %c0_23 = arith.constant 0 : index
    %c10 = arith.constant 10 : index
    %c0_24 = arith.constant 0 : index
    %c0_25 = arith.constant 0 : index
    %14 = vector.load %arg1[%c0_23, %c10, %c0_24, %c0_25] : memref<2x36x9x4xbf16, #tpu.memory_space<vmem>>, vector<2x8x8x4xbf16>
    %15 = vector.shape_cast %14 : vector<2x8x8x4xbf16> to vector<128x4xbf16>
    %c0_26 = arith.constant 0 : index
    %c1_27 = arith.constant 1 : index
    %c1_28 = arith.constant 1 : index
    %c0_29 = arith.constant 0 : index
    %16 = vector.load %arg1[%c0_26, %c1_27, %c1_28, %c0_29] : memref<2x36x9x4xbf16, #tpu.memory_space<vmem>>, vector<2x8x8x4xbf16>
    %17 = vector.shape_cast %16 : vector<2x8x8x4xbf16> to vector<128x4xbf16>
    %18 = tpu.concatenate %1, %3, %5, %7, %9, %11, %13, %15, %17 in 1 : vector<128x4xbf16>, vector<128x4xbf16>, vector<128x4xbf16>, vector<128x4xbf16>, vector<128x4xbf16>, vector<128x4xbf16>, vector<128x4xbf16>, vector<128x4xbf16>, vector<128x4xbf16> -> vector<128x36xbf16>
    %c0_30 = arith.constant 0 : index
    %c0_31 = arith.constant 0 : index
    %19 = vector.load %arg2[%c0_30, %c0_31] : memref<36x128xbf16, #tpu.memory_space<vmem>>, vector<36x128xbf16>
    %cst = arith.constant dense<0.000000e+00> : vector<128x128xf32>
    %20 = tpu.matmul %18, %19, %cst {dimension_numbers = #tpu.dot_dimension_numbers<[1], [0], [0], [1], [0, 0, 1, 1], [], []>} : vector<128x36xbf16>, vector<36x128xbf16>, vector<128x128xf32> -> vector<128x128xf32>
    %c0_32 = arith.constant 0 : index
    %c0_33 = arith.constant 0 : index
    %21 = vector.load %arg3[%c0_32, %c0_33] : memref<1x128xf32, #tpu.memory_space<vmem>>, vector<1x128xf32>
    %22 = vector.broadcast %21 : vector<1x128xf32> to vector<128x128xf32>
    %23 = arith.addf %20, %22 : vector<128x128xf32>
    %cst_34 = arith.constant 0.000000e+00 : f32
    %24 = vector.broadcast %cst_34 : f32 to vector<128x128xf32>
    %25 = arith.maximumf %23, %24 : vector<128x128xf32>
    %c0_35 = arith.constant 0 : index
    %c27_36 = arith.constant 27 : index
    %c0_37 = arith.constant 0 : index
    %c0_38 = arith.constant 0 : index
    %26 = vector.load %arg1[%c0_35, %c27_36, %c0_37, %c0_38] : memref<2x36x9x4xbf16, #tpu.memory_space<vmem>>, vector<2x8x8x4xbf16>
    %27 = vector.shape_cast %26 : vector<2x8x8x4xbf16> to vector<128x4xbf16>
    %28 = arith.extf %27 : vector<128x4xbf16> to vector<128x4xf32>
    %cst_39 = arith.constant 0.000000e+00 : bf16
    %29 = vector.broadcast %cst_39 : bf16 to vector<2x1x16x128xbf16>
    %c0_40 = arith.constant 0 : index
    %c0_41 = arith.constant 0 : index
    %c0_42 = arith.constant 0 : index
    %c0_43 = arith.constant 0 : index
    %30 = vector.load %arg7[%c0_40, %c0_41, %c0_42, %c0_43] : memref<2x10x16x128xbf16, #tpu.memory_space<vmem>>, vector<2x1x16x128xbf16>
    tpu.vector_store %arg7[%c0_40, %c0_41, %c0_42, %c0_43], %29 {strides = array<i32>} : memref<2x10x16x128xbf16, #tpu.memory_space<vmem>>, vector<2x1x16x128xbf16>,
    %c0_44 = arith.constant 0 : index
    %c9_45 = arith.constant 9 : index
    %c0_46 = arith.constant 0 : index
    %c0_47 = arith.constant 0 : index
    %31 = vector.load %arg7[%c0_44, %c9_45, %c0_46, %c0_47] : memref<2x10x16x128xbf16, #tpu.memory_space<vmem>>, vector<2x1x16x128xbf16>
    tpu.vector_store %arg7[%c0_44, %c9_45, %c0_46, %c0_47], %29 {strides = array<i32>} : memref<2x10x16x128xbf16, #tpu.memory_space<vmem>>, vector<2x1x16x128xbf16>,
    %cst_48 = arith.constant 0.000000e+00 : bf16
    %32 = vector.broadcast %cst_48 : bf16 to vector<2x8x1x128xbf16>
    %c0_49 = arith.constant 0 : index
    %c1_50 = arith.constant 1 : index
    %c0_51 = arith.constant 0 : index
    %c0_52 = arith.constant 0 : index
    %33 = vector.load %arg7[%c0_49, %c1_50, %c0_51, %c0_52] : memref<2x10x16x128xbf16, #tpu.memory_space<vmem>>, vector<2x8x1x128xbf16>
    tpu.vector_store %arg7[%c0_49, %c1_50, %c0_51, %c0_52], %32 {strides = array<i32>} : memref<2x10x16x128xbf16, #tpu.memory_space<vmem>>, vector<2x8x1x128xbf16>,
    %cst_53 = arith.constant 0.000000e+00 : bf16
    %34 = vector.broadcast %cst_53 : bf16 to vector<2x8x7x128xbf16>
    %c0_54 = arith.constant 0 : index
    %c1_55 = arith.constant 1 : index
    %c9_56 = arith.constant 9 : index
    %c0_57 = arith.constant 0 : index
    %35 = vector.load %arg7[%c0_54, %c1_55, %c9_56, %c0_57] : memref<2x10x16x128xbf16, #tpu.memory_space<vmem>>, vector<2x8x7x128xbf16>
    tpu.vector_store %arg7[%c0_54, %c1_55, %c9_56, %c0_57], %34 {strides = array<i32>} : memref<2x10x16x128xbf16, #tpu.memory_space<vmem>>, vector<2x8x7x128xbf16>,
    %36 = arith.truncf %25 : vector<128x128xf32> to vector<128x128xbf16>
    %37 = vector.shape_cast %36 : vector<128x128xbf16> to vector<2x8x8x128xbf16>
    %c0_58 = arith.constant 0 : index
    %c1_59 = arith.constant 1 : index
    %c1_60 = arith.constant 1 : index
    %c0_61 = arith.constant 0 : index
    %38 = vector.load %arg7[%c0_58, %c1_59, %c1_60, %c0_61] : memref<2x10x16x128xbf16, #tpu.memory_space<vmem>>, vector<2x8x8x128xbf16>
    tpu.vector_store %arg7[%c0_58, %c1_59, %c1_60, %c0_61], %37 {strides = array<i32>} : memref<2x10x16x128xbf16, #tpu.memory_space<vmem>>, vector<2x8x8x128xbf16>,
    %c0_62 = arith.constant 0 : index
    %c0_63 = arith.constant 0 : index
    %c0_64 = arith.constant 0 : index
    %c0_65 = arith.constant 0 : index
    %39 = vector.load %arg7[%c0_62, %c0_63, %c0_64, %c0_65] : memref<2x10x16x128xbf16, #tpu.memory_space<vmem>>, vector<2x8x8x128xbf16>
    %40 = vector.shape_cast %39 : vector<2x8x8x128xbf16> to vector<128x128xbf16>
    %c0_66 = arith.constant 0 : index
    %c0_67 = arith.constant 0 : index
    %c1_68 = arith.constant 1 : index
    %c0_69 = arith.constant 0 : index
    %41 = vector.load %arg7[%c0_66, %c0_67, %c1_68, %c0_69] : memref<2x10x16x128xbf16, #tpu.memory_space<vmem>>, vector<2x8x8x128xbf16>
    %42 = vector.shape_cast %41 : vector<2x8x8x128xbf16> to vector<128x128xbf16>
    %c0_70 = arith.constant 0 : index
    %c0_71 = arith.constant 0 : index
    %c2 = arith.constant 2 : index
    %c0_72 = arith.constant 0 : index
    %43 = vector.load %arg7[%c0_70, %c0_71, %c2, %c0_72] : memref<2x10x16x128xbf16, #tpu.memory_space<vmem>>, vector<2x8x8x128xbf16>
    %44 = vector.shape_cast %43 : vector<2x8x8x128xbf16> to vector<128x128xbf16>
    %c0_73 = arith.constant 0 : index
    %c1_74 = arith.constant 1 : index
    %c0_75 = arith.constant 0 : index
    %c0_76 = arith.constant 0 : index
    %45 = vector.load %arg7[%c0_73, %c1_74, %c0_75, %c0_76] : memref<2x10x16x128xbf16, #tpu.memory_space<vmem>>, vector<2x8x8x128xbf16>
    %46 = vector.shape_cast %45 : vector<2x8x8x128xbf16> to vector<128x128xbf16>
    %c0_77 = arith.constant 0 : index
    %c1_78 = arith.constant 1 : index
    %c1_79 = arith.constant 1 : index
    %c0_80 = arith.constant 0 : index
    %47 = vector.load %arg7[%c0_77, %c1_78, %c1_79, %c0_80] : memref<2x10x16x128xbf16, #tpu.memory_space<vmem>>, vector<2x8x8x128xbf16>
    %48 = vector.shape_cast %47 : vector<2x8x8x128xbf16> to vector<128x128xbf16>
    %c0_81 = arith.constant 0 : index
    %c1_82 = arith.constant 1 : index
    %c2_83 = arith.constant 2 : index
    %c0_84 = arith.constant 0 : index
    %49 = vector.load %arg7[%c0_81, %c1_82, %c2_83, %c0_84] : memref<2x10x16x128xbf16, #tpu.memory_space<vmem>>, vector<2x8x8x128xbf16>
    %50 = vector.shape_cast %49 : vector<2x8x8x128xbf16> to vector<128x128xbf16>
    %c0_85 = arith.constant 0 : index
    %c2_86 = arith.constant 2 : index
    %c0_87 = arith.constant 0 : index
    %c0_88 = arith.constant 0 : index
    %51 = vector.load %arg7[%c0_85, %c2_86, %c0_87, %c0_88] : memref<2x10x16x128xbf16, #tpu.memory_space<vmem>>, vector<2x8x8x128xbf16>
    %52 = vector.shape_cast %51 : vector<2x8x8x128xbf16> to vector<128x128xbf16>
    %c0_89 = arith.constant 0 : index
    %c2_90 = arith.constant 2 : index
    %c1_91 = arith.constant 1 : index
    %c0_92 = arith.constant 0 : index
    %53 = vector.load %arg7[%c0_89, %c2_90, %c1_91, %c0_92] : memref<2x10x16x128xbf16, #tpu.memory_space<vmem>>, vector<2x8x8x128xbf16>
    %54 = vector.shape_cast %53 : vector<2x8x8x128xbf16> to vector<128x128xbf16>
    %c0_93 = arith.constant 0 : index
    %c2_94 = arith.constant 2 : index
    %c2_95 = arith.constant 2 : index
    %c0_96 = arith.constant 0 : index
    %55 = vector.load %arg7[%c0_93, %c2_94, %c2_95, %c0_96] : memref<2x10x16x128xbf16, #tpu.memory_space<vmem>>, vector<2x8x8x128xbf16>
    %56 = vector.shape_cast %55 : vector<2x8x8x128xbf16> to vector<128x128xbf16>
    %57 = tpu.concatenate %40, %42, %44, %46, %48, %50, %52, %54, %56 in 1 : vector<128x128xbf16>, vector<128x128xbf16>, vector<128x128xbf16>, vector<128x128xbf16>, vector<128x128xbf16>, vector<128x128xbf16>, vector<128x128xbf16>, vector<128x128xbf16>, vector<128x128xbf16> -> vector<128x1152xbf16>
    %c0_97 = arith.constant 0 : index
    %c0_98 = arith.constant 0 : index
    %58 = vector.load %arg4[%c0_97, %c0_98] : memref<1152x128xbf16, #tpu.memory_space<vmem>>, vector<1152x128xbf16>
    %cst_99 = arith.constant dense<0.000000e+00> : vector<128x128xf32>
    %59 = tpu.matmul %57, %58, %cst_99 {dimension_numbers = #tpu.dot_dimension_numbers<[1], [0], [0], [1], [0, 0, 1, 1], [], []>} : vector<128x1152xbf16>, vector<1152x128xbf16>, vector<128x128xf32> -> vector<128x128xf32>
    %c0_100 = arith.constant 0 : index
    %c0_101 = arith.constant 0 : index
    %60 = vector.load %arg5[%c0_100, %c0_101] : memref<1x128xf32, #tpu.memory_space<vmem>>, vector<1x128xf32>
    %61 = vector.broadcast %60 : vector<1x128xf32> to vector<128x128xf32>
    %62 = arith.addf %59, %61 : vector<128x128xf32>
    %cst_102 = arith.constant 0.000000e+00 : f32
    %63 = vector.broadcast %cst_102 : f32 to vector<128x124xf32>
    %64 = tpu.concatenate %28, %63 in 1 : vector<128x4xf32>, vector<128x124xf32> -> vector<128x128xf32>
    %65 = arith.addf %62, %64 : vector<128x128xf32>
    %cst_103 = arith.constant 0.000000e+00 : f32
    %66 = vector.broadcast %cst_103 : f32 to vector<128x128xf32>
    %67 = arith.maximumf %65, %66 : vector<128x128xf32>
    %68 = vector.shape_cast %67 : vector<128x128xf32> to vector<2x64x128xf32>
    %c0_104 = arith.constant 0 : index
    %c0_105 = arith.constant 0 : index
    %c0_106 = arith.constant 0 : index
    %69 = vector.load %arg6[%c0_104, %c0_105, %c0_106] : memref<2x64x128xf32, #tpu.memory_space<vmem>>, vector<2x64x128xf32>
    tpu.vector_store %arg6[%c0_104, %c0_105, %c0_106], %68 {strides = array<i32>} : memref<2x64x128xf32, #tpu.memory_space<vmem>>, vector<2x64x128xf32>,
    return
  }
  func.func @transform_0(%arg0: i32) -> (i32, i32, i32, i32) {
    %c0_i32 = arith.constant 0 : i32
    %c0_i32_0 = arith.constant 0 : i32
    %c0_i32_1 = arith.constant 0 : i32
    %c0_i32_2 = arith.constant 0 : i32
    return %arg0, %c0_i32, %c0_i32_0, %c0_i32_1 : i32, i32, i32, i32
  }
  func.func @transform_1(%arg0: i32) -> (i32, i32) {
    %c0_i32 = arith.constant 0 : i32
    %c0_i32_0 = arith.constant 0 : i32
    %c0_i32_1 = arith.constant 0 : i32
    return %c0_i32, %c0_i32_0 : i32, i32
  }
  func.func @transform_2(%arg0: i32) -> (i32, i32) {
    %c0_i32 = arith.constant 0 : i32
    %c0_i32_0 = arith.constant 0 : i32
    %c0_i32_1 = arith.constant 0 : i32
    return %c0_i32, %c0_i32_0 : i32, i32
  }
  func.func @transform_3(%arg0: i32) -> (i32, i32) {
    %c0_i32 = arith.constant 0 : i32
    %c0_i32_0 = arith.constant 0 : i32
    %c0_i32_1 = arith.constant 0 : i32
    return %c0_i32, %c0_i32_0 : i32, i32
  }
  func.func @transform_4(%arg0: i32) -> (i32, i32) {
    %c0_i32 = arith.constant 0 : i32
    %c0_i32_0 = arith.constant 0 : i32
    %c0_i32_1 = arith.constant 0 : i32
    return %c0_i32, %c0_i32_0 : i32, i32
  }
  func.func @transform_5(%arg0: i32) -> (i32, i32, i32) {
    %c0_i32 = arith.constant 0 : i32
    %c0_i32_0 = arith.constant 0 : i32
    %c0_i32_1 = arith.constant 0 : i32
    return %arg0, %c0_i32, %c0_i32_0 : i32, i32, i32
  }
}

</mosaic_0001>

<llo_original>
// kernel: tpu_custom_call.1
$region0: #{tpu_custom_call.1}
  #allocation0 [shape = 'u32[]', space=smem, size = 0x4, offset = 0x4, fixed_abs, tag = 'smem constant byte address 0x4 - core index']
  #allocation1 [shape = 'u32[144,128]{1,0:T(1,128)}', space=vmem, size = 0x12000, scoped, tag = 'internal scratch']
  #allocation2 [shape = 'bf16[2,10,16,128]{3,2,1,0:T(8,128)(2,1)}', space=vmem, size = 0x14000, scoped, tag = 'scratch operand']
  %s0 = inlined_call_operand.vmem [shape: bf16[2,36,9,4], index: 0, kind: input, shape index: {}]
  %s1 = inlined_call_operand.vmem [shape: bf16[36,128], index: 1, kind: input, shape index: {}]
  %s2 = inlined_call_operand.vmem [shape: f32[1,128], index: 2, kind: input, shape index: {}]
  %s3 = inlined_call_operand.vmem [shape: bf16[1152,128], index: 3, kind: input, shape index: {}]
  %s4 = inlined_call_operand.vmem [shape: f32[1,128], index: 4, kind: input, shape index: {}]
  %s5 = inlined_call_operand.hbm [shape: f32[2,64,128], index: 5, kind: output, shape index: {}]
  %s6 = sld [smem:[#allocation0]]
  $region30: #{tpu_custom_call.1} parent=0
    _
  %s8 = ssub.s32 1, %s6
  %s9 = scalar_select 0, %s8, %s6
  $region1: #{tpu_custom_call.1} parent=0
    #allocation3 [shape = 'u8[65536]{0}', space=vmem, size = 0x10000, scoped, tag = 'output window, operand 0, single buffered']
    #allocation4 [shape = 's32[1]{0}', space=sflag, size = 0x4, scoped, tag = 'scoped memory for tpu_custom_call.1']
    %10 = vsyncpa [#allocation4], 0
    // Predicated region
    $region2: #{tpu_custom_call.1} parent=1 // pred_check
      _
    $region3: #{tpu_custom_call.1} parent=1 // pred_check_branch
      %12 = sbr.rel (0) target = $region5
    $region4: #{tpu_custom_call.1} parent=1 // pred_region
      _
    $region5: #{tpu_custom_call.1} parent=1 // pred_fallthru
      _
    // Predicated region
    $region6: #{tpu_custom_call.1} parent=1 // pred_check
      _
    $region7: #{tpu_custom_call.1} parent=1 // pred_check_branch
      %14 = sbr.rel (0) target = $region9
    $region8: #{tpu_custom_call.1} parent=1 // pred_region
      _
    $region9: #{tpu_custom_call.1} parent=1 // pred_fallthru
      _
    // Predicated region
    $region10: #{tpu_custom_call.1} parent=1 // pred_check
      _
    $region11: #{tpu_custom_call.1} parent=1 // pred_check_branch
      %16 = sbr.rel (0) target = $region13
    $region12: #{tpu_custom_call.1} parent=1 // pred_region
      _
    $region13: #{tpu_custom_call.1} parent=1 // pred_fallthru
      _
    // Predicated region
    $region14: #{tpu_custom_call.1} parent=1 // pred_check
      _
    $region15: #{tpu_custom_call.1} parent=1 // pred_check_branch
      %18 = sbr.rel (0) target = $region17
    $region16: #{tpu_custom_call.1} parent=1 // pred_region
      _
    $region17: #{tpu_custom_call.1} parent=1 // pred_fallthru
      _
    // Predicated region
    $region18: #{tpu_custom_call.1} parent=1 // pred_check
      _
    $region19: #{tpu_custom_call.1} parent=1 // pred_check_branch
      %20 = sbr.rel (0) target = $region21
    $region20: #{tpu_custom_call.1} parent=1 // pred_region
      _
    $region21: #{tpu_custom_call.1} parent=1 // pred_fallthru
      _
    %v22 = vld [vmem:[%s0] sm:$0xf]
    %v23 = vld [vmem:[%s0 + $0x8] sm:$0xf]
    %v24 = vld [vmem:[%s0 + $0x10] sm:$0xf]
    %v25 = vld [vmem:[%s0 + $0x18] sm:$0xf]
    %v26 = vld [vmem:[%s0 + $0x20] sm:$0xf]
    %v27 = vld [vmem:[%s0 + $0x28] sm:$0xf]
    %v28 = vld [vmem:[%s0 + $0x30] sm:$0xf]
    %v29 = vld [vmem:[%s0 + $0x38] sm:$0xf]
    %v30 = vld [vmem:[%s0 + $0x120] sm:$0xf]
    %v31 = vld [vmem:[%s0 + $0x128] sm:$0xf]
    %v32 = vld [vmem:[%s0 + $0x130] sm:$0xf]
    %v33 = vld [vmem:[%s0 + $0x138] sm:$0xf]
    %v34 = vld [vmem:[%s0 + $0x140] sm:$0xf]
    %v35 = vld [vmem:[%s0 + $0x148] sm:$0xf]
    %v36 = vld [vmem:[%s0 + $0x150] sm:$0xf]
    %v37 = vld [vmem:[%s0 + $0x158] sm:$0xf]
    %s38 = scalar_lea.vmem %s0, 72
    %v39 = vld [vmem:[%s38] sm:$0xf]
    %v40 = vld [vmem:[%s38 + $0x8] sm:$0xf]
    %v41 = vld [vmem:[%s38 + $0x10] sm:$0xf]
    %v42 = vld [vmem:[%s38 + $0x18] sm:$0xf]
    %v43 = vld [vmem:[%s38 + $0x20] sm:$0xf]
    %v44 = vld [vmem:[%s38 + $0x28] sm:$0xf]
    %v45 = vld [vmem:[%s38 + $0x30] sm:$0xf]
    %v46 = vld [vmem:[%s38 + $0x38] sm:$0xf]
    %v47 = vld [vmem:[%s38 + $0x120] sm:$0xf]
    %v48 = vld [vmem:[%s38 + $0x128] sm:$0xf]
    %v49 = vld [vmem:[%s38 + $0x130] sm:$0xf]
    %v50 = vld [vmem:[%s38 + $0x138] sm:$0xf]
    %v51 = vld [vmem:[%s38 + $0x140] sm:$0xf]
    %v52 = vld [vmem:[%s38 + $0x148] sm:$0xf]
    %v53 = vld [vmem:[%s38 + $0x150] sm:$0xf]
    %v54 = vld [vmem:[%s38 + $0x158] sm:$0xf]
    %v55 = vld [vmem:[%s0 + $0x4] sm:$0x1]
    %v56 = vld [vmem:[%s0 + $0xc] sm:$0x1]
    %v57 = vld [vmem:[%s0 + $0x14] sm:$0x1]
    %v58 = vld [vmem:[%s0 + $0x1c] sm:$0x1]
    %v59 = vld [vmem:[%s0 + $0x24] sm:$0x1]
    %v60 = vld [vmem:[%s0 + $0x2c] sm:$0x1]
    %v61 = vld [vmem:[%s0 + $0x34] sm:$0x1]
    %v62 = vld [vmem:[%s0 + $0x3c] sm:$0x1]
    %v63 = vld [vmem:[%s0 + $0x124] sm:$0x1]
    %v64 = vld [vmem:[%s0 + $0x12c] sm:$0x1]
    %v65 = vld [vmem:[%s0 + $0x134] sm:$0x1]
    %v66 = vld [vmem:[%s0 + $0x13c] sm:$0x1]
    %v67 = vld [vmem:[%s0 + $0x144] sm:$0x1]
    %v68 = vld [vmem:[%s0 + $0x14c] sm:$0x1]
    %v69 = vld [vmem:[%s0 + $0x154] sm:$0x1]
    %v70 = vld [vmem:[%s0 + $0x15c] sm:$0x1]
    %vm71 = vsmask.f32 3328
    %vm72 = vsmask.f32 7440
    %vm73 = vmor %vm71, %vm72
    %v75 = vshrl.u32 %v22, 16
    %v77 = vrot.slane %v75, 4
    %v78 = vshll.u32 %v22, 16
    %v80 = vrot.slane %v78, 5
    %v81 = vor.u32 %v77, %v80
    %v82 = vrot.slane %v81, 4
    %v84 = vshll.u32 %v55, 16
    %v86 = vrot.slane %v84, 5
    %v87 = vsel %vm73, %v82, %v86
    %v89 = vshrl.u32 %v23, 16
    %v91 = vrot.slane %v89, 4
    %v92 = vshll.u32 %v23, 16
    %v94 = vrot.slane %v92, 5
    %v95 = vor.u32 %v91, %v94
    %v96 = vrot.slane %v95, 4
    %v98 = vshll.u32 %v56, 16
    %v100 = vrot.slane %v98, 5
    %v101 = vsel %vm73, %v96, %v100
    %v103 = vshrl.u32 %v24, 16
    %v105 = vrot.slane %v103, 4
    %v106 = vshll.u32 %v24, 16
    %v108 = vrot.slane %v106, 5
    %v109 = vor.u32 %v105, %v108
    %v110 = vrot.slane %v109, 4
    %v112 = vshll.u32 %v57, 16
    %v114 = vrot.slane %v112, 5
    %v115 = vsel %vm73, %v110, %v114
    %v117 = vshrl.u32 %v25, 16
    %v119 = vrot.slane %v117, 4
    %v120 = vshll.u32 %v25, 16
    %v122 = vrot.slane %v120, 5
    %v123 = vor.u32 %v119, %v122
    %v124 = vrot.slane %v123, 4
    %v126 = vshll.u32 %v58, 16
    %v128 = vrot.slane %v126, 5
    %v129 = vsel %vm73, %v124, %v128
    %v131 = vshrl.u32 %v26, 16
    %v133 = vrot.slane %v131, 4
    %v134 = vshll.u32 %v26, 16
    %v136 = vrot.slane %v134, 5
    %v137 = vor.u32 %v133, %v136
    %v138 = vrot.slane %v137, 4
    %v140 = vshll.u32 %v59, 16
    %v142 = vrot.slane %v140, 5
    %v143 = vsel %vm73, %v138, %v142
    %v145 = vshrl.u32 %v27, 16
    %v147 = vrot.slane %v145, 4
    %v148 = vshll.u32 %v27, 16
    %v150 = vrot.slane %v148, 5
    %v151 = vor.u32 %v147, %v150
    %v152 = vrot.slane %v151, 4
    %v154 = vshll.u32 %v60, 16
    %v156 = vrot.slane %v154, 5
    %v157 = vsel %vm73, %v152, %v156
    %v159 = vshrl.u32 %v28, 16
    %v161 = vrot.slane %v159, 4
    %v162 = vshll.u32 %v28, 16
    %v164 = vrot.slane %v162, 5
    %v165 = vor.u32 %v161, %v164
    %v166 = vrot.slane %v165, 4
    %v168 = vshll.u32 %v61, 16
    %v170 = vrot.slane %v168, 5
    %v171 = vsel %vm73, %v166, %v170
    %v173 = vshrl.u32 %v29, 16
    %v175 = vrot.slane %v173, 4
    %v176 = vshll.u32 %v29, 16
    %v178 = vrot.slane %v176, 5
    %v179 = vor.u32 %v175, %v178
    %v180 = vrot.slane %v179, 4
    %v182 = vshll.u32 %v62, 16
    %v184 = vrot.slane %v182, 5
    %v185 = vsel %vm73, %v180, %v184
    %v187 = vshrl.u32 %v30, 16
    %v189 = vrot.slane %v187, 4
    %v190 = vshll.u32 %v30, 16
    %v192 = vrot.slane %v190, 5
    %v193 = vor.u32 %v189, %v192
    %v194 = vrot.slane %v193, 4
    %v196 = vshll.u32 %v63, 16
    %v198 = vrot.slane %v196, 5
    %v199 = vsel %vm73, %v194, %v198
    %v201 = vshrl.u32 %v31, 16
    %v203 = vrot.slane %v201, 4
    %v204 = vshll.u32 %v31, 16
    %v206 = vrot.slane %v204, 5
    %v207 = vor.u32 %v203, %v206
    %v208 = vrot.slane %v207, 4
    %v210 = vshll.u32 %v64, 16
    %v212 = vrot.slane %v210, 5
    %v213 = vsel %vm73, %v208, %v212
    %v215 = vshrl.u32 %v32, 16
    %v217 = vrot.slane %v215, 4
    %v218 = vshll.u32 %v32, 16
    %v220 = vrot.slane %v218, 5
    %v221 = vor.u32 %v217, %v220
    %v222 = vrot.slane %v221, 4
    %v224 = vshll.u32 %v65, 16
    %v226 = vrot.slane %v224, 5
    %v227 = vsel %vm73, %v222, %v226
    %v229 = vshrl.u32 %v33, 16
    %v231 = vrot.slane %v229, 4
    %v232 = vshll.u32 %v33, 16
    %v234 = vrot.slane %v232, 5
    %v235 = vor.u32 %v231, %v234
    %v236 = vrot.slane %v235, 4
    %v238 = vshll.u32 %v66, 16
    %v240 = vrot.slane %v238, 5
    %v241 = vsel %vm73, %v236, %v240
    %v243 = vshrl.u32 %v34, 16
    %v245 = vrot.slane %v243, 4
    %v246 = vshll.u32 %v34, 16
    %v248 = vrot.slane %v246, 5
    %v249 = vor.u32 %v245, %v248
    %v250 = vrot.slane %v249, 4
    %v252 = vshll.u32 %v67, 16
    %v254 = vrot.slane %v252, 5
    %v255 = vsel %vm73, %v250, %v254
    %v257 = vshrl.u32 %v35, 16
    %v259 = vrot.slane %v257, 4
    %v260 = vshll.u32 %v35, 16
    %v262 = vrot.slane %v260, 5
    %v263 = vor.u32 %v259, %v262
    %v264 = vrot.slane %v263, 4
    %v266 = vshll.u32 %v68, 16
    %v268 = vrot.slane %v266, 5
    %v269 = vsel %vm73, %v264, %v268
    %v271 = vshrl.u32 %v36, 16
    %v273 = vrot.slane %v271, 4
    %v274 = vshll.u32 %v36, 16
    %v276 = vrot.slane %v274, 5
    %v277 = vor.u32 %v273, %v276
    %v278 = vrot.slane %v277, 4
    %v280 = vshll.u32 %v69, 16
    %v282 = vrot.slane %v280, 5
    %v283 = vsel %vm73, %v278, %v282
    %v285 = vshrl.u32 %v37, 16
    %v287 = vrot.slane %v285, 4
    %v288 = vshll.u32 %v37, 16
    %v290 = vrot.slane %v288, 5
    %v291 = vor.u32 %v287, %v290
    %v292 = vrot.slane %v291, 4
    %v294 = vshll.u32 %v70, 16
    %v296 = vrot.slane %v294, 5
    %v297 = vsel %vm73, %v292, %v296
    %s298 = scalar_lea.vmem %s0, 144
    %v299 = vld [vmem:[%s298] sm:$0xf]
    %v300 = vld [vmem:[%s298 + $0x8] sm:$0xf]
    %v301 = vld [vmem:[%s298 + $0x10] sm:$0xf]
    %v302 = vld [vmem:[%s298 + $0x18] sm:$0xf]
    %v303 = vld [vmem:[%s298 + $0x20] sm:$0xf]
    %v304 = vld [vmem:[%s298 + $0x28] sm:$0xf]
    %v305 = vld [vmem:[%s298 + $0x30] sm:$0xf]
    %v306 = vld [vmem:[%s298 + $0x38] sm:$0xf]
    %v307 = vld [vmem:[%s298 + $0x120] sm:$0xf]
    %v308 = vld [vmem:[%s298 + $0x128] sm:$0xf]
    %v309 = vld [vmem:[%s298 + $0x130] sm:$0xf]
    %v310 = vld [vmem:[%s298 + $0x138] sm:$0xf]
    %v311 = vld [vmem:[%s298 + $0x140] sm:$0xf]
    %v312 = vld [vmem:[%s298 + $0x148] sm:$0xf]
    %v313 = vld [vmem:[%s298 + $0x150] sm:$0xf]
    %v314 = vld [vmem:[%s298 + $0x158] sm:$0xf]
    %s315 = scalar_lea.vmem %s0, 216
    %v316 = vld [vmem:[%s315] sm:$0xf]
    %v317 = vld [vmem:[%s315 + $0x8] sm:$0xf]
    %v318 = vld [vmem:[%s315 + $0x10] sm:$0xf]
    %v319 = vld [vmem:[%s315 + $0x18] sm:$0xf]
    %v320 = vld [vmem:[%s315 + $0x20] sm:$0xf]
    %v321 = vld [vmem:[%s315 + $0x28] sm:$0xf]
    %v322 = vld [vmem:[%s315 + $0x30] sm:$0xf]
    %v323 = vld [vmem:[%s315 + $0x38] sm:$0xf]
    %v324 = vld [vmem:[%s315 + $0x120] sm:$0xf]
    %v325 = vld [vmem:[%s315 + $0x128] sm:$0xf]
    %v326 = vld [vmem:[%s315 + $0x130] sm:$0xf]
    %v327 = vld [vmem:[%s315 + $0x138] sm:$0xf]
    %v328 = vld [vmem:[%s315 + $0x140] sm:$0xf]
    %v329 = vld [vmem:[%s315 + $0x148] sm:$0xf]
    %v330 = vld [vmem:[%s315 + $0x150] sm:$0xf]
    %v331 = vld [vmem:[%s315 + $0x158] sm:$0xf]
    %v332 = vld [vmem:[%s298 + $0x4] sm:$0x1]
    %v333 = vld [vmem:[%s298 + $0xc] sm:$0x1]
    %v334 = vld [vmem:[%s298 + $0x14] sm:$0x1]
    %v335 = vld [vmem:[%s298 + $0x1c] sm:$0x1]
    %v336 = vld [vmem:[%s298 + $0x24] sm:$0x1]
    %v337 = vld [vmem:[%s298 + $0x2c] sm:$0x1]
    %v338 = vld [vmem:[%s298 + $0x34] sm:$0x1]
    %v339 = vld [vmem:[%s298 + $0x3c] sm:$0x1]
    %v340 = vld [vmem:[%s298 + $0x124] sm:$0x1]
    %v341 = vld [vmem:[%s298 + $0x12c] sm:$0x1]
    %v342 = vld [vmem:[%s298 + $0x134] sm:$0x1]
    %v343 = vld [vmem:[%s298 + $0x13c] sm:$0x1]
    %v344 = vld [vmem:[%s298 + $0x144] sm:$0x1]
    %v345 = vld [vmem:[%s298 + $0x14c] sm:$0x1]
    %v346 = vld [vmem:[%s298 + $0x154] sm:$0x1]
    %v347 = vld [vmem:[%s298 + $0x15c] sm:$0x1]
    %v349 = vshrl.u32 %v299, 16
    %v351 = vrot.slane %v349, 4
    %v352 = vshll.u32 %v299, 16
    %v354 = vrot.slane %v352, 5
    %v355 = vor.u32 %v351, %v354
    %v356 = vrot.slane %v355, 4
    %v358 = vshll.u32 %v332, 16
    %v360 = vrot.slane %v358, 5
    %v361 = vsel %vm73, %v356, %v360
    %v363 = vshrl.u32 %v300, 16
    %v365 = vrot.slane %v363, 4
    %v366 = vshll.u32 %v300, 16
    %v368 = vrot.slane %v366, 5
    %v369 = vor.u32 %v365, %v368
    %v370 = vrot.slane %v369, 4
    %v372 = vshll.u32 %v333, 16
    %v374 = vrot.slane %v372, 5
    %v375 = vsel %vm73, %v370, %v374
    %v377 = vshrl.u32 %v301, 16
    %v379 = vrot.slane %v377, 4
    %v380 = vshll.u32 %v301, 16
    %v382 = vrot.slane %v380, 5
    %v383 = vor.u32 %v379, %v382
    %v384 = vrot.slane %v383, 4
    %v386 = vshll.u32 %v334, 16
    %v388 = vrot.slane %v386, 5
    %v389 = vsel %vm73, %v384, %v388
    %v391 = vshrl.u32 %v302, 16
    %v393 = vrot.slane %v391, 4
    %v394 = vshll.u32 %v302, 16
    %v396 = vrot.slane %v394, 5
    %v397 = vor.u32 %v393, %v396
    %v398 = vrot.slane %v397, 4
    %v400 = vshll.u32 %v335, 16
    %v402 = vrot.slane %v400, 5
    %v403 = vsel %vm73, %v398, %v402
    %v405 = vshrl.u32 %v303, 16
    %v407 = vrot.slane %v405, 4
    %v408 = vshll.u32 %v303, 16
    %v410 = vrot.slane %v408, 5
    %v411 = vor.u32 %v407, %v410
    %v412 = vrot.slane %v411, 4
    %v414 = vshll.u32 %v336, 16
    %v416 = vrot.slane %v414, 5
    %v417 = vsel %vm73, %v412, %v416
    %v419 = vshrl.u32 %v304, 16
    %v421 = vrot.slane %v419, 4
    %v422 = vshll.u32 %v304, 16
    %v424 = vrot.slane %v422, 5
    %v425 = vor.u32 %v421, %v424
    %v426 = vrot.slane %v425, 4
    %v428 = vshll.u32 %v337, 16
    %v430 = vrot.slane %v428, 5
    %v431 = vsel %vm73, %v426, %v430
    %v433 = vshrl.u32 %v305, 16
    %v435 = vrot.slane %v433, 4
    %v436 = vshll.u32 %v305, 16
    %v438 = vrot.slane %v436, 5
    %v439 = vor.u32 %v435, %v438
    %v440 = vrot.slane %v439, 4
    %v442 = vshll.u32 %v338, 16
    %v444 = vrot.slane %v442, 5
    %v445 = vsel %vm73, %v440, %v444
    %v447 = vshrl.u32 %v306, 16
    %v449 = vrot.slane %v447, 4
    %v450 = vshll.u32 %v306, 16
    %v452 = vrot.slane %v450, 5
    %v453 = vor.u32 %v449, %v452
    %v454 = vrot.slane %v453, 4
    %v456 = vshll.u32 %v339, 16
    %v458 = vrot.slane %v456, 5
    %v459 = vsel %vm73, %v454, %v458
    %v461 = vshrl.u32 %v307, 16
    %v463 = vrot.slane %v461, 4
    %v464 = vshll.u32 %v307, 16
    %v466 = vrot.slane %v464, 5
    %v467 = vor.u32 %v463, %v466
    %v468 = vrot.slane %v467, 4
    %v470 = vshll.u32 %v340, 16
    %v472 = vrot.slane %v470, 5
    %v473 = vsel %vm73, %v468, %v472
    %v475 = vshrl.u32 %v308, 16
    %v477 = vrot.slane %v475, 4
    %v478 = vshll.u32 %v308, 16
    %v480 = vrot.slane %v478, 5
    %v481 = vor.u32 %v477, %v480
    %v482 = vrot.slane %v481, 4
    %v484 = vshll.u32 %v341, 16
    %v486 = vrot.slane %v484, 5
    %v487 = vsel %vm73, %v482, %v486
    %v489 = vshrl.u32 %v309, 16
    %v491 = vrot.slane %v489, 4
    %v492 = vshll.u32 %v309, 16
    %v494 = vrot.slane %v492, 5
    %v495 = vor.u32 %v491, %v494
    %v496 = vrot.slane %v495, 4
    %v498 = vshll.u32 %v342, 16
    %v500 = vrot.slane %v498, 5
    %v501 = vsel %vm73, %v496, %v500
    %v503 = vshrl.u32 %v310, 16
    %v505 = vrot.slane %v503, 4
    %v506 = vshll.u32 %v310, 16
    %v508 = vrot.slane %v506, 5
    %v509 = vor.u32 %v505, %v508
    %v510 = vrot.slane %v509, 4
    %v512 = vshll.u32 %v343, 16
    %v514 = vrot.slane %v512, 5
    %v515 = vsel %vm73, %v510, %v514
    %v517 = vshrl.u32 %v311, 16
    %v519 = vrot.slane %v517, 4
    %v520 = vshll.u32 %v311, 16
    %v522 = vrot.slane %v520, 5
    %v523 = vor.u32 %v519, %v522
    %v524 = vrot.slane %v523, 4
    %v526 = vshll.u32 %v344, 16
    %v528 = vrot.slane %v526, 5
    %v529 = vsel %vm73, %v524, %v528
    %v531 = vshrl.u32 %v312, 16
    %v533 = vrot.slane %v531, 4
    %v534 = vshll.u32 %v312, 16
    %v536 = vrot.slane %v534, 5
    %v537 = vor.u32 %v533, %v536
    %v538 = vrot.slane %v537, 4
    %v540 = vshll.u32 %v345, 16
    %v542 = vrot.slane %v540, 5
    %v543 = vsel %vm73, %v538, %v542
    %v545 = vshrl.u32 %v313, 16
    %v547 = vrot.slane %v545, 4
    %v548 = vshll.u32 %v313, 16
    %v550 = vrot.slane %v548, 5
    %v551 = vor.u32 %v547, %v550
    %v552 = vrot.slane %v551, 4
    %v554 = vshll.u32 %v346, 16
    %v556 = vrot.slane %v554, 5
    %v557 = vsel %vm73, %v552, %v556
    %v559 = vshrl.u32 %v314, 16
    %v561 = vrot.slane %v559, 4
    %v562 = vshll.u32 %v314, 16
    %v564 = vrot.slane %v562, 5
    %v565 = vor.u32 %v561, %v564
    %v566 = vrot.slane %v565, 4
    %v568 = vshll.u32 %v347, 16
    %v570 = vrot.slane %v568, 5
    %v571 = vsel %vm73, %v566, %v570
    %s572 = scalar_lea.vmem %s0, 8
    %v573 = vld [vmem:[%s572] sm:$0xf]
    %v574 = vld [vmem:[%s572 + $0x8] sm:$0xf]
    %v575 = vld [vmem:[%s572 + $0x10] sm:$0xf]
    %v576 = vld [vmem:[%s572 + $0x18] sm:$0xf]
    %v577 = vld [vmem:[%s572 + $0x20] sm:$0xf]
    %v578 = vld [vmem:[%s572 + $0x28] sm:$0xf]
    %v579 = vld [vmem:[%s572 + $0x30] sm:$0xf]
    %v580 = vld [vmem:[%s572 + $0x38] sm:$0xf]
    %v581 = vld [vmem:[%s572 + $0x120] sm:$0xf]
    %v582 = vld [vmem:[%s572 + $0x128] sm:$0xf]
    %v583 = vld [vmem:[%s572 + $0x130] sm:$0xf]
    %v584 = vld [vmem:[%s572 + $0x138] sm:$0xf]
    %v585 = vld [vmem:[%s572 + $0x140] sm:$0xf]
    %v586 = vld [vmem:[%s572 + $0x148] sm:$0xf]
    %v587 = vld [vmem:[%s572 + $0x150] sm:$0xf]
    %v588 = vld [vmem:[%s572 + $0x158] sm:$0xf]
    %s589 = scalar_lea.vmem %s0, 80
    %v590 = vld [vmem:[%s589] sm:$0xf]
    %v591 = vld [vmem:[%s589 + $0x8] sm:$0xf]
    %v592 = vld [vmem:[%s589 + $0x10] sm:$0xf]
    %v593 = vld [vmem:[%s589 + $0x18] sm:$0xf]
    %v594 = vld [vmem:[%s589 + $0x20] sm:$0xf]
    %v595 = vld [vmem:[%s589 + $0x28] sm:$0xf]
    %v596 = vld [vmem:[%s589 + $0x30] sm:$0xf]
    %v597 = vld [vmem:[%s589 + $0x38] sm:$0xf]
    %v598 = vld [vmem:[%s589 + $0x120] sm:$0xf]
    %v599 = vld [vmem:[%s589 + $0x128] sm:$0xf]
    %v600 = vld [vmem:[%s589 + $0x130] sm:$0xf]
    %v601 = vld [vmem:[%s589 + $0x138] sm:$0xf]
    %v602 = vld [vmem:[%s589 + $0x140] sm:$0xf]
    %v603 = vld [vmem:[%s589 + $0x148] sm:$0xf]
    %v604 = vld [vmem:[%s589 + $0x150] sm:$0xf]
    %v605 = vld [vmem:[%s589 + $0x158] sm:$0xf]
    %v606 = vld [vmem:[%s572 + $0x4] sm:$0x1]
    %v607 = vld [vmem:[%s572 + $0xc] sm:$0x1]
    %v608 = vld [vmem:[%s572 + $0x14] sm:$0x1]
    %v609 = vld [vmem:[%s572 + $0x1c] sm:$0x1]
    %v610 = vld [vmem:[%s572 + $0x24] sm:$0x1]
    %v611 = vld [vmem:[%s572 + $0x2c] sm:$0x1]
    %v612 = vld [vmem:[%s572 + $0x34] sm:$0x1]
    %v613 = vld [vmem:[%s572 + $0x3c] sm:$0x1]
    %v614 = vld [vmem:[%s572 + $0x124] sm:$0x1]
    %v615 = vld [vmem:[%s572 + $0x12c] sm:$0x1]
    %v616 = vld [vmem:[%s572 + $0x134] sm:$0x1]
    %v617 = vld [vmem:[%s572 + $0x13c] sm:$0x1]
    %v618 = vld [vmem:[%s572 + $0x144] sm:$0x1]
    %v619 = vld [vmem:[%s572 + $0x14c] sm:$0x1]
    %v620 = vld [vmem:[%s572 + $0x154] sm:$0x1]
    %v621 = vld [vmem:[%s572 + $0x15c] sm:$0x1]
    %v623 = vshrl.u32 %v573, 16
    %v625 = vrot.slane %v623, 4
    %v626 = vshll.u32 %v573, 16
    %v628 = vrot.slane %v626, 5
    %v629 = vor.u32 %v625, %v628
    %v630 = vrot.slane %v629, 4
    %v632 = vshll.u32 %v606, 16
    %v634 = vrot.slane %v632, 5
    %v635 = vsel %vm73, %v630, %v634
    %v637 = vshrl.u32 %v574, 16
    %v639 = vrot.slane %v637, 4
    %v640 = vshll.u32 %v574, 16
    %v642 = vrot.slane %v640, 5
    %v643 = vor.u32 %v639, %v642
    %v644 = vrot.slane %v643, 4
    %v646 = vshll.u32 %v607, 16
    %v648 = vrot.slane %v646, 5
    %v649 = vsel %vm73, %v644, %v648
    %v651 = vshrl.u32 %v575, 16
    %v653 = vrot.slane %v651, 4
    %v654 = vshll.u32 %v575, 16
    %v656 = vrot.slane %v654, 5
    %v657 = vor.u32 %v653, %v656
    %v658 = vrot.slane %v657, 4
    %v660 = vshll.u32 %v608, 16
    %v662 = vrot.slane %v660, 5
    %v663 = vsel %vm73, %v658, %v662
    %v665 = vshrl.u32 %v576, 16
    %v667 = vrot.slane %v665, 4
    %v668 = vshll.u32 %v576, 16
    %v670 = vrot.slane %v668, 5
    %v671 = vor.u32 %v667, %v670
    %v672 = vrot.slane %v671, 4
    %v674 = vshll.u32 %v609, 16
    %v676 = vrot.slane %v674, 5
    %v677 = vsel %vm73, %v672, %v676
    %v679 = vshrl.u32 %v577, 16
    %v681 = vrot.slane %v679, 4
    %v682 = vshll.u32 %v577, 16
    %v684 = vrot.slane %v682, 5
    %v685 = vor.u32 %v681, %v684
    %v686 = vrot.slane %v685, 4
    %v688 = vshll.u32 %v610, 16
    %v690 = vrot.slane %v688, 5
    %v691 = vsel %vm73, %v686, %v690
    %v693 = vshrl.u32 %v578, 16
    %v695 = vrot.slane %v693, 4
    %v696 = vshll.u32 %v578, 16
    %v698 = vrot.slane %v696, 5
    %v699 = vor.u32 %v695, %v698
    %v700 = vrot.slane %v699, 4
    %v702 = vshll.u32 %v611, 16
    %v704 = vrot.slane %v702, 5
    %v705 = vsel %vm73, %v700, %v704
    %v707 = vshrl.u32 %v579, 16
    %v709 = vrot.slane %v707, 4
    %v710 = vshll.u32 %v579, 16
    %v712 = vrot.slane %v710, 5
    %v713 = vor.u32 %v709, %v712
    %v714 = vrot.slane %v713, 4
    %v716 = vshll.u32 %v612, 16
    %v718 = vrot.slane %v716, 5
    %v719 = vsel %vm73, %v714, %v718
    %v721 = vshrl.u32 %v580, 16
    %v723 = vrot.slane %v721, 4
    %v724 = vshll.u32 %v580, 16
    %v726 = vrot.slane %v724, 5
    %v727 = vor.u32 %v723, %v726
    %v728 = vrot.slane %v727, 4
    %v730 = vshll.u32 %v613, 16
    %v732 = vrot.slane %v730, 5
    %v733 = vsel %vm73, %v728, %v732
    %v735 = vshrl.u32 %v581, 16
    %v737 = vrot.slane %v735, 4
    %v738 = vshll.u32 %v581, 16
    %v740 = vrot.slane %v738, 5
    %v741 = vor.u32 %v737, %v740
    %v742 = vrot.slane %v741, 4
    %v744 = vshll.u32 %v614, 16
    %v746 = vrot.slane %v744, 5
    %v747 = vsel %vm73, %v742, %v746
    %v749 = vshrl.u32 %v582, 16
    %v751 = vrot.slane %v749, 4
    %v752 = vshll.u32 %v582, 16
    %v754 = vrot.slane %v752, 5
    %v755 = vor.u32 %v751, %v754
    %v756 = vrot.slane %v755, 4
    %v758 = vshll.u32 %v615, 16
    %v760 = vrot.slane %v758, 5
    %v761 = vsel %vm73, %v756, %v760
    %v763 = vshrl.u32 %v583, 16
    %v765 = vrot.slane %v763, 4
    %v766 = vshll.u32 %v583, 16
    %v768 = vrot.slane %v766, 5
    %v769 = vor.u32 %v765, %v768
    %v770 = vrot.slane %v769, 4
    %v772 = vshll.u32 %v616, 16
    %v774 = vrot.slane %v772, 5
    %v775 = vsel %vm73, %v770, %v774
    %v777 = vshrl.u32 %v584, 16
    %v779 = vrot.slane %v777, 4
    %v780 = vshll.u32 %v584, 16
    %v782 = vrot.slane %v780, 5
    %v783 = vor.u32 %v779, %v782
    %v784 = vrot.slane %v783, 4
    %v786 = vshll.u32 %v617, 16
    %v788 = vrot.slane %v786, 5
    %v789 = vsel %vm73, %v784, %v788
    %v791 = vshrl.u32 %v585, 16
    %v793 = vrot.slane %v791, 4
    %v794 = vshll.u32 %v585, 16
    %v796 = vrot.slane %v794, 5
    %v797 = vor.u32 %v793, %v796
    %v798 = vrot.slane %v797, 4
    %v800 = vshll.u32 %v618, 16
    %v802 = vrot.slane %v800, 5
    %v803 = vsel %vm73, %v798, %v802
    %v805 = vshrl.u32 %v586, 16
    %v807 = vrot.slane %v805, 4
    %v808 = vshll.u32 %v586, 16
    %v810 = vrot.slane %v808, 5
    %v811 = vor.u32 %v807, %v810
    %v812 = vrot.slane %v811, 4
    %v814 = vshll.u32 %v619, 16
    %v816 = vrot.slane %v814, 5
    %v817 = vsel %vm73, %v812, %v816
    %v819 = vshrl.u32 %v587, 16
    %v821 = vrot.slane %v819, 4
    %v822 = vshll.u32 %v587, 16
    %v824 = vrot.slane %v822, 5
    %v825 = vor.u32 %v821, %v824
    %v826 = vrot.slane %v825, 4
    %v828 = vshll.u32 %v620, 16
    %v830 = vrot.slane %v828, 5
    %v831 = vsel %vm73, %v826, %v830
    %v833 = vshrl.u32 %v588, 16
    %v835 = vrot.slane %v833, 4
    %v836 = vshll.u32 %v588, 16
    %v838 = vrot.slane %v836, 5
    %v839 = vor.u32 %v835, %v838
    %v840 = vrot.slane %v839, 4
    %v842 = vshll.u32 %v621, 16
    %v844 = vrot.slane %v842, 5
    %v845 = vsel %vm73, %v840, %v844
    %v862 = vunpack.c.l.b16 %v22
    %v863 = vunpack.c.l.b16 %v23
    %v864 = vunpack.c.l.b16 %v24
    %v865 = vunpack.c.l.b16 %v25
    %v866 = vunpack.c.l.b16 %v26
    %v867 = vunpack.c.l.b16 %v27
    %v868 = vunpack.c.l.b16 %v28
    %v869 = vunpack.c.l.b16 %v29
    %v870 = vunpack.c.l.b16 %v30
    %v871 = vunpack.c.l.b16 %v31
    %v872 = vunpack.c.l.b16 %v32
    %v873 = vunpack.c.l.b16 %v33
    %v874 = vunpack.c.l.b16 %v34
    %v875 = vunpack.c.l.b16 %v35
    %v876 = vunpack.c.l.b16 %v36
    %v877 = vunpack.c.l.b16 %v37
    %v878 = vpack.c.b16 %v863, %v862
    %v879 = vpack.c.b16 %v865, %v864
    %v880 = vpack.c.b16 %v867, %v866
    %v881 = vpack.c.b16 %v869, %v868
    %v882 = vpack.c.b16 %v871, %v870
    %v883 = vpack.c.b16 %v873, %v872
    %v884 = vpack.c.b16 %v875, %v874
    %v885 = vpack.c.b16 %v877, %v876
    %v902 = vunpack.c.l.b16 %v39
    %v903 = vunpack.c.l.b16 %v40
    %v904 = vunpack.c.l.b16 %v41
    %v905 = vunpack.c.l.b16 %v42
    %v906 = vunpack.c.l.b16 %v43
    %v907 = vunpack.c.l.b16 %v44
    %v908 = vunpack.c.l.b16 %v45
    %v909 = vunpack.c.l.b16 %v46
    %v910 = vunpack.c.l.b16 %v47
    %v911 = vunpack.c.l.b16 %v48
    %v912 = vunpack.c.l.b16 %v49
    %v913 = vunpack.c.l.b16 %v50
    %v914 = vunpack.c.l.b16 %v51
    %v915 = vunpack.c.l.b16 %v52
    %v916 = vunpack.c.l.b16 %v53
    %v917 = vunpack.c.l.b16 %v54
    %v918 = vpack.c.b16 %v903, %v902
    %v919 = vpack.c.b16 %v905, %v904
    %v920 = vpack.c.b16 %v907, %v906
    %v921 = vpack.c.b16 %v909, %v908
    %v922 = vpack.c.b16 %v911, %v910
    %v923 = vpack.c.b16 %v913, %v912
    %v924 = vpack.c.b16 %v915, %v914
    %v925 = vpack.c.b16 %v917, %v916
    %926 = vrot.lane.b32.xlu0 %v918, 4
    %v927 = vpop.permute.xlu0 %926
    %928 = vrot.lane.b32.xlu0 %v919, 4
    %v929 = vpop.permute.xlu0 %928
    %930 = vrot.lane.b32.xlu0 %v920, 4
    %v931 = vpop.permute.xlu0 %930
    %932 = vrot.lane.b32.xlu0 %v921, 4
    %v933 = vpop.permute.xlu0 %932
    %934 = vrot.lane.b32.xlu0 %v922, 4
    %v935 = vpop.permute.xlu0 %934
    %936 = vrot.lane.b32.xlu0 %v923, 4
    %v937 = vpop.permute.xlu0 %936
    %938 = vrot.lane.b32.xlu0 %v924, 4
    %v939 = vpop.permute.xlu0 %938
    %940 = vrot.lane.b32.xlu0 %v925, 4
    %v941 = vpop.permute.xlu0 %940
    %v942 = vunpack.c.l.b16 %v87
    %v943 = vunpack.c.l.b16 %v101
    %v944 = vunpack.c.l.b16 %v115
    %v945 = vunpack.c.l.b16 %v129
    %v946 = vunpack.c.l.b16 %v143
    %v947 = vunpack.c.l.b16 %v157
    %v948 = vunpack.c.l.b16 %v171
    %v949 = vunpack.c.l.b16 %v185
    %v950 = vunpack.c.l.b16 %v199
    %v951 = vunpack.c.l.b16 %v213
    %v952 = vunpack.c.l.b16 %v227
    %v953 = vunpack.c.l.b16 %v241
    %v954 = vunpack.c.l.b16 %v255
    %v955 = vunpack.c.l.b16 %v269
    %v956 = vunpack.c.l.b16 %v283
    %v957 = vunpack.c.l.b16 %v297
    %v958 = vpack.c.b16 %v943, %v942
    %v959 = vpack.c.b16 %v945, %v944
    %v960 = vpack.c.b16 %v947, %v946
    %v961 = vpack.c.b16 %v949, %v948
    %v962 = vpack.c.b16 %v951, %v950
    %v963 = vpack.c.b16 %v953, %v952
    %v964 = vpack.c.b16 %v955, %v954
    %v965 = vpack.c.b16 %v957, %v956
    %966 = vrot.lane.b32.xlu0 %v958, 8
    %v967 = vpop.permute.xlu0 %966
    %968 = vrot.lane.b32.xlu0 %v959, 8
    %v969 = vpop.permute.xlu0 %968
    %970 = vrot.lane.b32.xlu0 %v960, 8
    %v971 = vpop.permute.xlu0 %970
    %972 = vrot.lane.b32.xlu0 %v961, 8
    %v973 = vpop.permute.xlu0 %972
    %974 = vrot.lane.b32.xlu0 %v962, 8
    %v975 = vpop.permute.xlu0 %974
    %976 = vrot.lane.b32.xlu0 %v963, 8
    %v977 = vpop.permute.xlu0 %976
    %978 = vrot.lane.b32.xlu0 %v964, 8
    %v979 = vpop.permute.xlu0 %978
    %980 = vrot.lane.b32.xlu0 %v965, 8
    %v981 = vpop.permute.xlu0 %980
    %v998 = vunpack.c.l.b16 %v299
    %v999 = vunpack.c.l.b16 %v300
    %v1000 = vunpack.c.l.b16 %v301
    %v1001 = vunpack.c.l.b16 %v302
    %v1002 = vunpack.c.l.b16 %v303
    %v1003 = vunpack.c.l.b16 %v304
    %v1004 = vunpack.c.l.b16 %v305
    %v1005 = vunpack.c.l.b16 %v306
    %v1006 = vunpack.c.l.b16 %v307
    %v1007 = vunpack.c.l.b16 %v308
    %v1008 = vunpack.c.l.b16 %v309
    %v1009 = vunpack.c.l.b16 %v310
    %v1010 = vunpack.c.l.b16 %v311
    %v1011 = vunpack.c.l.b16 %v312
    %v1012 = vunpack.c.l.b16 %v313
    %v1013 = vunpack.c.l.b16 %v314
    %v1014 = vpack.c.b16 %v999, %v998
    %v1015 = vpack.c.b16 %v1001, %v1000
    %v1016 = vpack.c.b16 %v1003, %v1002
    %v1017 = vpack.c.b16 %v1005, %v1004
    %v1018 = vpack.c.b16 %v1007, %v1006
    %v1019 = vpack.c.b16 %v1009, %v1008
    %v1020 = vpack.c.b16 %v1011, %v1010
    %v1021 = vpack.c.b16 %v1013, %v1012
    %1022 = vrot.lane.b32.xlu0 %v1014, 12
    %v1023 = vpop.permute.xlu0 %1022
    %1024 = vrot.lane.b32.xlu0 %v1015, 12
    %v1025 = vpop.permute.xlu0 %1024
    %1026 = vrot.lane.b32.xlu0 %v1016, 12
    %v1027 = vpop.permute.xlu0 %1026
    %1028 = vrot.lane.b32.xlu0 %v1017, 12
    %v1029 = vpop.permute.xlu0 %1028
    %1030 = vrot.lane.b32.xlu0 %v1018, 12
    %v1031 = vpop.permute.xlu0 %1030
    %1032 = vrot.lane.b32.xlu0 %v1019, 12
    %v1033 = vpop.permute.xlu0 %1032
    %1034 = vrot.lane.b32.xlu0 %v1020, 12
    %v1035 = vpop.permute.xlu0 %1034
    %1036 = vrot.lane.b32.xlu0 %v1021, 12
    %v1037 = vpop.permute.xlu0 %1036
    %v1054 = vunpack.c.l.b16 %v316
    %v1055 = vunpack.c.l.b16 %v317
    %v1056 = vunpack.c.l.b16 %v318
    %v1057 = vunpack.c.l.b16 %v319
    %v1058 = vunpack.c.l.b16 %v320
    %v1059 = vunpack.c.l.b16 %v321
    %v1060 = vunpack.c.l.b16 %v322
    %v1061 = vunpack.c.l.b16 %v323
    %v1062 = vunpack.c.l.b16 %v324
    %v1063 = vunpack.c.l.b16 %v325
    %v1064 = vunpack.c.l.b16 %v326
    %v1065 = vunpack.c.l.b16 %v327
    %v1066 = vunpack.c.l.b16 %v328
    %v1067 = vunpack.c.l.b16 %v329
    %v1068 = vunpack.c.l.b16 %v330
    %v1069 = vunpack.c.l.b16 %v331
    %v1070 = vpack.c.b16 %v1055, %v1054
    %v1071 = vpack.c.b16 %v1057, %v1056
    %v1072 = vpack.c.b16 %v1059, %v1058
    %v1073 = vpack.c.b16 %v1061, %v1060
    %v1074 = vpack.c.b16 %v1063, %v1062
    %v1075 = vpack.c.b16 %v1065, %v1064
    %v1076 = vpack.c.b16 %v1067, %v1066
    %v1077 = vpack.c.b16 %v1069, %v1068
    %1078 = vrot.lane.b32.xlu0 %v1070, 16
    %v1079 = vpop.permute.xlu0 %1078
    %1080 = vrot.lane.b32.xlu0 %v1071, 16
    %v1081 = vpop.permute.xlu0 %1080
    %1082 = vrot.lane.b32.xlu0 %v1072, 16
    %v1083 = vpop.permute.xlu0 %1082
    %1084 = vrot.lane.b32.xlu0 %v1073, 16
    %v1085 = vpop.permute.xlu0 %1084
    %1086 = vrot.lane.b32.xlu0 %v1074, 16
    %v1087 = vpop.permute.xlu0 %1086
    %1088 = vrot.lane.b32.xlu0 %v1075, 16
    %v1089 = vpop.permute.xlu0 %1088
    %1090 = vrot.lane.b32.xlu0 %v1076, 16
    %v1091 = vpop.permute.xlu0 %1090
    %1092 = vrot.lane.b32.xlu0 %v1077, 16
    %v1093 = vpop.permute.xlu0 %1092
    %v1094 = vunpack.c.l.b16 %v361
    %v1095 = vunpack.c.l.b16 %v375
    %v1096 = vunpack.c.l.b16 %v389
    %v1097 = vunpack.c.l.b16 %v403
    %v1098 = vunpack.c.l.b16 %v417
    %v1099 = vunpack.c.l.b16 %v431
    %v1100 = vunpack.c.l.b16 %v445
    %v1101 = vunpack.c.l.b16 %v459
    %v1102 = vunpack.c.l.b16 %v473
    %v1103 = vunpack.c.l.b16 %v487
    %v1104 = vunpack.c.l.b16 %v501
    %v1105 = vunpack.c.l.b16 %v515
    %v1106 = vunpack.c.l.b16 %v529
    %v1107 = vunpack.c.l.b16 %v543
    %v1108 = vunpack.c.l.b16 %v557
    %v1109 = vunpack.c.l.b16 %v571
    %v1110 = vpack.c.b16 %v1095, %v1094
    %v1111 = vpack.c.b16 %v1097, %v1096
    %v1112 = vpack.c.b16 %v1099, %v1098
    %v1113 = vpack.c.b16 %v1101, %v1100
    %v1114 = vpack.c.b16 %v1103, %v1102
    %v1115 = vpack.c.b16 %v1105, %v1104
    %v1116 = vpack.c.b16 %v1107, %v1106
    %v1117 = vpack.c.b16 %v1109, %v1108
    %1118 = vrot.lane.b32.xlu0 %v1110, 20
    %v1119 = vpop.permute.xlu0 %1118
    %1120 = vrot.lane.b32.xlu0 %v1111, 20
    %v1121 = vpop.permute.xlu0 %1120
    %1122 = vrot.lane.b32.xlu0 %v1112, 20
    %v1123 = vpop.permute.xlu0 %1122
    %1124 = vrot.lane.b32.xlu0 %v1113, 20
    %v1125 = vpop.permute.xlu0 %1124
    %1126 = vrot.lane.b32.xlu0 %v1114, 20
    %v1127 = vpop.permute.xlu0 %1126
    %1128 = vrot.lane.b32.xlu0 %v1115, 20
    %v1129 = vpop.permute.xlu0 %1128
    %1130 = vrot.lane.b32.xlu0 %v1116, 20
    %v1131 = vpop.permute.xlu0 %1130
    %1132 = vrot.lane.b32.xlu0 %v1117, 20
    %v1133 = vpop.permute.xlu0 %1132
    %v1150 = vunpack.c.l.b16 %v573
    %v1151 = vunpack.c.l.b16 %v574
    %v1152 = vunpack.c.l.b16 %v575
    %v1153 = vunpack.c.l.b16 %v576
    %v1154 = vunpack.c.l.b16 %v577
    %v1155 = vunpack.c.l.b16 %v578
    %v1156 = vunpack.c.l.b16 %v579
    %v1157 = vunpack.c.l.b16 %v580
    %v1158 = vunpack.c.l.b16 %v581
    %v1159 = vunpack.c.l.b16 %v582
    %v1160 = vunpack.c.l.b16 %v583
    %v1161 = vunpack.c.l.b16 %v584
    %v1162 = vunpack.c.l.b16 %v585
    %v1163 = vunpack.c.l.b16 %v586
    %v1164 = vunpack.c.l.b16 %v587
    %v1165 = vunpack.c.l.b16 %v588
    %v1166 = vpack.c.b16 %v1151, %v1150
    %v1167 = vpack.c.b16 %v1153, %v1152
    %v1168 = vpack.c.b16 %v1155, %v1154
    %v1169 = vpack.c.b16 %v1157, %v1156
    %v1170 = vpack.c.b16 %v1159, %v1158
    %v1171 = vpack.c.b16 %v1161, %v1160
    %v1172 = vpack.c.b16 %v1163, %v1162
    %v1173 = vpack.c.b16 %v1165, %v1164
    %1174 = vrot.lane.b32.xlu0 %v1166, 24
    %v1175 = vpop.permute.xlu0 %1174
    %1176 = vrot.lane.b32.xlu0 %v1167, 24
    %v1177 = vpop.permute.xlu0 %1176
    %1178 = vrot.lane.b32.xlu0 %v1168, 24
    %v1179 = vpop.permute.xlu0 %1178
    %1180 = vrot.lane.b32.xlu0 %v1169, 24
    %v1181 = vpop.permute.xlu0 %1180
    %1182 = vrot.lane.b32.xlu0 %v1170, 24
    %v1183 = vpop.permute.xlu0 %1182
    %1184 = vrot.lane.b32.xlu0 %v1171, 24
    %v1185 = vpop.permute.xlu0 %1184
    %1186 = vrot.lane.b32.xlu0 %v1172, 24
    %v1187 = vpop.permute.xlu0 %1186
    %1188 = vrot.lane.b32.xlu0 %v1173, 24
    %v1189 = vpop.permute.xlu0 %1188
    %v1206 = vunpack.c.l.b16 %v590
    %v1207 = vunpack.c.l.b16 %v591
    %v1208 = vunpack.c.l.b16 %v592
    %v1209 = vunpack.c.l.b16 %v593
    %v1210 = vunpack.c.l.b16 %v594
    %v1211 = vunpack.c.l.b16 %v595
    %v1212 = vunpack.c.l.b16 %v596
    %v1213 = vunpack.c.l.b16 %v597
    %v1214 = vunpack.c.l.b16 %v598
    %v1215 = vunpack.c.l.b16 %v599
    %v1216 = vunpack.c.l.b16 %v600
    %v1217 = vunpack.c.l.b16 %v601
    %v1218 = vunpack.c.l.b16 %v602
    %v1219 = vunpack.c.l.b16 %v603
    %v1220 = vunpack.c.l.b16 %v604
    %v1221 = vunpack.c.l.b16 %v605
    %v1222 = vpack.c.b16 %v1207, %v1206
    %v1223 = vpack.c.b16 %v1209, %v1208
    %v1224 = vpack.c.b16 %v1211, %v1210
    %v1225 = vpack.c.b16 %v1213, %v1212
    %v1226 = vpack.c.b16 %v1215, %v1214
    %v1227 = vpack.c.b16 %v1217, %v1216
    %v1228 = vpack.c.b16 %v1219, %v1218
    %v1229 = vpack.c.b16 %v1221, %v1220
    %1230 = vrot.lane.b32.xlu0 %v1222, 28
    %v1231 = vpop.permute.xlu0 %1230
    %1232 = vrot.lane.b32.xlu0 %v1223, 28
    %v1233 = vpop.permute.xlu0 %1232
    %1234 = vrot.lane.b32.xlu0 %v1224, 28
    %v1235 = vpop.permute.xlu0 %1234
    %1236 = vrot.lane.b32.xlu0 %v1225, 28
    %v1237 = vpop.permute.xlu0 %1236
    %1238 = vrot.lane.b32.xlu0 %v1226, 28
    %v1239 = vpop.permute.xlu0 %1238
    %1240 = vrot.lane.b32.xlu0 %v1227, 28
    %v1241 = vpop.permute.xlu0 %1240
    %1242 = vrot.lane.b32.xlu0 %v1228, 28
    %v1243 = vpop.permute.xlu0 %1242
    %1244 = vrot.lane.b32.xlu0 %v1229, 28
    %v1245 = vpop.permute.xlu0 %1244
    %v1246 = vunpack.c.l.b16 %v635
    %v1247 = vunpack.c.l.b16 %v649
    %v1248 = vunpack.c.l.b16 %v663
    %v1249 = vunpack.c.l.b16 %v677
    %v1250 = vunpack.c.l.b16 %v691
    %v1251 = vunpack.c.l.b16 %v705
    %v1252 = vunpack.c.l.b16 %v719
    %v1253 = vunpack.c.l.b16 %v733
    %v1254 = vunpack.c.l.b16 %v747
    %v1255 = vunpack.c.l.b16 %v761
    %v1256 = vunpack.c.l.b16 %v775
    %v1257 = vunpack.c.l.b16 %v789
    %v1258 = vunpack.c.l.b16 %v803
    %v1259 = vunpack.c.l.b16 %v817
    %v1260 = vunpack.c.l.b16 %v831
    %v1261 = vunpack.c.l.b16 %v845
    %v1262 = vpack.c.b16 %v1247, %v1246
    %v1263 = vpack.c.b16 %v1249, %v1248
    %v1264 = vpack.c.b16 %v1251, %v1250
    %v1265 = vpack.c.b16 %v1253, %v1252
    %v1266 = vpack.c.b16 %v1255, %v1254
    %v1267 = vpack.c.b16 %v1257, %v1256
    %v1268 = vpack.c.b16 %v1259, %v1258
    %v1269 = vpack.c.b16 %v1261, %v1260
    %1270 = vrot.lane.b32.xlu0 %v1262, 32
    %v1271 = vpop.permute.xlu0 %1270
    %1272 = vrot.lane.b32.xlu0 %v1263, 32
    %v1273 = vpop.permute.xlu0 %1272
    %1274 = vrot.lane.b32.xlu0 %v1264, 32
    %v1275 = vpop.permute.xlu0 %1274
    %1276 = vrot.lane.b32.xlu0 %v1265, 32
    %v1277 = vpop.permute.xlu0 %1276
    %1278 = vrot.lane.b32.xlu0 %v1266, 32
    %v1279 = vpop.permute.xlu0 %1278
    %1280 = vrot.lane.b32.xlu0 %v1267, 32
    %v1281 = vpop.permute.xlu0 %1280
    %1282 = vrot.lane.b32.xlu0 %v1268, 32
    %v1283 = vpop.permute.xlu0 %1282
    %1284 = vrot.lane.b32.xlu0 %v1269, 32
    %v1285 = vpop.permute.xlu0 %1284
    %vm1286 = vcmask 31744
    %v1289 = vsel %vm1286, %v878, %v927
    %v1292 = vsel %vm1286, %v879, %v929
    %v1295 = vsel %vm1286, %v880, %v931
    %v1298 = vsel %vm1286, %v881, %v933
    %v1301 = vsel %vm1286, %v882, %v935
    %v1304 = vsel %vm1286, %v883, %v937
    %v1307 = vsel %vm1286, %v884, %v939
    %v1310 = vsel %vm1286, %v885, %v941
    %vm1311 = vcmask 64512
    %v1313 = vsel %vm1311, %v1289, %v967
    %v1315 = vsel %vm1311, %v1292, %v969
    %v1317 = vsel %vm1311, %v1295, %v971
    %v1319 = vsel %vm1311, %v1298, %v973
    %v1321 = vsel %vm1311, %v1301, %v975
    %v1323 = vsel %vm1311, %v1304, %v977
    %v1325 = vsel %vm1311, %v1307, %v979
    %v1327 = vsel %vm1311, %v1310, %v981
    %vm1328 = vcmask 97280
    %v1330 = vsel %vm1328, %v1313, %v1023
    %v1332 = vsel %vm1328, %v1315, %v1025
    %v1334 = vsel %vm1328, %v1317, %v1027
    %v1336 = vsel %vm1328, %v1319, %v1029
    %v1338 = vsel %vm1328, %v1321, %v1031
    %v1340 = vsel %vm1328, %v1323, %v1033
    %v1342 = vsel %vm1328, %v1325, %v1035
    %v1344 = vsel %vm1328, %v1327, %v1037
    %vm1345 = vcmask 130048
    %v1347 = vsel %vm1345, %v1330, %v1079
    %v1349 = vsel %vm1345, %v1332, %v1081
    %v1351 = vsel %vm1345, %v1334, %v1083
    %v1353 = vsel %vm1345, %v1336, %v1085
    %v1355 = vsel %vm1345, %v1338, %v1087
    %v1357 = vsel %vm1345, %v1340, %v1089
    %v1359 = vsel %vm1345, %v1342, %v1091
    %v1361 = vsel %vm1345, %v1344, %v1093
    %vm1362 = vcmask 162816
    %v1364 = vsel %vm1362, %v1347, %v1119
    %v1366 = vsel %vm1362, %v1349, %v1121
    %v1368 = vsel %vm1362, %v1351, %v1123
    %v1370 = vsel %vm1362, %v1353, %v1125
    %v1372 = vsel %vm1362, %v1355, %v1127
    %v1374 = vsel %vm1362, %v1357, %v1129
    %v1376 = vsel %vm1362, %v1359, %v1131
    %v1378 = vsel %vm1362, %v1361, %v1133
    %vm1379 = vcmask 195584
    %v1381 = vsel %vm1379, %v1364, %v1175
    %v1383 = vsel %vm1379, %v1366, %v1177
    %v1385 = vsel %vm1379, %v1368, %v1179
    %v1387 = vsel %vm1379, %v1370, %v1181
    %v1389 = vsel %vm1379, %v1372, %v1183
    %v1391 = vsel %vm1379, %v1374, %v1185
    %v1393 = vsel %vm1379, %v1376, %v1187
    %v1395 = vsel %vm1379, %v1378, %v1189
    %vm1396 = vcmask 228352
    %v1398 = vsel %vm1396, %v1381, %v1231
    %v1400 = vsel %vm1396, %v1383, %v1233
    %v1402 = vsel %vm1396, %v1385, %v1235
    %v1404 = vsel %vm1396, %v1387, %v1237
    %v1406 = vsel %vm1396, %v1389, %v1239
    %v1408 = vsel %vm1396, %v1391, %v1241
    %v1410 = vsel %vm1396, %v1393, %v1243
    %v1412 = vsel %vm1396, %v1395, %v1245
    %vm1413 = vcmask 261120
    %v1415 = vsel %vm1413, %v1398, %v1271
    %v1417 = vsel %vm1413, %v1400, %v1273
    %v1419 = vsel %vm1413, %v1402, %v1275
    %v1421 = vsel %vm1413, %v1404, %v1277
    %v1423 = vsel %vm1413, %v1406, %v1279
    %v1425 = vsel %vm1413, %v1408, %v1281
    %v1427 = vsel %vm1413, %v1410, %v1283
    %v1429 = vsel %vm1413, %v1412, %v1285
    %v1430 = vld [vmem:[%s1] sm:$0xf]
    %v1431 = vld [vmem:[%s1 + $0x4] sm:$0xf]
    %v1432 = vld [vmem:[%s1 + $0x8] sm:$0xf]
    %v1433 = vld [vmem:[%s1 + $0xc] sm:$0xf]
    %v1434 = vld [vmem:[%s1 + $0x10] sm:$0x3]
    %v1435 = vld [vmem:[%s2] sm:$0x1]
    %v1437 = vlaneseq
    %v1438 = vshrl.u32 %v1437, 7
    %v1439 = vsub.s32 0, %v1438
    %v1440 = vrot.slane %v1435, %v1439
    %v1447 = vunpack.c.l.b16 %v1430
    %v1448 = vunpack.c.l.b16 %v1431
    %v1449 = vunpack.c.l.b16 %v1432
    %v1450 = vunpack.c.l.b16 %v1433
    %v1451 = vunpack.c.l.b16 %v1434
    %v1452 = vpack.c.b16 %v1448, %v1447
    %v1453 = vpack.c.b16 %v1450, %v1449
    %v1454 = vpack.c.b16 %v1451, %v1451
    %vm1457 = vcmask 293888
    %v1458 = vsel %vm1457, %v1415, 0
    %v1460 = vsel %vm1457, %v1417, 0
    %v1462 = vsel %vm1457, %v1419, 0
    %v1464 = vsel %vm1457, %v1421, 0
    %v1466 = vsel %vm1457, %v1423, 0
    %v1468 = vsel %vm1457, %v1425, 0
    %v1470 = vsel %vm1457, %v1427, 0
    %v1472 = vsel %vm1457, %v1429, 0
    %vm1474 = vcmask 1041408
    %v1476 = vsel %vm1474, %v1454, 0
    %1478 = vmatprep.subr.bf16.mxu0 0
    %1479 = vmatpush1.bf16.msra.mxu0 0
    %1480 = vmatprep.subr.bf16.mxu0 0
    %1481 = vmatpush1.bf16.msra.mxu0 0
    %1482 = vmatprep.subr.bf16.mxu0 0
    %1483 = vmatpush1.bf16.msra.mxu0 0
    %1484 = vmatprep.subr.bf16.mxu0 0
    %1485 = vmatpush1.bf16.msra.mxu0 0
    %1486 = vmatprep.subr.bf16.mxu0 0
    %1487 = vmatpush1.bf16.msra.mxu0 0
    %1488 = vmatprep.subr.bf16.mxu0 0
    %1489 = vmatpush1.bf16.msra.mxu0 %v1476
    %1490 = vmatprep.subr.bf16.mxu0 0
    %1491 = vmatpush1.bf16.msra.mxu0 %v1453
    %1492 = vmatprep.subr.bf16.mxu0 0
    %1493 = vmatpush1.bf16.msra.mxu0 %v1452
    %1494 = vmatprep.subr.bf16.mxu0 0
    %1495 = vmatpush2.bf16.msra.mxu0 0
    %1496 = vmatprep.subr.bf16.mxu0 0
    %1497 = vmatpush2.bf16.msra.mxu0 0
    %1498 = vmatprep.subr.bf16.mxu0 0
    %1499 = vmatpush2.bf16.msra.mxu0 0
    %1500 = vmatprep.subr.bf16.mxu0 0
    %1501 = vmatpush2.bf16.msra.mxu0 0
    %1502 = vmatprep.subr.bf16.mxu0 0
    %1503 = vmatpush2.bf16.msra.mxu0 0
    %1504 = vmatprep.subr.bf16.mxu0 0
    %1505 = vmatpush2.bf16.msra.mxu0 0
    %1506 = vmatprep.subr.bf16.mxu0 0
    %1507 = vmatpush2.bf16.msra.mxu0 0
    %1508 = vmatprep.subr.bf16.mxu0 0
    %1509 = vmatpush2.bf16.msra.mxu0 0
    %1510 = vmatprep.mubr.bf16.mxu0 0
    %1511 = vmatmul.mubr.bf16.gmra.mxu0 %v1458
    %v1512 = vpop.f32.mrf.mxu0
    %v1513 = vadd.f32 %v1440, %v1512
    %v1514 = vpop.f32.mrf.mxu0
    %v1515 = vpop.f32.mrf.mxu0
    %v1516 = vadd.f32 %v1440, %v1515
    %v1517 = vpop.f32.mrf.mxu0
    %1518 = vmatprep.mubr.bf16.mxu0 0
    %1519 = vmatmul.mubr.bf16.gmra.mxu0 %v1460
    %v1520 = vpop.f32.mrf.mxu0
    %v1521 = vadd.f32 %v1440, %v1520
    %v1522 = vpop.f32.mrf.mxu0
    %v1523 = vpop.f32.mrf.mxu0
    %v1524 = vadd.f32 %v1440, %v1523
    %v1525 = vpop.f32.mrf.mxu0
    %1526 = vmatprep.mubr.bf16.mxu0 0
    %1527 = vmatmul.mubr.bf16.gmra.mxu0 %v1462
    %v1528 = vpop.f32.mrf.mxu0
    %v1529 = vadd.f32 %v1440, %v1528
    %v1530 = vpop.f32.mrf.mxu0
    %v1531 = vpop.f32.mrf.mxu0
    %v1532 = vadd.f32 %v1440, %v1531
    %v1533 = vpop.f32.mrf.mxu0
    %1534 = vmatprep.mubr.bf16.mxu0 0
    %1535 = vmatmul.mubr.bf16.gmra.mxu0 %v1464
    %v1536 = vpop.f32.mrf.mxu0
    %v1537 = vadd.f32 %v1440, %v1536
    %v1538 = vpop.f32.mrf.mxu0
    %v1539 = vpop.f32.mrf.mxu0
    %v1540 = vadd.f32 %v1440, %v1539
    %v1541 = vpop.f32.mrf.mxu0
    %1542 = vmatprep.mubr.bf16.mxu0 0
    %1543 = vmatmul.mubr.bf16.gmra.mxu0 %v1466
    %v1544 = vpop.f32.mrf.mxu0
    %v1545 = vadd.f32 %v1440, %v1544
    %v1546 = vpop.f32.mrf.mxu0
    %v1547 = vpop.f32.mrf.mxu0
    %v1548 = vadd.f32 %v1440, %v1547
    %v1549 = vpop.f32.mrf.mxu0
    %1550 = vmatprep.mubr.bf16.mxu0 0
    %1551 = vmatmul.mubr.bf16.gmra.mxu0 %v1468
    %v1552 = vpop.f32.mrf.mxu0
    %v1553 = vadd.f32 %v1440, %v1552
    %v1554 = vpop.f32.mrf.mxu0
    %v1555 = vpop.f32.mrf.mxu0
    %v1556 = vadd.f32 %v1440, %v1555
    %v1557 = vpop.f32.mrf.mxu0
    %1558 = vmatprep.mubr.bf16.mxu0 0
    %1559 = vmatmul.mubr.bf16.gmra.mxu0 %v1470
    %v1560 = vpop.f32.mrf.mxu0
    %v1561 = vadd.f32 %v1440, %v1560
    %v1562 = vpop.f32.mrf.mxu0
    %v1563 = vpop.f32.mrf.mxu0
    %v1564 = vadd.f32 %v1440, %v1563
    %v1565 = vpop.f32.mrf.mxu0
    %1566 = vmatprep.mubr.bf16.mxu0 0
    %1567 = vmatmul.mubr.bf16.gmra.mxu0 %v1472
    %v1568 = vpop.f32.mrf.mxu0
    %v1569 = vadd.f32 %v1440, %v1568
    %v1570 = vpop.f32.mrf.mxu0
    %v1571 = vpop.f32.mrf.mxu0
    %v1572 = vadd.f32 %v1440, %v1571
    %v1573 = vpop.f32.mrf.mxu0
    %1574 = vdwg.mxu0
    %v1575 = vmax.f32 %v1513, 0.0
    %v1576 = vmax.f32 %v1516, 0.0
    %v1577 = vmax.f32 %v1521, 0.0
    %v1578 = vmax.f32 %v1524, 0.0
    %v1579 = vmax.f32 %v1529, 0.0
    %v1580 = vmax.f32 %v1532, 0.0
    %v1581 = vmax.f32 %v1537, 0.0
    %v1582 = vmax.f32 %v1540, 0.0
    %v1583 = vmax.f32 %v1545, 0.0
    %v1584 = vmax.f32 %v1548, 0.0
    %v1585 = vmax.f32 %v1553, 0.0
    %v1586 = vmax.f32 %v1556, 0.0
    %v1587 = vmax.f32 %v1561, 0.0
    %v1588 = vmax.f32 %v1564, 0.0
    %v1589 = vmax.f32 %v1569, 0.0
    %v1590 = vmax.f32 %v1572, 0.0
    %v1591 = vunpack.c.l.bf16 %v316
    %v1592 = vunpack.c.l.bf16 %v317
    %v1593 = vunpack.c.l.bf16 %v318
    %v1594 = vunpack.c.l.bf16 %v319
    %v1595 = vunpack.c.l.bf16 %v320
    %v1596 = vunpack.c.l.bf16 %v321
    %v1597 = vunpack.c.l.bf16 %v322
    %v1598 = vunpack.c.l.bf16 %v323
    %v1599 = vunpack.c.l.bf16 %v324
    %v1600 = vunpack.c.l.bf16 %v325
    %v1601 = vunpack.c.l.bf16 %v326
    %v1602 = vunpack.c.l.bf16 %v327
    %v1603 = vunpack.c.l.bf16 %v328
    %v1604 = vunpack.c.l.bf16 %v329
    %v1605 = vunpack.c.l.bf16 %v330
    %v1606 = vunpack.c.l.bf16 %v331
    %1607 = vst [vmem:[#allocation2] sm:$0xf] 0
    %1608 = vst [vmem:[#allocation2 + $0x4] sm:$0xf] 0
    %1609 = vst [vmem:[#allocation2 + $0x50] sm:$0xf] 0
    %1610 = vst [vmem:[#allocation2 + $0x54] sm:$0xf] 0
    %s1611 = scalar_lea.vmem [#allocation2], 72
    %1612 = vst [vmem:[%s1611] sm:$0xf] 0
    %1613 = vst [vmem:[%s1611 + $0x4] sm:$0xf] 0
    %1614 = vst [vmem:[%s1611 + $0x50] sm:$0xf] 0
    %1615 = vst [vmem:[%s1611 + $0x54] sm:$0xf] 0
    %s1616 = scalar_lea.vmem [#allocation2], 8
    %vm1617 = vcmask 1040384
    %vm1618 = vsmask.f32 256
    %vm1619 = vmand %vm1617, %vm1618
    %v1620 = vld [vmem:[%s1616] sm:$0x1]
    %v1621 = vsel %vm1619, 0, %v1620
    %1622 = vst [vmem:[%s1616] sm:$0x1] %v1621
    %v1623 = vld [vmem:[%s1616 + $0x8] sm:$0x1]
    %v1624 = vsel %vm1619, 0, %v1623
    %1625 = vst [vmem:[%s1616 + $0x8] sm:$0x1] %v1624
    %v1626 = vld [vmem:[%s1616 + $0x10] sm:$0x1]
    %v1627 = vsel %vm1619, 0, %v1626
    %1628 = vst [vmem:[%s1616 + $0x10] sm:$0x1] %v1627
    %v1629 = vld [vmem:[%s1616 + $0x18] sm:$0x1]
    %v1630 = vsel %vm1619, 0, %v1629
    %1631 = vst [vmem:[%s1616 + $0x18] sm:$0x1] %v1630
    %v1632 = vld [vmem:[%s1616 + $0x20] sm:$0x1]
    %v1633 = vsel %vm1619, 0, %v1632
    %1634 = vst [vmem:[%s1616 + $0x20] sm:$0x1] %v1633
    %v1635 = vld [vmem:[%s1616 + $0x28] sm:$0x1]
    %v1636 = vsel %vm1619, 0, %v1635
    %1637 = vst [vmem:[%s1616 + $0x28] sm:$0x1] %v1636
    %v1638 = vld [vmem:[%s1616 + $0x30] sm:$0x1]
    %v1639 = vsel %vm1619, 0, %v1638
    %1640 = vst [vmem:[%s1616 + $0x30] sm:$0x1] %v1639
    %v1641 = vld [vmem:[%s1616 + $0x38] sm:$0x1]
    %v1642 = vsel %vm1619, 0, %v1641
    %1643 = vst [vmem:[%s1616 + $0x38] sm:$0x1] %v1642
    %v1644 = vld [vmem:[%s1616 + $0x50] sm:$0x1]
    %v1645 = vsel %vm1619, 0, %v1644
    %1646 = vst [vmem:[%s1616 + $0x50] sm:$0x1] %v1645
    %v1647 = vld [vmem:[%s1616 + $0x58] sm:$0x1]
    %v1648 = vsel %vm1619, 0, %v1647
    %1649 = vst [vmem:[%s1616 + $0x58] sm:$0x1] %v1648
    %v1650 = vld [vmem:[%s1616 + $0x60] sm:$0x1]
    %v1651 = vsel %vm1619, 0, %v1650
    %1652 = vst [vmem:[%s1616 + $0x60] sm:$0x1] %v1651
    %v1653 = vld [vmem:[%s1616 + $0x68] sm:$0x1]
    %v1654 = vsel %vm1619, 0, %v1653
    %1655 = vst [vmem:[%s1616 + $0x68] sm:$0x1] %v1654
    %v1656 = vld [vmem:[%s1616 + $0x70] sm:$0x1]
    %v1657 = vsel %vm1619, 0, %v1656
    %1658 = vst [vmem:[%s1616 + $0x70] sm:$0x1] %v1657
    %v1659 = vld [vmem:[%s1616 + $0x78] sm:$0x1]
    %v1660 = vsel %vm1619, 0, %v1659
    %1661 = vst [vmem:[%s1616 + $0x78] sm:$0x1] %v1660
    %v1662 = vld [vmem:[%s1616 + $0x80] sm:$0x1]
    %v1663 = vsel %vm1619, 0, %v1662
    %1664 = vst [vmem:[%s1616 + $0x80] sm:$0x1] %v1663
    %v1665 = vld [vmem:[%s1616 + $0x88] sm:$0x1]
    %v1666 = vsel %vm1619, 0, %v1665
    %1667 = vst [vmem:[%s1616 + $0x88] sm:$0x1] %v1666
    %vm1668 = vcmask 1043456
    %vm1669 = vsmask.f32 7938
    %vm1670 = vmand %vm1668, %vm1669
    %v1671 = vld [vmem:[%s1616 + $0x4] sm:$0xf]
    %v1672 = vsel %vm1670, 0, %v1671
    %1673 = vst [vmem:[%s1616 + $0x4] sm:$0xf] %v1672
    %v1674 = vld [vmem:[%s1616 + $0xc] sm:$0xf]
    %v1675 = vsel %vm1670, 0, %v1674
    %1676 = vst [vmem:[%s1616 + $0xc] sm:$0xf] %v1675
    %v1677 = vld [vmem:[%s1616 + $0x14] sm:$0xf]
    %v1678 = vsel %vm1670, 0, %v1677
    %1679 = vst [vmem:[%s1616 + $0x14] sm:$0xf] %v1678
    %v1680 = vld [vmem:[%s1616 + $0x1c] sm:$0xf]
    %v1681 = vsel %vm1670, 0, %v1680
    %1682 = vst [vmem:[%s1616 + $0x1c] sm:$0xf] %v1681
    %v1683 = vld [vmem:[%s1616 + $0x24] sm:$0xf]
    %v1684 = vsel %vm1670, 0, %v1683
    %1685 = vst [vmem:[%s1616 + $0x24] sm:$0xf] %v1684
    %v1686 = vld [vmem:[%s1616 + $0x2c] sm:$0xf]
    %v1687 = vsel %vm1670, 0, %v1686
    %1688 = vst [vmem:[%s1616 + $0x2c] sm:$0xf] %v1687
    %v1689 = vld [vmem:[%s1616 + $0x34] sm:$0xf]
    %v1690 = vsel %vm1670, 0, %v1689
    %1691 = vst [vmem:[%s1616 + $0x34] sm:$0xf] %v1690
    %v1692 = vld [vmem:[%s1616 + $0x3c] sm:$0xf]
    %v1693 = vsel %vm1670, 0, %v1692
    %1694 = vst [vmem:[%s1616 + $0x3c] sm:$0xf] %v1693
    %v1695 = vld [vmem:[%s1616 + $0x54] sm:$0xf]
    %v1696 = vsel %vm1670, 0, %v1695
    %1697 = vst [vmem:[%s1616 + $0x54] sm:$0xf] %v1696
    %v1698 = vld [vmem:[%s1616 + $0x5c] sm:$0xf]
    %v1699 = vsel %vm1670, 0, %v1698
    %1700 = vst [vmem:[%s1616 + $0x5c] sm:$0xf] %v1699
    %v1701 = vld [vmem:[%s1616 + $0x64] sm:$0xf]
    %v1702 = vsel %vm1670, 0, %v1701
    %1703 = vst [vmem:[%s1616 + $0x64] sm:$0xf] %v1702
    %v1704 = vld [vmem:[%s1616 + $0x6c] sm:$0xf]
    %v1705 = vsel %vm1670, 0, %v1704
    %1706 = vst [vmem:[%s1616 + $0x6c] sm:$0xf] %v1705
    %v1707 = vld [vmem:[%s1616 + $0x74] sm:$0xf]
    %v1708 = vsel %vm1670, 0, %v1707
    %1709 = vst [vmem:[%s1616 + $0x74] sm:$0xf] %v1708
    %v1710 = vld [vmem:[%s1616 + $0x7c] sm:$0xf]
    %v1711 = vsel %vm1670, 0, %v1710
    %1712 = vst [vmem:[%s1616 + $0x7c] sm:$0xf] %v1711
    %v1713 = vld [vmem:[%s1616 + $0x84] sm:$0xf]
    %v1714 = vsel %vm1670, 0, %v1713
    %1715 = vst [vmem:[%s1616 + $0x84] sm:$0xf] %v1714
    %v1716 = vld [vmem:[%s1616 + $0x8c] sm:$0xf]
    %v1717 = vsel %vm1670, 0, %v1716
    %1718 = vst [vmem:[%s1616 + $0x8c] sm:$0xf] %v1717
    %v1719 = vpack.c.bf16 %v1576, %v1575
    %v1720 = vpack.c.bf16 %v1578, %v1577
    %v1721 = vpack.c.bf16 %v1580, %v1579
    %v1722 = vpack.c.bf16 %v1582, %v1581
    %v1723 = vpack.c.bf16 %v1584, %v1583
    %v1724 = vpack.c.bf16 %v1586, %v1585
    %v1725 = vpack.c.bf16 %v1588, %v1587
    %v1726 = vpack.c.bf16 %v1590, %v1589
    %v1735 = vunpack.c.l.b16 %v1719
    %v1736 = vunpack.c.h.b16 %v1719
    %v1737 = vunpack.c.l.b16 %v1720
    %v1738 = vunpack.c.h.b16 %v1720
    %v1739 = vunpack.c.l.b16 %v1721
    %v1740 = vunpack.c.h.b16 %v1721
    %v1741 = vunpack.c.l.b16 %v1722
    %v1742 = vunpack.c.h.b16 %v1722
    %v1743 = vunpack.c.l.b16 %v1723
    %v1744 = vunpack.c.h.b16 %v1723
    %v1745 = vunpack.c.l.b16 %v1724
    %v1746 = vunpack.c.h.b16 %v1724
    %v1747 = vunpack.c.l.b16 %v1725
    %v1748 = vunpack.c.h.b16 %v1725
    %v1749 = vunpack.c.l.b16 %v1726
    %v1750 = vunpack.c.h.b16 %v1726
    %v1751 = vpack.c.b16 %v1735, %v1735
    %v1752 = vpack.c.b16 %v1736, %v1736
    %v1753 = vpack.c.b16 %v1737, %v1737
    %v1754 = vpack.c.b16 %v1738, %v1738
    %v1755 = vpack.c.b16 %v1739, %v1739
    %v1756 = vpack.c.b16 %v1740, %v1740
    %v1757 = vpack.c.b16 %v1741, %v1741
    %v1758 = vpack.c.b16 %v1742, %v1742
    %v1759 = vpack.c.b16 %v1743, %v1743
    %v1760 = vpack.c.b16 %v1744, %v1744
    %v1761 = vpack.c.b16 %v1745, %v1745
    %v1762 = vpack.c.b16 %v1746, %v1746
    %v1763 = vpack.c.b16 %v1747, %v1747
    %v1764 = vpack.c.b16 %v1748, %v1748
    %v1765 = vpack.c.b16 %v1749, %v1749
    %v1766 = vpack.c.b16 %v1750, %v1750
    %v1768 = vshrl.u32 %v1751, 16
    %v1770 = vrot.slane %v1768, 7
    %v1771 = vshll.u32 %v1751, 16
    %v1773 = vor.u32 %v1770, %v1771
    %v1774 = vrot.slane %v1770, 4
    %v1776 = vshrl.u32 %v1752, 16
    %v1778 = vrot.slane %v1776, 7
    %v1779 = vshll.u32 %v1752, 16
    %v1781 = vor.u32 %v1778, %v1779
    %v1782 = vrot.slane %v1778, 4
    %v1784 = vshrl.u32 %v1753, 16
    %v1786 = vrot.slane %v1784, 7
    %v1787 = vshll.u32 %v1753, 16
    %v1789 = vor.u32 %v1786, %v1787
    %v1790 = vrot.slane %v1786, 4
    %v1792 = vshrl.u32 %v1754, 16
    %v1794 = vrot.slane %v1792, 7
    %v1795 = vshll.u32 %v1754, 16
    %v1797 = vor.u32 %v1794, %v1795
    %v1798 = vrot.slane %v1794, 4
    %v1800 = vshrl.u32 %v1755, 16
    %v1802 = vrot.slane %v1800, 7
    %v1803 = vshll.u32 %v1755, 16
    %v1805 = vor.u32 %v1802, %v1803
    %v1806 = vrot.slane %v1802, 4
    %v1808 = vshrl.u32 %v1756, 16
    %v1810 = vrot.slane %v1808, 7
    %v1811 = vshll.u32 %v1756, 16
    %v1813 = vor.u32 %v1810, %v1811
    %v1814 = vrot.slane %v1810, 4
    %v1816 = vshrl.u32 %v1757, 16
    %v1818 = vrot.slane %v1816, 7
    %v1819 = vshll.u32 %v1757, 16
    %v1821 = vor.u32 %v1818, %v1819
    %v1822 = vrot.slane %v1818, 4
    %v1824 = vshrl.u32 %v1758, 16
    %v1826 = vrot.slane %v1824, 7
    %v1827 = vshll.u32 %v1758, 16
    %v1829 = vor.u32 %v1826, %v1827
    %v1830 = vrot.slane %v1826, 4
    %v1832 = vshrl.u32 %v1759, 16
    %v1834 = vrot.slane %v1832, 7
    %v1835 = vshll.u32 %v1759, 16
    %v1837 = vor.u32 %v1834, %v1835
    %v1838 = vrot.slane %v1834, 4
    %v1840 = vshrl.u32 %v1760, 16
    %v1842 = vrot.slane %v1840, 7
    %v1843 = vshll.u32 %v1760, 16
    %v1845 = vor.u32 %v1842, %v1843
    %v1846 = vrot.slane %v1842, 4
    %v1848 = vshrl.u32 %v1761, 16
    %v1850 = vrot.slane %v1848, 7
    %v1851 = vshll.u32 %v1761, 16
    %v1853 = vor.u32 %v1850, %v1851
    %v1854 = vrot.slane %v1850, 4
    %v1856 = vshrl.u32 %v1762, 16
    %v1858 = vrot.slane %v1856, 7
    %v1859 = vshll.u32 %v1762, 16
    %v1861 = vor.u32 %v1858, %v1859
    %v1862 = vrot.slane %v1858, 4
    %v1864 = vshrl.u32 %v1763, 16
    %v1866 = vrot.slane %v1864, 7
    %v1867 = vshll.u32 %v1763, 16
    %v1869 = vor.u32 %v1866, %v1867
    %v1870 = vrot.slane %v1866, 4
    %v1872 = vshrl.u32 %v1764, 16
    %v1874 = vrot.slane %v1872, 7
    %v1875 = vshll.u32 %v1764, 16
    %v1877 = vor.u32 %v1874, %v1875
    %v1878 = vrot.slane %v1874, 4
    %v1880 = vshrl.u32 %v1765, 16
    %v1882 = vrot.slane %v1880, 7
    %v1883 = vshll.u32 %v1765, 16
    %v1885 = vor.u32 %v1882, %v1883
    %v1886 = vrot.slane %v1882, 4
    %v1888 = vshrl.u32 %v1766, 16
    %v1890 = vrot.slane %v1888, 7
    %v1891 = vshll.u32 %v1766, 16
    %v1893 = vor.u32 %v1890, %v1891
    %v1894 = vrot.slane %v1890, 4
    %v1927 = vld [vmem:[%s1616] sm:$0xf]
    %v1928 = vsel %vm1670, %v1773, %v1927
    %1929 = vst [vmem:[%s1616] sm:$0xf] %v1928
    %v1930 = vld [vmem:[%s1616 + $0x4] sm:$0x1]
    %v1931 = vsel %vm1619, %v1774, %v1930
    %1932 = vst [vmem:[%s1616 + $0x4] sm:$0x1] %v1931
    %v1933 = vld [vmem:[%s1616 + $0x8] sm:$0xf]
    %v1934 = vsel %vm1670, %v1781, %v1933
    %1935 = vst [vmem:[%s1616 + $0x8] sm:$0xf] %v1934
    %v1936 = vld [vmem:[%s1616 + $0xc] sm:$0x1]
    %v1937 = vsel %vm1619, %v1782, %v1936
    %1938 = vst [vmem:[%s1616 + $0xc] sm:$0x1] %v1937
    %v1939 = vld [vmem:[%s1616 + $0x10] sm:$0xf]
    %v1940 = vsel %vm1670, %v1789, %v1939
    %1941 = vst [vmem:[%s1616 + $0x10] sm:$0xf] %v1940
    %v1942 = vld [vmem:[%s1616 + $0x14] sm:$0x1]
    %v1943 = vsel %vm1619, %v1790, %v1942
    %1944 = vst [vmem:[%s1616 + $0x14] sm:$0x1] %v1943
    %v1945 = vld [vmem:[%s1616 + $0x18] sm:$0xf]
    %v1946 = vsel %vm1670, %v1797, %v1945
    %1947 = vst [vmem:[%s1616 + $0x18] sm:$0xf] %v1946
    %v1948 = vld [vmem:[%s1616 + $0x1c] sm:$0x1]
    %v1949 = vsel %vm1619, %v1798, %v1948
    %1950 = vst [vmem:[%s1616 + $0x1c] sm:$0x1] %v1949
    %v1951 = vld [vmem:[%s1616 + $0x20] sm:$0xf]
    %v1952 = vsel %vm1670, %v1805, %v1951
    %1953 = vst [vmem:[%s1616 + $0x20] sm:$0xf] %v1952
    %v1954 = vld [vmem:[%s1616 + $0x24] sm:$0x1]
    %v1955 = vsel %vm1619, %v1806, %v1954
    %1956 = vst [vmem:[%s1616 + $0x24] sm:$0x1] %v1955
    %v1957 = vld [vmem:[%s1616 + $0x28] sm:$0xf]
    %v1958 = vsel %vm1670, %v1813, %v1957
    %1959 = vst [vmem:[%s1616 + $0x28] sm:$0xf] %v1958
    %v1960 = vld [vmem:[%s1616 + $0x2c] sm:$0x1]
    %v1961 = vsel %vm1619, %v1814, %v1960
    %1962 = vst [vmem:[%s1616 + $0x2c] sm:$0x1] %v1961
    %v1963 = vld [vmem:[%s1616 + $0x30] sm:$0xf]
    %v1964 = vsel %vm1670, %v1821, %v1963
    %1965 = vst [vmem:[%s1616 + $0x30] sm:$0xf] %v1964
    %v1966 = vld [vmem:[%s1616 + $0x34] sm:$0x1]
    %v1967 = vsel %vm1619, %v1822, %v1966
    %1968 = vst [vmem:[%s1616 + $0x34] sm:$0x1] %v1967
    %v1969 = vld [vmem:[%s1616 + $0x38] sm:$0xf]
    %v1970 = vsel %vm1670, %v1829, %v1969
    %1971 = vst [vmem:[%s1616 + $0x38] sm:$0xf] %v1970
    %v1972 = vld [vmem:[%s1616 + $0x3c] sm:$0x1]
    %v1973 = vsel %vm1619, %v1830, %v1972
    %1974 = vst [vmem:[%s1616 + $0x3c] sm:$0x1] %v1973
    %v1975 = vld [vmem:[%s1616 + $0x50] sm:$0xf]
    %v1976 = vsel %vm1670, %v1837, %v1975
    %1977 = vst [vmem:[%s1616 + $0x50] sm:$0xf] %v1976
    %v1978 = vld [vmem:[%s1616 + $0x54] sm:$0x1]
    %v1979 = vsel %vm1619, %v1838, %v1978
    %1980 = vst [vmem:[%s1616 + $0x54] sm:$0x1] %v1979
    %v1981 = vld [vmem:[%s1616 + $0x58] sm:$0xf]
    %v1982 = vsel %vm1670, %v1845, %v1981
    %1983 = vst [vmem:[%s1616 + $0x58] sm:$0xf] %v1982
    %v1984 = vld [vmem:[%s1616 + $0x5c] sm:$0x1]
    %v1985 = vsel %vm1619, %v1846, %v1984
    %1986 = vst [vmem:[%s1616 + $0x5c] sm:$0x1] %v1985
    %v1987 = vld [vmem:[%s1616 + $0x60] sm:$0xf]
    %v1988 = vsel %vm1670, %v1853, %v1987
    %1989 = vst [vmem:[%s1616 + $0x60] sm:$0xf] %v1988
    %v1990 = vld [vmem:[%s1616 + $0x64] sm:$0x1]
    %v1991 = vsel %vm1619, %v1854, %v1990
    %1992 = vst [vmem:[%s1616 + $0x64] sm:$0x1] %v1991
    %v1993 = vld [vmem:[%s1616 + $0x68] sm:$0xf]
    %v1994 = vsel %vm1670, %v1861, %v1993
    %1995 = vst [vmem:[%s1616 + $0x68] sm:$0xf] %v1994
    %v1996 = vld [vmem:[%s1616 + $0x6c] sm:$0x1]
    %v1997 = vsel %vm1619, %v1862, %v1996
    %1998 = vst [vmem:[%s1616 + $0x6c] sm:$0x1] %v1997
    %v1999 = vld [vmem:[%s1616 + $0x70] sm:$0xf]
    %v2000 = vsel %vm1670, %v1869, %v1999
    %2001 = vst [vmem:[%s1616 + $0x70] sm:$0xf] %v2000
    %v2002 = vld [vmem:[%s1616 + $0x74] sm:$0x1]
    %v2003 = vsel %vm1619, %v1870, %v2002
    %2004 = vst [vmem:[%s1616 + $0x74] sm:$0x1] %v2003
    %v2005 = vld [vmem:[%s1616 + $0x78] sm:$0xf]
    %v2006 = vsel %vm1670, %v1877, %v2005
    %2007 = vst [vmem:[%s1616 + $0x78] sm:$0xf] %v2006
    %v2008 = vld [vmem:[%s1616 + $0x7c] sm:$0x1]
    %v2009 = vsel %vm1619, %v1878, %v2008
    %2010 = vst [vmem:[%s1616 + $0x7c] sm:$0x1] %v2009
    %v2011 = vld [vmem:[%s1616 + $0x80] sm:$0xf]
    %v2012 = vsel %vm1670, %v1885, %v2011
    %2013 = vst [vmem:[%s1616 + $0x80] sm:$0xf] %v2012
    %v2014 = vld [vmem:[%s1616 + $0x84] sm:$0x1]
    %v2015 = vsel %vm1619, %v1886, %v2014
    %2016 = vst [vmem:[%s1616 + $0x84] sm:$0x1] %v2015
    %v2017 = vld [vmem:[%s1616 + $0x88] sm:$0xf]
    %v2018 = vsel %vm1670, %v1893, %v2017
    %2019 = vst [vmem:[%s1616 + $0x88] sm:$0xf] %v2018
    %v2020 = vld [vmem:[%s1616 + $0x8c] sm:$0x1]
    %v2021 = vsel %vm1619, %v1894, %v2020
    %2022 = vst [vmem:[%s1616 + $0x8c] sm:$0x1] %v2021
    %v2023 = vld [vmem:[#allocation2] sm:$0xf]
    %v2024 = vld [vmem:[#allocation2 + $0x8] sm:$0xf]
    %v2025 = vld [vmem:[#allocation2 + $0x10] sm:$0xf]
    %v2026 = vld [vmem:[#allocation2 + $0x18] sm:$0xf]
    %v2027 = vld [vmem:[#allocation2 + $0x20] sm:$0xf]
    %v2028 = vld [vmem:[#allocation2 + $0x28] sm:$0xf]
    %v2029 = vld [vmem:[#allocation2 + $0x30] sm:$0xf]
    %v2030 = vld [vmem:[#allocation2 + $0x38] sm:$0xf]
    %v2031 = vld [vmem:[#allocation2 + $0x50] sm:$0xf]
    %v2032 = vld [vmem:[#allocation2 + $0x58] sm:$0xf]
    %v2033 = vld [vmem:[#allocation2 + $0x60] sm:$0xf]
    %v2034 = vld [vmem:[#allocation2 + $0x68] sm:$0xf]
    %v2035 = vld [vmem:[#allocation2 + $0x70] sm:$0xf]
    %v2036 = vld [vmem:[#allocation2 + $0x78] sm:$0xf]
    %v2037 = vld [vmem:[#allocation2 + $0x80] sm:$0xf]
    %v2038 = vld [vmem:[#allocation2 + $0x88] sm:$0xf]
    %v2039 = vld [vmem:[#allocation2 + $0x4] sm:$0x1]
    %v2040 = vld [vmem:[#allocation2 + $0xc] sm:$0x1]
    %v2041 = vld [vmem:[#allocation2 + $0x14] sm:$0x1]
    %v2042 = vld [vmem:[#allocation2 + $0x1c] sm:$0x1]
    %v2043 = vld [vmem:[#allocation2 + $0x24] sm:$0x1]
    %v2044 = vld [vmem:[#allocation2 + $0x2c] sm:$0x1]
    %v2045 = vld [vmem:[#allocation2 + $0x34] sm:$0x1]
    %v2046 = vld [vmem:[#allocation2 + $0x3c] sm:$0x1]
    %v2047 = vld [vmem:[#allocation2 + $0x54] sm:$0x1]
    %v2048 = vld [vmem:[#allocation2 + $0x5c] sm:$0x1]
    %v2049 = vld [vmem:[#allocation2 + $0x64] sm:$0x1]
    %v2050 = vld [vmem:[#allocation2 + $0x6c] sm:$0x1]
    %v2051 = vld [vmem:[#allocation2 + $0x74] sm:$0x1]
    %v2052 = vld [vmem:[#allocation2 + $0x7c] sm:$0x1]
    %v2053 = vld [vmem:[#allocation2 + $0x84] sm:$0x1]
    %v2054 = vld [vmem:[#allocation2 + $0x8c] sm:$0x1]
    %v2056 = vshrl.u32 %v2023, 16
    %v2058 = vrot.slane %v2056, 4
    %v2059 = vshll.u32 %v2023, 16
    %v2061 = vrot.slane %v2059, 5
    %v2062 = vor.u32 %v2058, %v2061
    %v2063 = vrot.slane %v2062, 4
    %v2065 = vshll.u32 %v2039, 16
    %v2067 = vrot.slane %v2065, 5
    %v2068 = vsel %vm73, %v2063, %v2067
    %v2070 = vshrl.u32 %v2024, 16
    %v2072 = vrot.slane %v2070, 4
    %v2073 = vshll.u32 %v2024, 16
    %v2075 = vrot.slane %v2073, 5
    %v2076 = vor.u32 %v2072, %v2075
    %v2077 = vrot.slane %v2076, 4
    %v2079 = vshll.u32 %v2040, 16
    %v2081 = vrot.slane %v2079, 5
    %v2082 = vsel %vm73, %v2077, %v2081
    %v2084 = vshrl.u32 %v2025, 16
    %v2086 = vrot.slane %v2084, 4
    %v2087 = vshll.u32 %v2025, 16
    %v2089 = vrot.slane %v2087, 5
    %v2090 = vor.u32 %v2086, %v2089
    %v2091 = vrot.slane %v2090, 4
    %v2093 = vshll.u32 %v2041, 16
    %v2095 = vrot.slane %v2093, 5
    %v2096 = vsel %vm73, %v2091, %v2095
    %v2098 = vshrl.u32 %v2026, 16
    %v2100 = vrot.slane %v2098, 4
    %v2101 = vshll.u32 %v2026, 16
    %v2103 = vrot.slane %v2101, 5
    %v2104 = vor.u32 %v2100, %v2103
    %v2105 = vrot.slane %v2104, 4
    %v2107 = vshll.u32 %v2042, 16
    %v2109 = vrot.slane %v2107, 5
    %v2110 = vsel %vm73, %v2105, %v2109
    %v2112 = vshrl.u32 %v2027, 16
    %v2114 = vrot.slane %v2112, 4
    %v2115 = vshll.u32 %v2027, 16
    %v2117 = vrot.slane %v2115, 5
    %v2118 = vor.u32 %v2114, %v2117
    %v2119 = vrot.slane %v2118, 4
    %v2121 = vshll.u32 %v2043, 16
    %v2123 = vrot.slane %v2121, 5
    %v2124 = vsel %vm73, %v2119, %v2123
    %v2126 = vshrl.u32 %v2028, 16
    %v2128 = vrot.slane %v2126, 4
    %v2129 = vshll.u32 %v2028, 16
    %v2131 = vrot.slane %v2129, 5
    %v2132 = vor.u32 %v2128, %v2131
    %v2133 = vrot.slane %v2132, 4
    %v2135 = vshll.u32 %v2044, 16
    %v2137 = vrot.slane %v2135, 5
    %v2138 = vsel %vm73, %v2133, %v2137
    %v2140 = vshrl.u32 %v2029, 16
    %v2142 = vrot.slane %v2140, 4
    %v2143 = vshll.u32 %v2029, 16
    %v2145 = vrot.slane %v2143, 5
    %v2146 = vor.u32 %v2142, %v2145
    %v2147 = vrot.slane %v2146, 4
    %v2149 = vshll.u32 %v2045, 16
    %v2151 = vrot.slane %v2149, 5
    %v2152 = vsel %vm73, %v2147, %v2151
    %v2154 = vshrl.u32 %v2030, 16
    %v2156 = vrot.slane %v2154, 4
    %v2157 = vshll.u32 %v2030, 16
    %v2159 = vrot.slane %v2157, 5
    %v2160 = vor.u32 %v2156, %v2159
    %v2161 = vrot.slane %v2160, 4
    %v2163 = vshll.u32 %v2046, 16
    %v2165 = vrot.slane %v2163, 5
    %v2166 = vsel %vm73, %v2161, %v2165
    %v2168 = vshrl.u32 %v2031, 16
    %v2170 = vrot.slane %v2168, 4
    %v2171 = vshll.u32 %v2031, 16
    %v2173 = vrot.slane %v2171, 5
    %v2174 = vor.u32 %v2170, %v2173
    %v2175 = vrot.slane %v2174, 4
    %v2177 = vshll.u32 %v2047, 16
    %v2179 = vrot.slane %v2177, 5
    %v2180 = vsel %vm73, %v2175, %v2179
    %v2182 = vshrl.u32 %v2032, 16
    %v2184 = vrot.slane %v2182, 4
    %v2185 = vshll.u32 %v2032, 16
    %v2187 = vrot.slane %v2185, 5
    %v2188 = vor.u32 %v2184, %v2187
    %v2189 = vrot.slane %v2188, 4
    %v2191 = vshll.u32 %v2048, 16
    %v2193 = vrot.slane %v2191, 5
    %v2194 = vsel %vm73, %v2189, %v2193
    %v2196 = vshrl.u32 %v2033, 16
    %v2198 = vrot.slane %v2196, 4
    %v2199 = vshll.u32 %v2033, 16
    %v2201 = vrot.slane %v2199, 5
    %v2202 = vor.u32 %v2198, %v2201
    %v2203 = vrot.slane %v2202, 4
    %v2205 = vshll.u32 %v2049, 16
    %v2207 = vrot.slane %v2205, 5
    %v2208 = vsel %vm73, %v2203, %v2207
    %v2210 = vshrl.u32 %v2034, 16
    %v2212 = vrot.slane %v2210, 4
    %v2213 = vshll.u32 %v2034, 16
    %v2215 = vrot.slane %v2213, 5
    %v2216 = vor.u32 %v2212, %v2215
    %v2217 = vrot.slane %v2216, 4
    %v2219 = vshll.u32 %v2050, 16
    %v2221 = vrot.slane %v2219, 5
    %v2222 = vsel %vm73, %v2217, %v2221
    %v2224 = vshrl.u32 %v2035, 16
    %v2226 = vrot.slane %v2224, 4
    %v2227 = vshll.u32 %v2035, 16
    %v2229 = vrot.slane %v2227, 5
    %v2230 = vor.u32 %v2226, %v2229
    %v2231 = vrot.slane %v2230, 4
    %v2233 = vshll.u32 %v2051, 16
    %v2235 = vrot.slane %v2233, 5
    %v2236 = vsel %vm73, %v2231, %v2235
    %v2238 = vshrl.u32 %v2036, 16
    %v2240 = vrot.slane %v2238, 4
    %v2241 = vshll.u32 %v2036, 16
    %v2243 = vrot.slane %v2241, 5
    %v2244 = vor.u32 %v2240, %v2243
    %v2245 = vrot.slane %v2244, 4
    %v2247 = vshll.u32 %v2052, 16
    %v2249 = vrot.slane %v2247, 5
    %v2250 = vsel %vm73, %v2245, %v2249
    %v2252 = vshrl.u32 %v2037, 16
    %v2254 = vrot.slane %v2252, 4
    %v2255 = vshll.u32 %v2037, 16
    %v2257 = vrot.slane %v2255, 5
    %v2258 = vor.u32 %v2254, %v2257
    %v2259 = vrot.slane %v2258, 4
    %v2261 = vshll.u32 %v2053, 16
    %v2263 = vrot.slane %v2261, 5
    %v2264 = vsel %vm73, %v2259, %v2263
    %v2266 = vshrl.u32 %v2038, 16
    %v2268 = vrot.slane %v2266, 4
    %v2269 = vshll.u32 %v2038, 16
    %v2271 = vrot.slane %v2269, 5
    %v2272 = vor.u32 %v2268, %v2271
    %v2273 = vrot.slane %v2272, 4
    %v2275 = vshll.u32 %v2054, 16
    %v2277 = vrot.slane %v2275, 5
    %v2278 = vsel %vm73, %v2273, %v2277
    %v2279 = vld [vmem:[#allocation2] sm:$0xe]
    %v2280 = vld [vmem:[#allocation2 + $0x8] sm:$0xe]
    %v2281 = vld [vmem:[#allocation2 + $0x10] sm:$0xe]
    %v2282 = vld [vmem:[#allocation2 + $0x18] sm:$0xe]
    %v2283 = vld [vmem:[#allocation2 + $0x20] sm:$0xe]
    %v2284 = vld [vmem:[#allocation2 + $0x28] sm:$0xe]
    %v2285 = vld [vmem:[#allocation2 + $0x30] sm:$0xe]
    %v2286 = vld [vmem:[#allocation2 + $0x38] sm:$0xe]
    %v2287 = vld [vmem:[#allocation2 + $0x50] sm:$0xe]
    %v2288 = vld [vmem:[#allocation2 + $0x58] sm:$0xe]
    %v2289 = vld [vmem:[#allocation2 + $0x60] sm:$0xe]
    %v2290 = vld [vmem:[#allocation2 + $0x68] sm:$0xe]
    %v2291 = vld [vmem:[#allocation2 + $0x70] sm:$0xe]
    %v2292 = vld [vmem:[#allocation2 + $0x78] sm:$0xe]
    %v2293 = vld [vmem:[#allocation2 + $0x80] sm:$0xe]
    %v2294 = vld [vmem:[#allocation2 + $0x88] sm:$0xe]
    %vm2327 = vcmask 1042432
    %vm2328 = vcmask 1046532
    %vm2329 = vmor %vm2327, %vm2328
    %v2330 = vrot.slane %v2279, 5
    %v2331 = vrot.slane %v2330, 4
    %v2332 = vrot.slane %v2039, 5
    %v2333 = vsel %vm2329, %v2331, %v2332
    %v2334 = vrot.slane %v2280, 5
    %v2335 = vrot.slane %v2334, 4
    %v2336 = vrot.slane %v2040, 5
    %v2337 = vsel %vm2329, %v2335, %v2336
    %v2338 = vrot.slane %v2281, 5
    %v2339 = vrot.slane %v2338, 4
    %v2340 = vrot.slane %v2041, 5
    %v2341 = vsel %vm2329, %v2339, %v2340
    %v2342 = vrot.slane %v2282, 5
    %v2343 = vrot.slane %v2342, 4
    %v2344 = vrot.slane %v2042, 5
    %v2345 = vsel %vm2329, %v2343, %v2344
    %v2346 = vrot.slane %v2283, 5
    %v2347 = vrot.slane %v2346, 4
    %v2348 = vrot.slane %v2043, 5
    %v2349 = vsel %vm2329, %v2347, %v2348
    %v2350 = vrot.slane %v2284, 5
    %v2351 = vrot.slane %v2350, 4
    %v2352 = vrot.slane %v2044, 5
    %v2353 = vsel %vm2329, %v2351, %v2352
    %v2354 = vrot.slane %v2285, 5
    %v2355 = vrot.slane %v2354, 4
    %v2356 = vrot.slane %v2045, 5
    %v2357 = vsel %vm2329, %v2355, %v2356
    %v2358 = vrot.slane %v2286, 5
    %v2359 = vrot.slane %v2358, 4
    %v2360 = vrot.slane %v2046, 5
    %v2361 = vsel %vm2329, %v2359, %v2360
    %v2362 = vrot.slane %v2287, 5
    %v2363 = vrot.slane %v2362, 4
    %v2364 = vrot.slane %v2047, 5
    %v2365 = vsel %vm2329, %v2363, %v2364
    %v2366 = vrot.slane %v2288, 5
    %v2367 = vrot.slane %v2366, 4
    %v2368 = vrot.slane %v2048, 5
    %v2369 = vsel %vm2329, %v2367, %v2368
    %v2370 = vrot.slane %v2289, 5
    %v2371 = vrot.slane %v2370, 4
    %v2372 = vrot.slane %v2049, 5
    %v2373 = vsel %vm2329, %v2371, %v2372
    %v2374 = vrot.slane %v2290, 5
    %v2375 = vrot.slane %v2374, 4
    %v2376 = vrot.slane %v2050, 5
    %v2377 = vsel %vm2329, %v2375, %v2376
    %v2378 = vrot.slane %v2291, 5
    %v2379 = vrot.slane %v2378, 4
    %v2380 = vrot.slane %v2051, 5
    %v2381 = vsel %vm2329, %v2379, %v2380
    %v2382 = vrot.slane %v2292, 5
    %v2383 = vrot.slane %v2382, 4
    %v2384 = vrot.slane %v2052, 5
    %v2385 = vsel %vm2329, %v2383, %v2384
    %v2386 = vrot.slane %v2293, 5
    %v2387 = vrot.slane %v2386, 4
    %v2388 = vrot.slane %v2053, 5
    %v2389 = vsel %vm2329, %v2387, %v2388
    %v2390 = vrot.slane %v2294, 5
    %v2391 = vrot.slane %v2390, 4
    %v2392 = vrot.slane %v2054, 5
    %v2393 = vsel %vm2329, %v2391, %v2392
    %v2394 = vld [vmem:[%s1616] sm:$0xf]
    %v2395 = vld [vmem:[%s1616 + $0x8] sm:$0xf]
    %v2396 = vld [vmem:[%s1616 + $0x10] sm:$0xf]
    %v2397 = vld [vmem:[%s1616 + $0x18] sm:$0xf]
    %v2398 = vld [vmem:[%s1616 + $0x20] sm:$0xf]
    %v2399 = vld [vmem:[%s1616 + $0x28] sm:$0xf]
    %v2400 = vld [vmem:[%s1616 + $0x30] sm:$0xf]
    %v2401 = vld [vmem:[%s1616 + $0x38] sm:$0xf]
    %v2402 = vld [vmem:[%s1616 + $0x50] sm:$0xf]
    %v2403 = vld [vmem:[%s1616 + $0x58] sm:$0xf]
    %v2404 = vld [vmem:[%s1616 + $0x60] sm:$0xf]
    %v2405 = vld [vmem:[%s1616 + $0x68] sm:$0xf]
    %v2406 = vld [vmem:[%s1616 + $0x70] sm:$0xf]
    %v2407 = vld [vmem:[%s1616 + $0x78] sm:$0xf]
    %v2408 = vld [vmem:[%s1616 + $0x80] sm:$0xf]
    %v2409 = vld [vmem:[%s1616 + $0x88] sm:$0xf]
    %v2410 = vld [vmem:[%s1616 + $0x4] sm:$0x1]
    %v2411 = vld [vmem:[%s1616 + $0xc] sm:$0x1]
    %v2412 = vld [vmem:[%s1616 + $0x14] sm:$0x1]
    %v2413 = vld [vmem:[%s1616 + $0x1c] sm:$0x1]
    %v2414 = vld [vmem:[%s1616 + $0x24] sm:$0x1]
    %v2415 = vld [vmem:[%s1616 + $0x2c] sm:$0x1]
    %v2416 = vld [vmem:[%s1616 + $0x34] sm:$0x1]
    %v2417 = vld [vmem:[%s1616 + $0x3c] sm:$0x1]
    %v2418 = vld [vmem:[%s1616 + $0x54] sm:$0x1]
    %v2419 = vld [vmem:[%s1616 + $0x5c] sm:$0x1]
    %v2420 = vld [vmem:[%s1616 + $0x64] sm:$0x1]
    %v2421 = vld [vmem:[%s1616 + $0x6c] sm:$0x1]
    %v2422 = vld [vmem:[%s1616 + $0x74] sm:$0x1]
    %v2423 = vld [vmem:[%s1616 + $0x7c] sm:$0x1]
    %v2424 = vld [vmem:[%s1616 + $0x84] sm:$0x1]
    %v2425 = vld [vmem:[%s1616 + $0x8c] sm:$0x1]
    %v2427 = vshrl.u32 %v2394, 16
    %v2429 = vrot.slane %v2427, 4
    %v2430 = vshll.u32 %v2394, 16
    %v2432 = vrot.slane %v2430, 5
    %v2433 = vor.u32 %v2429, %v2432
    %v2434 = vrot.slane %v2433, 4
    %v2436 = vshll.u32 %v2410, 16
    %v2438 = vrot.slane %v2436, 5
    %v2439 = vsel %vm73, %v2434, %v2438
    %v2441 = vshrl.u32 %v2395, 16
    %v2443 = vrot.slane %v2441, 4
    %v2444 = vshll.u32 %v2395, 16
    %v2446 = vrot.slane %v2444, 5
    %v2447 = vor.u32 %v2443, %v2446
    %v2448 = vrot.slane %v2447, 4
    %v2450 = vshll.u32 %v2411, 16
    %v2452 = vrot.slane %v2450, 5
    %v2453 = vsel %vm73, %v2448, %v2452
    %v2455 = vshrl.u32 %v2396, 16
    %v2457 = vrot.slane %v2455, 4
    %v2458 = vshll.u32 %v2396, 16
    %v2460 = vrot.slane %v2458, 5
    %v2461 = vor.u32 %v2457, %v2460
    %v2462 = vrot.slane %v2461, 4
    %v2464 = vshll.u32 %v2412, 16
    %v2466 = vrot.slane %v2464, 5
    %v2467 = vsel %vm73, %v2462, %v2466
    %v2469 = vshrl.u32 %v2397, 16
    %v2471 = vrot.slane %v2469, 4
    %v2472 = vshll.u32 %v2397, 16
    %v2474 = vrot.slane %v2472, 5
    %v2475 = vor.u32 %v2471, %v2474
    %v2476 = vrot.slane %v2475, 4
    %v2478 = vshll.u32 %v2413, 16
    %v2480 = vrot.slane %v2478, 5
    %v2481 = vsel %vm73, %v2476, %v2480
    %v2483 = vshrl.u32 %v2398, 16
    %v2485 = vrot.slane %v2483, 4
    %v2486 = vshll.u32 %v2398, 16
    %v2488 = vrot.slane %v2486, 5
    %v2489 = vor.u32 %v2485, %v2488
    %v2490 = vrot.slane %v2489, 4
    %v2492 = vshll.u32 %v2414, 16
    %v2494 = vrot.slane %v2492, 5
    %v2495 = vsel %vm73, %v2490, %v2494
    %v2497 = vshrl.u32 %v2399, 16
    %v2499 = vrot.slane %v2497, 4
    %v2500 = vshll.u32 %v2399, 16
    %v2502 = vrot.slane %v2500, 5
    %v2503 = vor.u32 %v2499, %v2502
    %v2504 = vrot.slane %v2503, 4
    %v2506 = vshll.u32 %v2415, 16
    %v2508 = vrot.slane %v2506, 5
    %v2509 = vsel %vm73, %v2504, %v2508
    %v2511 = vshrl.u32 %v2400, 16
    %v2513 = vrot.slane %v2511, 4
    %v2514 = vshll.u32 %v2400, 16
    %v2516 = vrot.slane %v2514, 5
    %v2517 = vor.u32 %v2513, %v2516
    %v2518 = vrot.slane %v2517, 4
    %v2520 = vshll.u32 %v2416, 16
    %v2522 = vrot.slane %v2520, 5
    %v2523 = vsel %vm73, %v2518, %v2522
    %v2525 = vshrl.u32 %v2401, 16
    %v2527 = vrot.slane %v2525, 4
    %v2528 = vshll.u32 %v2401, 16
    %v2530 = vrot.slane %v2528, 5
    %v2531 = vor.u32 %v2527, %v2530
    %v2532 = vrot.slane %v2531, 4
    %v2534 = vshll.u32 %v2417, 16
    %v2536 = vrot.slane %v2534, 5
    %v2537 = vsel %vm73, %v2532, %v2536
    %v2539 = vshrl.u32 %v2402, 16
    %v2541 = vrot.slane %v2539, 4
    %v2542 = vshll.u32 %v2402, 16
    %v2544 = vrot.slane %v2542, 5
    %v2545 = vor.u32 %v2541, %v2544
    %v2546 = vrot.slane %v2545, 4
    %v2548 = vshll.u32 %v2418, 16
    %v2550 = vrot.slane %v2548, 5
    %v2551 = vsel %vm73, %v2546, %v2550
    %v2553 = vshrl.u32 %v2403, 16
    %v2555 = vrot.slane %v2553, 4
    %v2556 = vshll.u32 %v2403, 16
    %v2558 = vrot.slane %v2556, 5
    %v2559 = vor.u32 %v2555, %v2558
    %v2560 = vrot.slane %v2559, 4
    %v2562 = vshll.u32 %v2419, 16
    %v2564 = vrot.slane %v2562, 5
    %v2565 = vsel %vm73, %v2560, %v2564
    %v2567 = vshrl.u32 %v2404, 16
    %v2569 = vrot.slane %v2567, 4
    %v2570 = vshll.u32 %v2404, 16
    %v2572 = vrot.slane %v2570, 5
    %v2573 = vor.u32 %v2569, %v2572
    %v2574 = vrot.slane %v2573, 4
    %v2576 = vshll.u32 %v2420, 16
    %v2578 = vrot.slane %v2576, 5
    %v2579 = vsel %vm73, %v2574, %v2578
    %v2581 = vshrl.u32 %v2405, 16
    %v2583 = vrot.slane %v2581, 4
    %v2584 = vshll.u32 %v2405, 16
    %v2586 = vrot.slane %v2584, 5
    %v2587 = vor.u32 %v2583, %v2586
    %v2588 = vrot.slane %v2587, 4
    %v2590 = vshll.u32 %v2421, 16
    %v2592 = vrot.slane %v2590, 5
    %v2593 = vsel %vm73, %v2588, %v2592
    %v2595 = vshrl.u32 %v2406, 16
    %v2597 = vrot.slane %v2595, 4
    %v2598 = vshll.u32 %v2406, 16
    %v2600 = vrot.slane %v2598, 5
    %v2601 = vor.u32 %v2597, %v2600
    %v2602 = vrot.slane %v2601, 4
    %v2604 = vshll.u32 %v2422, 16
    %v2606 = vrot.slane %v2604, 5
    %v2607 = vsel %vm73, %v2602, %v2606
    %v2609 = vshrl.u32 %v2407, 16
    %v2611 = vrot.slane %v2609, 4
    %v2612 = vshll.u32 %v2407, 16
    %v2614 = vrot.slane %v2612, 5
    %v2615 = vor.u32 %v2611, %v2614
    %v2616 = vrot.slane %v2615, 4
    %v2618 = vshll.u32 %v2423, 16
    %v2620 = vrot.slane %v2618, 5
    %v2621 = vsel %vm73, %v2616, %v2620
    %v2623 = vshrl.u32 %v2408, 16
    %v2625 = vrot.slane %v2623, 4
    %v2626 = vshll.u32 %v2408, 16
    %v2628 = vrot.slane %v2626, 5
    %v2629 = vor.u32 %v2625, %v2628
    %v2630 = vrot.slane %v2629, 4
    %v2632 = vshll.u32 %v2424, 16
    %v2634 = vrot.slane %v2632, 5
    %v2635 = vsel %vm73, %v2630, %v2634
    %v2637 = vshrl.u32 %v2409, 16
    %v2639 = vrot.slane %v2637, 4
    %v2640 = vshll.u32 %v2409, 16
    %v2642 = vrot.slane %v2640, 5
    %v2643 = vor.u32 %v2639, %v2642
    %v2644 = vrot.slane %v2643, 4
    %v2646 = vshll.u32 %v2425, 16
    %v2648 = vrot.slane %v2646, 5
    %v2649 = vsel %vm73, %v2644, %v2648
    %v2650 = vld [vmem:[%s1616] sm:$0xe]
    %v2651 = vld [vmem:[%s1616 + $0x8] sm:$0xe]
    %v2652 = vld [vmem:[%s1616 + $0x10] sm:$0xe]
    %v2653 = vld [vmem:[%s1616 + $0x18] sm:$0xe]
    %v2654 = vld [vmem:[%s1616 + $0x20] sm:$0xe]
    %v2655 = vld [vmem:[%s1616 + $0x28] sm:$0xe]
    %v2656 = vld [vmem:[%s1616 + $0x30] sm:$0xe]
    %v2657 = vld [vmem:[%s1616 + $0x38] sm:$0xe]
    %v2658 = vld [vmem:[%s1616 + $0x50] sm:$0xe]
    %v2659 = vld [vmem:[%s1616 + $0x58] sm:$0xe]
    %v2660 = vld [vmem:[%s1616 + $0x60] sm:$0xe]
    %v2661 = vld [vmem:[%s1616 + $0x68] sm:$0xe]
    %v2662 = vld [vmem:[%s1616 + $0x70] sm:$0xe]
    %v2663 = vld [vmem:[%s1616 + $0x78] sm:$0xe]
    %v2664 = vld [vmem:[%s1616 + $0x80] sm:$0xe]
    %v2665 = vld [vmem:[%s1616 + $0x88] sm:$0xe]
    %v2698 = vrot.slane %v2650, 5
    %v2699 = vrot.slane %v2698, 4
    %v2700 = vrot.slane %v2410, 5
    %v2701 = vsel %vm2329, %v2699, %v2700
    %v2702 = vrot.slane %v2651, 5
    %v2703 = vrot.slane %v2702, 4
    %v2704 = vrot.slane %v2411, 5
    %v2705 = vsel %vm2329, %v2703, %v2704
    %v2706 = vrot.slane %v2652, 5
    %v2707 = vrot.slane %v2706, 4
    %v2708 = vrot.slane %v2412, 5
    %v2709 = vsel %vm2329, %v2707, %v2708
    %v2710 = vrot.slane %v2653, 5
    %v2711 = vrot.slane %v2710, 4
    %v2712 = vrot.slane %v2413, 5
    %v2713 = vsel %vm2329, %v2711, %v2712
    %v2714 = vrot.slane %v2654, 5
    %v2715 = vrot.slane %v2714, 4
    %v2716 = vrot.slane %v2414, 5
    %v2717 = vsel %vm2329, %v2715, %v2716
    %v2718 = vrot.slane %v2655, 5
    %v2719 = vrot.slane %v2718, 4
    %v2720 = vrot.slane %v2415, 5
    %v2721 = vsel %vm2329, %v2719, %v2720
    %v2722 = vrot.slane %v2656, 5
    %v2723 = vrot.slane %v2722, 4
    %v2724 = vrot.slane %v2416, 5
    %v2725 = vsel %vm2329, %v2723, %v2724
    %v2726 = vrot.slane %v2657, 5
    %v2727 = vrot.slane %v2726, 4
    %v2728 = vrot.slane %v2417, 5
    %v2729 = vsel %vm2329, %v2727, %v2728
    %v2730 = vrot.slane %v2658, 5
    %v2731 = vrot.slane %v2730, 4
    %v2732 = vrot.slane %v2418, 5
    %v2733 = vsel %vm2329, %v2731, %v2732
    %v2734 = vrot.slane %v2659, 5
    %v2735 = vrot.slane %v2734, 4
    %v2736 = vrot.slane %v2419, 5
    %v2737 = vsel %vm2329, %v2735, %v2736
    %v2738 = vrot.slane %v2660, 5
    %v2739 = vrot.slane %v2738, 4
    %v2740 = vrot.slane %v2420, 5
    %v2741 = vsel %vm2329, %v2739, %v2740
    %v2742 = vrot.slane %v2661, 5
    %v2743 = vrot.slane %v2742, 4
    %v2744 = vrot.slane %v2421, 5
    %v2745 = vsel %vm2329, %v2743, %v2744
    %v2746 = vrot.slane %v2662, 5
    %v2747 = vrot.slane %v2746, 4
    %v2748 = vrot.slane %v2422, 5
    %v2749 = vsel %vm2329, %v2747, %v2748
    %v2750 = vrot.slane %v2663, 5
    %v2751 = vrot.slane %v2750, 4
    %v2752 = vrot.slane %v2423, 5
    %v2753 = vsel %vm2329, %v2751, %v2752
    %v2754 = vrot.slane %v2664, 5
    %v2755 = vrot.slane %v2754, 4
    %v2756 = vrot.slane %v2424, 5
    %v2757 = vsel %vm2329, %v2755, %v2756
    %v2758 = vrot.slane %v2665, 5
    %v2759 = vrot.slane %v2758, 4
    %v2760 = vrot.slane %v2425, 5
    %v2761 = vsel %vm2329, %v2759, %v2760
    %s2762 = scalar_lea.vmem [#allocation2], 16
    %v2763 = vld [vmem:[%s2762] sm:$0xf]
    %v2764 = vld [vmem:[%s2762 + $0x8] sm:$0xf]
    %v2765 = vld [vmem:[%s2762 + $0x10] sm:$0xf]
    %v2766 = vld [vmem:[%s2762 + $0x18] sm:$0xf]
    %v2767 = vld [vmem:[%s2762 + $0x20] sm:$0xf]
    %v2768 = vld [vmem:[%s2762 + $0x28] sm:$0xf]
    %v2769 = vld [vmem:[%s2762 + $0x30] sm:$0xf]
    %v2770 = vld [vmem:[%s2762 + $0x38] sm:$0xf]
    %v2771 = vld [vmem:[%s2762 + $0x50] sm:$0xf]
    %v2772 = vld [vmem:[%s2762 + $0x58] sm:$0xf]
    %v2773 = vld [vmem:[%s2762 + $0x60] sm:$0xf]
    %v2774 = vld [vmem:[%s2762 + $0x68] sm:$0xf]
    %v2775 = vld [vmem:[%s2762 + $0x70] sm:$0xf]
    %v2776 = vld [vmem:[%s2762 + $0x78] sm:$0xf]
    %v2777 = vld [vmem:[%s2762 + $0x80] sm:$0xf]
    %v2778 = vld [vmem:[%s2762 + $0x88] sm:$0xf]
    %v2779 = vld [vmem:[%s2762 + $0x4] sm:$0x1]
    %v2780 = vld [vmem:[%s2762 + $0xc] sm:$0x1]
    %v2781 = vld [vmem:[%s2762 + $0x14] sm:$0x1]
    %v2782 = vld [vmem:[%s2762 + $0x1c] sm:$0x1]
    %v2783 = vld [vmem:[%s2762 + $0x24] sm:$0x1]
    %v2784 = vld [vmem:[%s2762 + $0x2c] sm:$0x1]
    %v2785 = vld [vmem:[%s2762 + $0x34] sm:$0x1]
    %v2786 = vld [vmem:[%s2762 + $0x3c] sm:$0x1]
    %v2787 = vld [vmem:[%s2762 + $0x54] sm:$0x1]
    %v2788 = vld [vmem:[%s2762 + $0x5c] sm:$0x1]
    %v2789 = vld [vmem:[%s2762 + $0x64] sm:$0x1]
    %v2790 = vld [vmem:[%s2762 + $0x6c] sm:$0x1]
    %v2791 = vld [vmem:[%s2762 + $0x74] sm:$0x1]
    %v2792 = vld [vmem:[%s2762 + $0x7c] sm:$0x1]
    %v2793 = vld [vmem:[%s2762 + $0x84] sm:$0x1]
    %v2794 = vld [vmem:[%s2762 + $0x8c] sm:$0x1]
    %v2796 = vshrl.u32 %v2763, 16
    %v2798 = vrot.slane %v2796, 4
    %v2799 = vshll.u32 %v2763, 16
    %v2801 = vrot.slane %v2799, 5
    %v2802 = vor.u32 %v2798, %v2801
    %v2803 = vrot.slane %v2802, 4
    %v2805 = vshll.u32 %v2779, 16
    %v2807 = vrot.slane %v2805, 5
    %v2808 = vsel %vm73, %v2803, %v2807
    %v2810 = vshrl.u32 %v2764, 16
    %v2812 = vrot.slane %v2810, 4
    %v2813 = vshll.u32 %v2764, 16
    %v2815 = vrot.slane %v2813, 5
    %v2816 = vor.u32 %v2812, %v2815
    %v2817 = vrot.slane %v2816, 4
    %v2819 = vshll.u32 %v2780, 16
    %v2821 = vrot.slane %v2819, 5
    %v2822 = vsel %vm73, %v2817, %v2821
    %v2824 = vshrl.u32 %v2765, 16
    %v2826 = vrot.slane %v2824, 4
    %v2827 = vshll.u32 %v2765, 16
    %v2829 = vrot.slane %v2827, 5
    %v2830 = vor.u32 %v2826, %v2829
    %v2831 = vrot.slane %v2830, 4
    %v2833 = vshll.u32 %v2781, 16
    %v2835 = vrot.slane %v2833, 5
    %v2836 = vsel %vm73, %v2831, %v2835
    %v2838 = vshrl.u32 %v2766, 16
    %v2840 = vrot.slane %v2838, 4
    %v2841 = vshll.u32 %v2766, 16
    %v2843 = vrot.slane %v2841, 5
    %v2844 = vor.u32 %v2840, %v2843
    %v2845 = vrot.slane %v2844, 4
    %v2847 = vshll.u32 %v2782, 16
    %v2849 = vrot.slane %v2847, 5
    %v2850 = vsel %vm73, %v2845, %v2849
    %v2852 = vshrl.u32 %v2767, 16
    %v2854 = vrot.slane %v2852, 4
    %v2855 = vshll.u32 %v2767, 16
    %v2857 = vrot.slane %v2855, 5
    %v2858 = vor.u32 %v2854, %v2857
    %v2859 = vrot.slane %v2858, 4
    %v2861 = vshll.u32 %v2783, 16
    %v2863 = vrot.slane %v2861, 5
    %v2864 = vsel %vm73, %v2859, %v2863
    %v2866 = vshrl.u32 %v2768, 16
    %v2868 = vrot.slane %v2866, 4
    %v2869 = vshll.u32 %v2768, 16
    %v2871 = vrot.slane %v2869, 5
    %v2872 = vor.u32 %v2868, %v2871
    %v2873 = vrot.slane %v2872, 4
    %v2875 = vshll.u32 %v2784, 16
    %v2877 = vrot.slane %v2875, 5
    %v2878 = vsel %vm73, %v2873, %v2877
    %v2880 = vshrl.u32 %v2769, 16
    %v2882 = vrot.slane %v2880, 4
    %v2883 = vshll.u32 %v2769, 16
    %v2885 = vrot.slane %v2883, 5
    %v2886 = vor.u32 %v2882, %v2885
    %v2887 = vrot.slane %v2886, 4
    %v2889 = vshll.u32 %v2785, 16
    %v2891 = vrot.slane %v2889, 5
    %v2892 = vsel %vm73, %v2887, %v2891
    %v2894 = vshrl.u32 %v2770, 16
    %v2896 = vrot.slane %v2894, 4
    %v2897 = vshll.u32 %v2770, 16
    %v2899 = vrot.slane %v2897, 5
    %v2900 = vor.u32 %v2896, %v2899
    %v2901 = vrot.slane %v2900, 4
    %v2903 = vshll.u32 %v2786, 16
    %v2905 = vrot.slane %v2903, 5
    %v2906 = vsel %vm73, %v2901, %v2905
    %v2908 = vshrl.u32 %v2771, 16
    %v2910 = vrot.slane %v2908, 4
    %v2911 = vshll.u32 %v2771, 16
    %v2913 = vrot.slane %v2911, 5
    %v2914 = vor.u32 %v2910, %v2913
    %v2915 = vrot.slane %v2914, 4
    %v2917 = vshll.u32 %v2787, 16
    %v2919 = vrot.slane %v2917, 5
    %v2920 = vsel %vm73, %v2915, %v2919
    %v2922 = vshrl.u32 %v2772, 16
    %v2924 = vrot.slane %v2922, 4
    %v2925 = vshll.u32 %v2772, 16
    %v2927 = vrot.slane %v2925, 5
    %v2928 = vor.u32 %v2924, %v2927
    %v2929 = vrot.slane %v2928, 4
    %v2931 = vshll.u32 %v2788, 16
    %v2933 = vrot.slane %v2931, 5
    %v2934 = vsel %vm73, %v2929, %v2933
    %v2936 = vshrl.u32 %v2773, 16
    %v2938 = vrot.slane %v2936, 4
    %v2939 = vshll.u32 %v2773, 16
    %v2941 = vrot.slane %v2939, 5
    %v2942 = vor.u32 %v2938, %v2941
    %v2943 = vrot.slane %v2942, 4
    %v2945 = vshll.u32 %v2789, 16
    %v2947 = vrot.slane %v2945, 5
    %v2948 = vsel %vm73, %v2943, %v2947
    %v2950 = vshrl.u32 %v2774, 16
    %v2952 = vrot.slane %v2950, 4
    %v2953 = vshll.u32 %v2774, 16
    %v2955 = vrot.slane %v2953, 5
    %v2956 = vor.u32 %v2952, %v2955
    %v2957 = vrot.slane %v2956, 4
    %v2959 = vshll.u32 %v2790, 16
    %v2961 = vrot.slane %v2959, 5
    %v2962 = vsel %vm73, %v2957, %v2961
    %v2964 = vshrl.u32 %v2775, 16
    %v2966 = vrot.slane %v2964, 4
    %v2967 = vshll.u32 %v2775, 16
    %v2969 = vrot.slane %v2967, 5
    %v2970 = vor.u32 %v2966, %v2969
    %v2971 = vrot.slane %v2970, 4
    %v2973 = vshll.u32 %v2791, 16
    %v2975 = vrot.slane %v2973, 5
    %v2976 = vsel %vm73, %v2971, %v2975
    %v2978 = vshrl.u32 %v2776, 16
    %v2980 = vrot.slane %v2978, 4
    %v2981 = vshll.u32 %v2776, 16
    %v2983 = vrot.slane %v2981, 5
    %v2984 = vor.u32 %v2980, %v2983
    %v2985 = vrot.slane %v2984, 4
    %v2987 = vshll.u32 %v2792, 16
    %v2989 = vrot.slane %v2987, 5
    %v2990 = vsel %vm73, %v2985, %v2989
    %v2992 = vshrl.u32 %v2777, 16
    %v2994 = vrot.slane %v2992, 4
    %v2995 = vshll.u32 %v2777, 16
    %v2997 = vrot.slane %v2995, 5
    %v2998 = vor.u32 %v2994, %v2997
    %v2999 = vrot.slane %v2998, 4
    %v3001 = vshll.u32 %v2793, 16
    %v3003 = vrot.slane %v3001, 5
    %v3004 = vsel %vm73, %v2999, %v3003
    %v3006 = vshrl.u32 %v2778, 16
    %v3008 = vrot.slane %v3006, 4
    %v3009 = vshll.u32 %v2778, 16
    %v3011 = vrot.slane %v3009, 5
    %v3012 = vor.u32 %v3008, %v3011
    %v3013 = vrot.slane %v3012, 4
    %v3015 = vshll.u32 %v2794, 16
    %v3017 = vrot.slane %v3015, 5
    %v3018 = vsel %vm73, %v3013, %v3017
    %v3019 = vld [vmem:[%s2762] sm:$0xe]
    %v3020 = vld [vmem:[%s2762 + $0x8] sm:$0xe]
    %v3021 = vld [vmem:[%s2762 + $0x10] sm:$0xe]
    %v3022 = vld [vmem:[%s2762 + $0x18] sm:$0xe]
    %v3023 = vld [vmem:[%s2762 + $0x20] sm:$0xe]
    %v3024 = vld [vmem:[%s2762 + $0x28] sm:$0xe]
    %v3025 = vld [vmem:[%s2762 + $0x30] sm:$0xe]
    %v3026 = vld [vmem:[%s2762 + $0x38] sm:$0xe]
    %v3027 = vld [vmem:[%s2762 + $0x50] sm:$0xe]
    %v3028 = vld [vmem:[%s2762 + $0x58] sm:$0xe]
    %v3029 = vld [vmem:[%s2762 + $0x60] sm:$0xe]
    %v3030 = vld [vmem:[%s2762 + $0x68] sm:$0xe]
    %v3031 = vld [vmem:[%s2762 + $0x70] sm:$0xe]
    %v3032 = vld [vmem:[%s2762 + $0x78] sm:$0xe]
    %v3033 = vld [vmem:[%s2762 + $0x80] sm:$0xe]
    %v3034 = vld [vmem:[%s2762 + $0x88] sm:$0xe]
    %v3067 = vrot.slane %v3019, 5
    %v3068 = vrot.slane %v3067, 4
    %v3069 = vrot.slane %v2779, 5
    %v3070 = vsel %vm2329, %v3068, %v3069
    %v3071 = vrot.slane %v3020, 5
    %v3072 = vrot.slane %v3071, 4
    %v3073 = vrot.slane %v2780, 5
    %v3074 = vsel %vm2329, %v3072, %v3073
    %v3075 = vrot.slane %v3021, 5
    %v3076 = vrot.slane %v3075, 4
    %v3077 = vrot.slane %v2781, 5
    %v3078 = vsel %vm2329, %v3076, %v3077
    %v3079 = vrot.slane %v3022, 5
    %v3080 = vrot.slane %v3079, 4
    %v3081 = vrot.slane %v2782, 5
    %v3082 = vsel %vm2329, %v3080, %v3081
    %v3083 = vrot.slane %v3023, 5
    %v3084 = vrot.slane %v3083, 4
    %v3085 = vrot.slane %v2783, 5
    %v3086 = vsel %vm2329, %v3084, %v3085
    %v3087 = vrot.slane %v3024, 5
    %v3088 = vrot.slane %v3087, 4
    %v3089 = vrot.slane %v2784, 5
    %v3090 = vsel %vm2329, %v3088, %v3089
    %v3091 = vrot.slane %v3025, 5
    %v3092 = vrot.slane %v3091, 4
    %v3093 = vrot.slane %v2785, 5
    %v3094 = vsel %vm2329, %v3092, %v3093
    %v3095 = vrot.slane %v3026, 5
    %v3096 = vrot.slane %v3095, 4
    %v3097 = vrot.slane %v2786, 5
    %v3098 = vsel %vm2329, %v3096, %v3097
    %v3099 = vrot.slane %v3027, 5
    %v3100 = vrot.slane %v3099, 4
    %v3101 = vrot.slane %v2787, 5
    %v3102 = vsel %vm2329, %v3100, %v3101
    %v3103 = vrot.slane %v3028, 5
    %v3104 = vrot.slane %v3103, 4
    %v3105 = vrot.slane %v2788, 5
    %v3106 = vsel %vm2329, %v3104, %v3105
    %v3107 = vrot.slane %v3029, 5
    %v3108 = vrot.slane %v3107, 4
    %v3109 = vrot.slane %v2789, 5
    %v3110 = vsel %vm2329, %v3108, %v3109
    %v3111 = vrot.slane %v3030, 5
    %v3112 = vrot.slane %v3111, 4
    %v3113 = vrot.slane %v2790, 5
    %v3114 = vsel %vm2329, %v3112, %v3113
    %v3115 = vrot.slane %v3031, 5
    %v3116 = vrot.slane %v3115, 4
    %v3117 = vrot.slane %v2791, 5
    %v3118 = vsel %vm2329, %v3116, %v3117
    %v3119 = vrot.slane %v3032, 5
    %v3120 = vrot.slane %v3119, 4
    %v3121 = vrot.slane %v2792, 5
    %v3122 = vsel %vm2329, %v3120, %v3121
    %v3123 = vrot.slane %v3033, 5
    %v3124 = vrot.slane %v3123, 4
    %v3125 = vrot.slane %v2793, 5
    %v3126 = vsel %vm2329, %v3124, %v3125
    %v3127 = vrot.slane %v3034, 5
    %v3128 = vrot.slane %v3127, 4
    %v3129 = vrot.slane %v2794, 5
    %v3130 = vsel %vm2329, %v3128, %v3129
    %v3147 = vunpack.c.l.b16 %v2023
    %v3148 = vunpack.c.l.b16 %v2024
    %v3149 = vunpack.c.l.b16 %v2025
    %v3150 = vunpack.c.l.b16 %v2026
    %v3151 = vunpack.c.l.b16 %v2027
    %v3152 = vunpack.c.l.b16 %v2028
    %v3153 = vunpack.c.l.b16 %v2029
    %v3154 = vunpack.c.l.b16 %v2030
    %v3155 = vunpack.c.l.b16 %v2031
    %v3156 = vunpack.c.l.b16 %v2032
    %v3157 = vunpack.c.l.b16 %v2033
    %v3158 = vunpack.c.l.b16 %v2034
    %v3159 = vunpack.c.l.b16 %v2035
    %v3160 = vunpack.c.l.b16 %v2036
    %v3161 = vunpack.c.l.b16 %v2037
    %v3162 = vunpack.c.l.b16 %v2038
    %v3163 = vpack.c.b16 %v3148, %v3147
    %v3164 = vpack.c.b16 %v3150, %v3149
    %v3165 = vpack.c.b16 %v3152, %v3151
    %v3166 = vpack.c.b16 %v3154, %v3153
    %v3167 = vpack.c.b16 %v3156, %v3155
    %v3168 = vpack.c.b16 %v3158, %v3157
    %v3169 = vpack.c.b16 %v3160, %v3159
    %v3170 = vpack.c.b16 %v3162, %v3161
    %v3179 = vunpack.c.l.b16 %v2068
    %v3180 = vunpack.c.l.b16 %v2082
    %v3181 = vunpack.c.l.b16 %v2096
    %v3182 = vunpack.c.l.b16 %v2110
    %v3183 = vunpack.c.l.b16 %v2124
    %v3184 = vunpack.c.l.b16 %v2138
    %v3185 = vunpack.c.l.b16 %v2152
    %v3186 = vunpack.c.l.b16 %v2166
    %v3187 = vunpack.c.l.b16 %v2180
    %v3188 = vunpack.c.l.b16 %v2194
    %v3189 = vunpack.c.l.b16 %v2208
    %v3190 = vunpack.c.l.b16 %v2222
    %v3191 = vunpack.c.l.b16 %v2236
    %v3192 = vunpack.c.l.b16 %v2250
    %v3193 = vunpack.c.l.b16 %v2264
    %v3194 = vunpack.c.l.b16 %v2278
    %v3195 = vpack.c.b16 %v3180, %v3179
    %v3196 = vpack.c.b16 %v3182, %v3181
    %v3197 = vpack.c.b16 %v3184, %v3183
    %v3198 = vpack.c.b16 %v3186, %v3185
    %v3199 = vpack.c.b16 %v3188, %v3187
    %v3200 = vpack.c.b16 %v3190, %v3189
    %v3201 = vpack.c.b16 %v3192, %v3191
    %v3202 = vpack.c.b16 %v3194, %v3193
    %v3211 = vunpack.c.l.b16 %v2333
    %v3212 = vunpack.c.l.b16 %v2337
    %v3213 = vunpack.c.l.b16 %v2341
    %v3214 = vunpack.c.l.b16 %v2345
    %v3215 = vunpack.c.l.b16 %v2349
    %v3216 = vunpack.c.l.b16 %v2353
    %v3217 = vunpack.c.l.b16 %v2357
    %v3218 = vunpack.c.l.b16 %v2361
    %v3219 = vunpack.c.l.b16 %v2365
    %v3220 = vunpack.c.l.b16 %v2369
    %v3221 = vunpack.c.l.b16 %v2373
    %v3222 = vunpack.c.l.b16 %v2377
    %v3223 = vunpack.c.l.b16 %v2381
    %v3224 = vunpack.c.l.b16 %v2385
    %v3225 = vunpack.c.l.b16 %v2389
    %v3226 = vunpack.c.l.b16 %v2393
    %v3227 = vpack.c.b16 %v3212, %v3211
    %v3228 = vpack.c.b16 %v3214, %v3213
    %v3229 = vpack.c.b16 %v3216, %v3215
    %v3230 = vpack.c.b16 %v3218, %v3217
    %v3231 = vpack.c.b16 %v3220, %v3219
    %v3232 = vpack.c.b16 %v3222, %v3221
    %v3233 = vpack.c.b16 %v3224, %v3223
    %v3234 = vpack.c.b16 %v3226, %v3225
    %v3259 = vunpack.c.l.b16 %v2394
    %v3260 = vunpack.c.l.b16 %v2395
    %v3261 = vunpack.c.l.b16 %v2396
    %v3262 = vunpack.c.l.b16 %v2397
    %v3263 = vunpack.c.l.b16 %v2398
    %v3264 = vunpack.c.l.b16 %v2399
    %v3265 = vunpack.c.l.b16 %v2400
    %v3266 = vunpack.c.l.b16 %v2401
    %v3267 = vunpack.c.l.b16 %v2402
    %v3268 = vunpack.c.l.b16 %v2403
    %v3269 = vunpack.c.l.b16 %v2404
    %v3270 = vunpack.c.l.b16 %v2405
    %v3271 = vunpack.c.l.b16 %v2406
    %v3272 = vunpack.c.l.b16 %v2407
    %v3273 = vunpack.c.l.b16 %v2408
    %v3274 = vunpack.c.l.b16 %v2409
    %v3275 = vpack.c.b16 %v3260, %v3259
    %v3276 = vpack.c.b16 %v3262, %v3261
    %v3277 = vpack.c.b16 %v3264, %v3263
    %v3278 = vpack.c.b16 %v3266, %v3265
    %v3279 = vpack.c.b16 %v3268, %v3267
    %v3280 = vpack.c.b16 %v3270, %v3269
    %v3281 = vpack.c.b16 %v3272, %v3271
    %v3282 = vpack.c.b16 %v3274, %v3273
    %v3291 = vunpack.c.l.b16 %v2439
    %v3292 = vunpack.c.l.b16 %v2453
    %v3293 = vunpack.c.l.b16 %v2467
    %v3294 = vunpack.c.l.b16 %v2481
    %v3295 = vunpack.c.l.b16 %v2495
    %v3296 = vunpack.c.l.b16 %v2509
    %v3297 = vunpack.c.l.b16 %v2523
    %v3298 = vunpack.c.l.b16 %v2537
    %v3299 = vunpack.c.l.b16 %v2551
    %v3300 = vunpack.c.l.b16 %v2565
    %v3301 = vunpack.c.l.b16 %v2579
    %v3302 = vunpack.c.l.b16 %v2593
    %v3303 = vunpack.c.l.b16 %v2607
    %v3304 = vunpack.c.l.b16 %v2621
    %v3305 = vunpack.c.l.b16 %v2635
    %v3306 = vunpack.c.l.b16 %v2649
    %v3307 = vpack.c.b16 %v3292, %v3291
    %v3308 = vpack.c.b16 %v3294, %v3293
    %v3309 = vpack.c.b16 %v3296, %v3295
    %v3310 = vpack.c.b16 %v3298, %v3297
    %v3311 = vpack.c.b16 %v3300, %v3299
    %v3312 = vpack.c.b16 %v3302, %v3301
    %v3313 = vpack.c.b16 %v3304, %v3303
    %v3314 = vpack.c.b16 %v3306, %v3305
    %v3323 = vunpack.c.l.b16 %v2701
    %v3324 = vunpack.c.l.b16 %v2705
    %v3325 = vunpack.c.l.b16 %v2709
    %v3326 = vunpack.c.l.b16 %v2713
    %v3327 = vunpack.c.l.b16 %v2717
    %v3328 = vunpack.c.l.b16 %v2721
    %v3329 = vunpack.c.l.b16 %v2725
    %v3330 = vunpack.c.l.b16 %v2729
    %v3331 = vunpack.c.l.b16 %v2733
    %v3332 = vunpack.c.l.b16 %v2737
    %v3333 = vunpack.c.l.b16 %v2741
    %v3334 = vunpack.c.l.b16 %v2745
    %v3335 = vunpack.c.l.b16 %v2749
    %v3336 = vunpack.c.l.b16 %v2753
    %v3337 = vunpack.c.l.b16 %v2757
    %v3338 = vunpack.c.l.b16 %v2761
    %v3339 = vpack.c.b16 %v3324, %v3323
    %v3340 = vpack.c.b16 %v3326, %v3325
    %v3341 = vpack.c.b16 %v3328, %v3327
    %v3342 = vpack.c.b16 %v3330, %v3329
    %v3343 = vpack.c.b16 %v3332, %v3331
    %v3344 = vpack.c.b16 %v3334, %v3333
    %v3345 = vpack.c.b16 %v3336, %v3335
    %v3346 = vpack.c.b16 %v3338, %v3337
    %v3371 = vunpack.c.l.b16 %v2763
    %v3372 = vunpack.c.l.b16 %v2764
    %v3373 = vunpack.c.l.b16 %v2765
    %v3374 = vunpack.c.l.b16 %v2766
    %v3375 = vunpack.c.l.b16 %v2767
    %v3376 = vunpack.c.l.b16 %v2768
    %v3377 = vunpack.c.l.b16 %v2769
    %v3378 = vunpack.c.l.b16 %v2770
    %v3379 = vunpack.c.l.b16 %v2771
    %v3380 = vunpack.c.l.b16 %v2772
    %v3381 = vunpack.c.l.b16 %v2773
    %v3382 = vunpack.c.l.b16 %v2774
    %v3383 = vunpack.c.l.b16 %v2775
    %v3384 = vunpack.c.l.b16 %v2776
    %v3385 = vunpack.c.l.b16 %v2777
    %v3386 = vunpack.c.l.b16 %v2778
    %v3387 = vpack.c.b16 %v3372, %v3371
    %v3388 = vpack.c.b16 %v3374, %v3373
    %v3389 = vpack.c.b16 %v3376, %v3375
    %v3390 = vpack.c.b16 %v3378, %v3377
    %v3391 = vpack.c.b16 %v3380, %v3379
    %v3392 = vpack.c.b16 %v3382, %v3381
    %v3393 = vpack.c.b16 %v3384, %v3383
    %v3394 = vpack.c.b16 %v3386, %v3385
    %v3403 = vunpack.c.l.b16 %v2808
    %v3404 = vunpack.c.l.b16 %v2822
    %v3405 = vunpack.c.l.b16 %v2836
    %v3406 = vunpack.c.l.b16 %v2850
    %v3407 = vunpack.c.l.b16 %v2864
    %v3408 = vunpack.c.l.b16 %v2878
    %v3409 = vunpack.c.l.b16 %v2892
    %v3410 = vunpack.c.l.b16 %v2906
    %v3411 = vunpack.c.l.b16 %v2920
    %v3412 = vunpack.c.l.b16 %v2934
    %v3413 = vunpack.c.l.b16 %v2948
    %v3414 = vunpack.c.l.b16 %v2962
    %v3415 = vunpack.c.l.b16 %v2976
    %v3416 = vunpack.c.l.b16 %v2990
    %v3417 = vunpack.c.l.b16 %v3004
    %v3418 = vunpack.c.l.b16 %v3018
    %v3419 = vpack.c.b16 %v3404, %v3403
    %v3420 = vpack.c.b16 %v3406, %v3405
    %v3421 = vpack.c.b16 %v3408, %v3407
    %v3422 = vpack.c.b16 %v3410, %v3409
    %v3423 = vpack.c.b16 %v3412, %v3411
    %v3424 = vpack.c.b16 %v3414, %v3413
    %v3425 = vpack.c.b16 %v3416, %v3415
    %v3426 = vpack.c.b16 %v3418, %v3417
    %v3435 = vunpack.c.l.b16 %v3070
    %v3436 = vunpack.c.l.b16 %v3074
    %v3437 = vunpack.c.l.b16 %v3078
    %v3438 = vunpack.c.l.b16 %v3082
    %v3439 = vunpack.c.l.b16 %v3086
    %v3440 = vunpack.c.l.b16 %v3090
    %v3441 = vunpack.c.l.b16 %v3094
    %v3442 = vunpack.c.l.b16 %v3098
    %v3443 = vunpack.c.l.b16 %v3102
    %v3444 = vunpack.c.l.b16 %v3106
    %v3445 = vunpack.c.l.b16 %v3110
    %v3446 = vunpack.c.l.b16 %v3114
    %v3447 = vunpack.c.l.b16 %v3118
    %v3448 = vunpack.c.l.b16 %v3122
    %v3449 = vunpack.c.l.b16 %v3126
    %v3450 = vunpack.c.l.b16 %v3130
    %v3451 = vpack.c.b16 %v3436, %v3435
    %v3452 = vpack.c.b16 %v3438, %v3437
    %v3453 = vpack.c.b16 %v3440, %v3439
    %v3454 = vpack.c.b16 %v3442, %v3441
    %v3455 = vpack.c.b16 %v3444, %v3443
    %v3456 = vpack.c.b16 %v3446, %v3445
    %v3457 = vpack.c.b16 %v3448, %v3447
    %v3458 = vpack.c.b16 %v3450, %v3449
    %v3467 = vld [vmem:[%s3] sm:$0xf]
    %v3468 = vld [vmem:[%s3 + $0x4] sm:$0xf]
    %v3469 = vld [vmem:[%s3 + $0x8] sm:$0xf]
    %v3470 = vld [vmem:[%s3 + $0xc] sm:$0xf]
    %v3471 = vld [vmem:[%s3 + $0x10] sm:$0xf]
    %v3472 = vld [vmem:[%s3 + $0x14] sm:$0xf]
    %v3473 = vld [vmem:[%s3 + $0x18] sm:$0xf]
    %v3474 = vld [vmem:[%s3 + $0x1c] sm:$0xf]
    %v3475 = vld [vmem:[%s3 + $0x20] sm:$0xf]
    %v3476 = vld [vmem:[%s3 + $0x24] sm:$0xf]
    %v3477 = vld [vmem:[%s3 + $0x28] sm:$0xf]
    %v3478 = vld [vmem:[%s3 + $0x2c] sm:$0xf]
    %v3479 = vld [vmem:[%s3 + $0x30] sm:$0xf]
    %v3480 = vld [vmem:[%s3 + $0x34] sm:$0xf]
    %v3481 = vld [vmem:[%s3 + $0x38] sm:$0xf]
    %v3482 = vld [vmem:[%s3 + $0x3c] sm:$0xf]
    %v3483 = vld [vmem:[%s3 + $0x40] sm:$0xf]
    %v3484 = vld [vmem:[%s3 + $0x44] sm:$0xf]
    %v3485 = vld [vmem:[%s3 + $0x48] sm:$0xf]
    %v3486 = vld [vmem:[%s3 + $0x4c] sm:$0xf]
    %v3487 = vld [vmem:[%s3 + $0x50] sm:$0xf]
    %v3488 = vld [vmem:[%s3 + $0x54] sm:$0xf]
    %v3489 = vld [vmem:[%s3 + $0x58] sm:$0xf]
    %v3490 = vld [vmem:[%s3 + $0x5c] sm:$0xf]
    %v3491 = vld [vmem:[%s3 + $0x60] sm:$0xf]
    %v3492 = vld [vmem:[%s3 + $0x64] sm:$0xf]
    %v3493 = vld [vmem:[%s3 + $0x68] sm:$0xf]
    %v3494 = vld [vmem:[%s3 + $0x6c] sm:$0xf]
    %v3495 = vld [vmem:[%s3 + $0x70] sm:$0xf]
    %v3496 = vld [vmem:[%s3 + $0x74] sm:$0xf]
    %v3497 = vld [vmem:[%s3 + $0x78] sm:$0xf]
    %v3498 = vld [vmem:[%s3 + $0x7c] sm:$0xf]
    %v3499 = vld [vmem:[%s3 + $0x80] sm:$0xf]
    %v3500 = vld [vmem:[%s3 + $0x84] sm:$0xf]
    %v3501 = vld [vmem:[%s3 + $0x88] sm:$0xf]
    %v3502 = vld [vmem:[%s3 + $0x8c] sm:$0xf]
    %v3503 = vld [vmem:[%s3 + $0x90] sm:$0xf]
    %v3504 = vld [vmem:[%s3 + $0x94] sm:$0xf]
    %v3505 = vld [vmem:[%s3 + $0x98] sm:$0xf]
    %v3506 = vld [vmem:[%s3 + $0x9c] sm:$0xf]
    %v3507 = vld [vmem:[%s3 + $0xa0] sm:$0xf]
    %v3508 = vld [vmem:[%s3 + $0xa4] sm:$0xf]
    %v3509 = vld [vmem:[%s3 + $0xa8] sm:$0xf]
    %v3510 = vld [vmem:[%s3 + $0xac] sm:$0xf]
    %v3511 = vld [vmem:[%s3 + $0xb0] sm:$0xf]
    %v3512 = vld [vmem:[%s3 + $0xb4] sm:$0xf]
    %v3513 = vld [vmem:[%s3 + $0xb8] sm:$0xf]
    %v3514 = vld [vmem:[%s3 + $0xbc] sm:$0xf]
    %v3515 = vld [vmem:[%s3 + $0xc0] sm:$0xf]
    %v3516 = vld [vmem:[%s3 + $0xc4] sm:$0xf]
    %v3517 = vld [vmem:[%s3 + $0xc8] sm:$0xf]
    %v3518 = vld [vmem:[%s3 + $0xcc] sm:$0xf]
    %v3519 = vld [vmem:[%s3 + $0xd0] sm:$0xf]
    %v3520 = vld [vmem:[%s3 + $0xd4] sm:$0xf]
    %v3521 = vld [vmem:[%s3 + $0xd8] sm:$0xf]
    %v3522 = vld [vmem:[%s3 + $0xdc] sm:$0xf]
    %v3523 = vld [vmem:[%s3 + $0xe0] sm:$0xf]
    %v3524 = vld [vmem:[%s3 + $0xe4] sm:$0xf]
    %v3525 = vld [vmem:[%s3 + $0xe8] sm:$0xf]
    %v3526 = vld [vmem:[%s3 + $0xec] sm:$0xf]
    %v3527 = vld [vmem:[%s3 + $0xf0] sm:$0xf]
    %v3528 = vld [vmem:[%s3 + $0xf4] sm:$0xf]
    %v3529 = vld [vmem:[%s3 + $0xf8] sm:$0xf]
    %v3530 = vld [vmem:[%s3 + $0xfc] sm:$0xf]
    %v3531 = vld [vmem:[%s3 + $0x100] sm:$0xf]
    %v3532 = vld [vmem:[%s3 + $0x104] sm:$0xf]
    %v3533 = vld [vmem:[%s3 + $0x108] sm:$0xf]
    %v3534 = vld [vmem:[%s3 + $0x10c] sm:$0xf]
    %v3535 = vld [vmem:[%s3 + $0x110] sm:$0xf]
    %v3536 = vld [vmem:[%s3 + $0x114] sm:$0xf]
    %v3537 = vld [vmem:[%s3 + $0x118] sm:$0xf]
    %v3538 = vld [vmem:[%s3 + $0x11c] sm:$0xf]
    %v3539 = vld [vmem:[%s3 + $0x120] sm:$0xf]
    %v3540 = vld [vmem:[%s3 + $0x124] sm:$0xf]
    %v3541 = vld [vmem:[%s3 + $0x128] sm:$0xf]
    %v3542 = vld [vmem:[%s3 + $0x12c] sm:$0xf]
    %v3543 = vld [vmem:[%s3 + $0x130] sm:$0xf]
    %v3544 = vld [vmem:[%s3 + $0x134] sm:$0xf]
    %v3545 = vld [vmem:[%s3 + $0x138] sm:$0xf]
    %v3546 = vld [vmem:[%s3 + $0x13c] sm:$0xf]
    %v3547 = vld [vmem:[%s3 + $0x140] sm:$0xf]
    %v3548 = vld [vmem:[%s3 + $0x144] sm:$0xf]
    %v3549 = vld [vmem:[%s3 + $0x148] sm:$0xf]
    %v3550 = vld [vmem:[%s3 + $0x14c] sm:$0xf]
    %v3551 = vld [vmem:[%s3 + $0x150] sm:$0xf]
    %v3552 = vld [vmem:[%s3 + $0x154] sm:$0xf]
    %v3553 = vld [vmem:[%s3 + $0x158] sm:$0xf]
    %v3554 = vld [vmem:[%s3 + $0x15c] sm:$0xf]
    %v3555 = vld [vmem:[%s3 + $0x160] sm:$0xf]
    %v3556 = vld [vmem:[%s3 + $0x164] sm:$0xf]
    %v3557 = vld [vmem:[%s3 + $0x168] sm:$0xf]
    %v3558 = vld [vmem:[%s3 + $0x16c] sm:$0xf]
    %v3559 = vld [vmem:[%s3 + $0x170] sm:$0xf]
    %v3560 = vld [vmem:[%s3 + $0x174] sm:$0xf]
    %v3561 = vld [vmem:[%s3 + $0x178] sm:$0xf]
    %v3562 = vld [vmem:[%s3 + $0x17c] sm:$0xf]
    %v3563 = vld [vmem:[%s3 + $0x180] sm:$0xf]
    %v3564 = vld [vmem:[%s3 + $0x184] sm:$0xf]
    %v3565 = vld [vmem:[%s3 + $0x188] sm:$0xf]
    %v3566 = vld [vmem:[%s3 + $0x18c] sm:$0xf]
    %v3567 = vld [vmem:[%s3 + $0x190] sm:$0xf]
    %v3568 = vld [vmem:[%s3 + $0x194] sm:$0xf]
    %v3569 = vld [vmem:[%s3 + $0x198] sm:$0xf]
    %v3570 = vld [vmem:[%s3 + $0x19c] sm:$0xf]
    %v3571 = vld [vmem:[%s3 + $0x1a0] sm:$0xf]
    %v3572 = vld [vmem:[%s3 + $0x1a4] sm:$0xf]
    %v3573 = vld [vmem:[%s3 + $0x1a8] sm:$0xf]
    %v3574 = vld [vmem:[%s3 + $0x1ac] sm:$0xf]
    %v3575 = vld [vmem:[%s3 + $0x1b0] sm:$0xf]
    %v3576 = vld [vmem:[%s3 + $0x1b4] sm:$0xf]
    %v3577 = vld [vmem:[%s3 + $0x1b8] sm:$0xf]
    %v3578 = vld [vmem:[%s3 + $0x1bc] sm:$0xf]
    %v3579 = vld [vmem:[%s3 + $0x1c0] sm:$0xf]
    %v3580 = vld [vmem:[%s3 + $0x1c4] sm:$0xf]
    %v3581 = vld [vmem:[%s3 + $0x1c8] sm:$0xf]
    %v3582 = vld [vmem:[%s3 + $0x1cc] sm:$0xf]
    %v3583 = vld [vmem:[%s3 + $0x1d0] sm:$0xf]
    %v3584 = vld [vmem:[%s3 + $0x1d4] sm:$0xf]
    %v3585 = vld [vmem:[%s3 + $0x1d8] sm:$0xf]
    %v3586 = vld [vmem:[%s3 + $0x1dc] sm:$0xf]
    %v3587 = vld [vmem:[%s3 + $0x1e0] sm:$0xf]
    %v3588 = vld [vmem:[%s3 + $0x1e4] sm:$0xf]
    %v3589 = vld [vmem:[%s3 + $0x1e8] sm:$0xf]
    %v3590 = vld [vmem:[%s3 + $0x1ec] sm:$0xf]
    %v3591 = vld [vmem:[%s3 + $0x1f0] sm:$0xf]
    %v3592 = vld [vmem:[%s3 + $0x1f4] sm:$0xf]
    %v3593 = vld [vmem:[%s3 + $0x1f8] sm:$0xf]
    %v3594 = vld [vmem:[%s3 + $0x1fc] sm:$0xf]
    %v3595 = vld [vmem:[%s3 + $0x200] sm:$0xf]
    %v3596 = vld [vmem:[%s3 + $0x204] sm:$0xf]
    %v3597 = vld [vmem:[%s3 + $0x208] sm:$0xf]
    %v3598 = vld [vmem:[%s3 + $0x20c] sm:$0xf]
    %v3599 = vld [vmem:[%s3 + $0x210] sm:$0xf]
    %v3600 = vld [vmem:[%s3 + $0x214] sm:$0xf]
    %v3601 = vld [vmem:[%s3 + $0x218] sm:$0xf]
    %v3602 = vld [vmem:[%s3 + $0x21c] sm:$0xf]
    %v3603 = vld [vmem:[%s3 + $0x220] sm:$0xf]
    %v3604 = vld [vmem:[%s3 + $0x224] sm:$0xf]
    %v3605 = vld [vmem:[%s3 + $0x228] sm:$0xf]
    %v3606 = vld [vmem:[%s3 + $0x22c] sm:$0xf]
    %v3607 = vld [vmem:[%s3 + $0x230] sm:$0xf]
    %v3608 = vld [vmem:[%s3 + $0x234] sm:$0xf]
    %v3609 = vld [vmem:[%s3 + $0x238] sm:$0xf]
    %v3610 = vld [vmem:[%s3 + $0x23c] sm:$0xf]
    %v3611 = vld [vmem:[%s4] sm:$0x1]
    %v3613 = vlaneseq
    %v3614 = vshrl.u32 %v3613, 7
    %v3615 = vsub.s32 0, %v3614
    %v3616 = vrot.slane %v3611, %v3615
    %v3762 = vunpack.c.l.b16 %v3467
    %v3763 = vunpack.c.l.b16 %v3468
    %v3764 = vunpack.c.l.b16 %v3469
    %v3765 = vunpack.c.l.b16 %v3470
    %v3766 = vunpack.c.l.b16 %v3471
    %v3767 = vunpack.c.l.b16 %v3472
    %v3768 = vunpack.c.l.b16 %v3473
    %v3769 = vunpack.c.l.b16 %v3474
    %v3770 = vunpack.c.l.b16 %v3475
    %v3771 = vunpack.c.l.b16 %v3476
    %v3772 = vunpack.c.l.b16 %v3477
    %v3773 = vunpack.c.l.b16 %v3478
    %v3774 = vunpack.c.l.b16 %v3479
    %v3775 = vunpack.c.l.b16 %v3480
    %v3776 = vunpack.c.l.b16 %v3481
    %v3777 = vunpack.c.l.b16 %v3482
    %v3778 = vunpack.c.l.b16 %v3483
    %v3779 = vunpack.c.l.b16 %v3484
    %v3780 = vunpack.c.l.b16 %v3485
    %v3781 = vunpack.c.l.b16 %v3486
    %v3782 = vunpack.c.l.b16 %v3487
    %v3783 = vunpack.c.l.b16 %v3488
    %v3784 = vunpack.c.l.b16 %v3489
    %v3785 = vunpack.c.l.b16 %v3490
    %v3786 = vunpack.c.l.b16 %v3491
    %v3787 = vunpack.c.l.b16 %v3492
    %v3788 = vunpack.c.l.b16 %v3493
    %v3789 = vunpack.c.l.b16 %v3494
    %v3790 = vunpack.c.l.b16 %v3495
    %v3791 = vunpack.c.l.b16 %v3496
    %v3792 = vunpack.c.l.b16 %v3497
    %v3793 = vunpack.c.l.b16 %v3498
    %v3794 = vunpack.c.l.b16 %v3499
    %v3795 = vunpack.c.l.b16 %v3500
    %v3796 = vunpack.c.l.b16 %v3501
    %v3797 = vunpack.c.l.b16 %v3502
    %v3798 = vunpack.c.l.b16 %v3503
    %v3799 = vunpack.c.l.b16 %v3504
    %v3800 = vunpack.c.l.b16 %v3505
    %v3801 = vunpack.c.l.b16 %v3506
    %v3802 = vunpack.c.l.b16 %v3507
    %v3803 = vunpack.c.l.b16 %v3508
    %v3804 = vunpack.c.l.b16 %v3509
    %v3805 = vunpack.c.l.b16 %v3510
    %v3806 = vunpack.c.l.b16 %v3511
    %v3807 = vunpack.c.l.b16 %v3512
    %v3808 = vunpack.c.l.b16 %v3513
    %v3809 = vunpack.c.l.b16 %v3514
    %v3810 = vunpack.c.l.b16 %v3515
    %v3811 = vunpack.c.l.b16 %v3516
    %v3812 = vunpack.c.l.b16 %v3517
    %v3813 = vunpack.c.l.b16 %v3518
    %v3814 = vunpack.c.l.b16 %v3519
    %v3815 = vunpack.c.l.b16 %v3520
    %v3816 = vunpack.c.l.b16 %v3521
    %v3817 = vunpack.c.l.b16 %v3522
    %v3818 = vunpack.c.l.b16 %v3523
    %v3819 = vunpack.c.l.b16 %v3524
    %v3820 = vunpack.c.l.b16 %v3525
    %v3821 = vunpack.c.l.b16 %v3526
    %v3822 = vunpack.c.l.b16 %v3527
    %v3823 = vunpack.c.l.b16 %v3528
    %v3824 = vunpack.c.l.b16 %v3529
    %v3825 = vunpack.c.l.b16 %v3530
    %v3826 = vunpack.c.l.b16 %v3531
    %v3827 = vunpack.c.l.b16 %v3532
    %v3828 = vunpack.c.l.b16 %v3533
    %v3829 = vunpack.c.l.b16 %v3534
    %v3830 = vunpack.c.l.b16 %v3535
    %v3831 = vunpack.c.l.b16 %v3536
    %v3832 = vunpack.c.l.b16 %v3537
    %v3833 = vunpack.c.l.b16 %v3538
    %v3834 = vunpack.c.l.b16 %v3539
    %v3835 = vunpack.c.l.b16 %v3540
    %v3836 = vunpack.c.l.b16 %v3541
    %v3837 = vunpack.c.l.b16 %v3542
    %v3838 = vunpack.c.l.b16 %v3543
    %v3839 = vunpack.c.l.b16 %v3544
    %v3840 = vunpack.c.l.b16 %v3545
    %v3841 = vunpack.c.l.b16 %v3546
    %v3842 = vunpack.c.l.b16 %v3547
    %v3843 = vunpack.c.l.b16 %v3548
    %v3844 = vunpack.c.l.b16 %v3549
    %v3845 = vunpack.c.l.b16 %v3550
    %v3846 = vunpack.c.l.b16 %v3551
    %v3847 = vunpack.c.l.b16 %v3552
    %v3848 = vunpack.c.l.b16 %v3553
    %v3849 = vunpack.c.l.b16 %v3554
    %v3850 = vunpack.c.l.b16 %v3555
    %v3851 = vunpack.c.l.b16 %v3556
    %v3852 = vunpack.c.l.b16 %v3557
    %v3853 = vunpack.c.l.b16 %v3558
    %v3854 = vunpack.c.l.b16 %v3559
    %v3855 = vunpack.c.l.b16 %v3560
    %v3856 = vunpack.c.l.b16 %v3561
    %v3857 = vunpack.c.l.b16 %v3562
    %v3858 = vunpack.c.l.b16 %v3563
    %v3859 = vunpack.c.l.b16 %v3564
    %v3860 = vunpack.c.l.b16 %v3565
    %v3861 = vunpack.c.l.b16 %v3566
    %v3862 = vunpack.c.l.b16 %v3567
    %v3863 = vunpack.c.l.b16 %v3568
    %v3864 = vunpack.c.l.b16 %v3569
    %v3865 = vunpack.c.l.b16 %v3570
    %v3866 = vunpack.c.l.b16 %v3571
    %v3867 = vunpack.c.l.b16 %v3572
    %v3868 = vunpack.c.l.b16 %v3573
    %v3869 = vunpack.c.l.b16 %v3574
    %v3870 = vunpack.c.l.b16 %v3575
    %v3871 = vunpack.c.l.b16 %v3576
    %v3872 = vunpack.c.l.b16 %v3577
    %v3873 = vunpack.c.l.b16 %v3578
    %v3874 = vunpack.c.l.b16 %v3579
    %v3875 = vunpack.c.l.b16 %v3580
    %v3876 = vunpack.c.l.b16 %v3581
    %v3877 = vunpack.c.l.b16 %v3582
    %v3878 = vunpack.c.l.b16 %v3583
    %v3879 = vunpack.c.l.b16 %v3584
    %v3880 = vunpack.c.l.b16 %v3585
    %v3881 = vunpack.c.l.b16 %v3586
    %v3882 = vunpack.c.l.b16 %v3587
    %v3883 = vunpack.c.l.b16 %v3588
    %v3884 = vunpack.c.l.b16 %v3589
    %v3885 = vunpack.c.l.b16 %v3590
    %v3886 = vunpack.c.l.b16 %v3591
    %v3887 = vunpack.c.l.b16 %v3592
    %v3888 = vunpack.c.l.b16 %v3593
    %v3889 = vunpack.c.l.b16 %v3594
    %v3890 = vunpack.c.l.b16 %v3595
    %v3891 = vunpack.c.l.b16 %v3596
    %v3892 = vunpack.c.l.b16 %v3597
    %v3893 = vunpack.c.l.b16 %v3598
    %v3894 = vunpack.c.l.b16 %v3599
    %v3895 = vunpack.c.l.b16 %v3600
    %v3896 = vunpack.c.l.b16 %v3601
    %v3897 = vunpack.c.l.b16 %v3602
    %v3898 = vunpack.c.l.b16 %v3603
    %v3899 = vunpack.c.l.b16 %v3604
    %v3900 = vunpack.c.l.b16 %v3605
    %v3901 = vunpack.c.l.b16 %v3606
    %v3902 = vunpack.c.l.b16 %v3607
    %v3903 = vunpack.c.l.b16 %v3608
    %v3904 = vunpack.c.l.b16 %v3609
    %v3905 = vunpack.c.l.b16 %v3610
    %v3906 = vpack.c.b16 %v3763, %v3762
    %v3907 = vpack.c.b16 %v3765, %v3764
    %v3908 = vpack.c.b16 %v3767, %v3766
    %v3909 = vpack.c.b16 %v3769, %v3768
    %v3910 = vpack.c.b16 %v3771, %v3770
    %v3911 = vpack.c.b16 %v3773, %v3772
    %v3912 = vpack.c.b16 %v3775, %v3774
    %v3913 = vpack.c.b16 %v3777, %v3776
    %v3914 = vpack.c.b16 %v3779, %v3778
    %v3915 = vpack.c.b16 %v3781, %v3780
    %v3916 = vpack.c.b16 %v3783, %v3782
    %v3917 = vpack.c.b16 %v3785, %v3784
    %v3918 = vpack.c.b16 %v3787, %v3786
    %v3919 = vpack.c.b16 %v3789, %v3788
    %v3920 = vpack.c.b16 %v3791, %v3790
    %v3921 = vpack.c.b16 %v3793, %v3792
    %v3922 = vpack.c.b16 %v3795, %v3794
    %v3923 = vpack.c.b16 %v3797, %v3796
    %v3924 = vpack.c.b16 %v3799, %v3798
    %v3925 = vpack.c.b16 %v3801, %v3800
    %v3926 = vpack.c.b16 %v3803, %v3802
    %v3927 = vpack.c.b16 %v3805, %v3804
    %v3928 = vpack.c.b16 %v3807, %v3806
    %v3929 = vpack.c.b16 %v3809, %v3808
    %v3930 = vpack.c.b16 %v3811, %v3810
    %v3931 = vpack.c.b16 %v3813, %v3812
    %v3932 = vpack.c.b16 %v3815, %v3814
    %v3933 = vpack.c.b16 %v3817, %v3816
    %v3934 = vpack.c.b16 %v3819, %v3818
    %v3935 = vpack.c.b16 %v3821, %v3820
    %v3936 = vpack.c.b16 %v3823, %v3822
    %v3937 = vpack.c.b16 %v3825, %v3824
    %v3938 = vpack.c.b16 %v3827, %v3826
    %v3939 = vpack.c.b16 %v3829, %v3828
    %v3940 = vpack.c.b16 %v3831, %v3830
    %v3941 = vpack.c.b16 %v3833, %v3832
    %v3942 = vpack.c.b16 %v3835, %v3834
    %v3943 = vpack.c.b16 %v3837, %v3836
    %v3944 = vpack.c.b16 %v3839, %v3838
    %v3945 = vpack.c.b16 %v3841, %v3840
    %v3946 = vpack.c.b16 %v3843, %v3842
    %v3947 = vpack.c.b16 %v3845, %v3844
    %v3948 = vpack.c.b16 %v3847, %v3846
    %v3949 = vpack.c.b16 %v3849, %v3848
    %v3950 = vpack.c.b16 %v3851, %v3850
    %v3951 = vpack.c.b16 %v3853, %v3852
    %v3952 = vpack.c.b16 %v3855, %v3854
    %v3953 = vpack.c.b16 %v3857, %v3856
    %v3954 = vpack.c.b16 %v3859, %v3858
    %v3955 = vpack.c.b16 %v3861, %v3860
    %v3956 = vpack.c.b16 %v3863, %v3862
    %v3957 = vpack.c.b16 %v3865, %v3864
    %v3958 = vpack.c.b16 %v3867, %v3866
    %v3959 = vpack.c.b16 %v3869, %v3868
    %v3960 = vpack.c.b16 %v3871, %v3870
    %v3961 = vpack.c.b16 %v3873, %v3872
    %v3962 = vpack.c.b16 %v3875, %v3874
    %v3963 = vpack.c.b16 %v3877, %v3876
    %v3964 = vpack.c.b16 %v3879, %v3878
    %v3965 = vpack.c.b16 %v3881, %v3880
    %v3966 = vpack.c.b16 %v3883, %v3882
    %v3967 = vpack.c.b16 %v3885, %v3884
    %v3968 = vpack.c.b16 %v3887, %v3886
    %v3969 = vpack.c.b16 %v3889, %v3888
    %v3970 = vpack.c.b16 %v3891, %v3890
    %v3971 = vpack.c.b16 %v3893, %v3892
    %v3972 = vpack.c.b16 %v3895, %v3894
    %v3973 = vpack.c.b16 %v3897, %v3896
    %v3974 = vpack.c.b16 %v3899, %v3898
    %v3975 = vpack.c.b16 %v3901, %v3900
    %v3976 = vpack.c.b16 %v3903, %v3902
    %v3977 = vpack.c.b16 %v3905, %v3904
    %4050 = vmatprep.subr.bf16.mxu0 0
    %4051 = vmatpush1.bf16.msra.mxu0 %v3913
    %4052 = vmatprep.subr.bf16.mxu0 0
    %4053 = vmatpush1.bf16.msra.mxu0 %v3912
    %4054 = vmatprep.subr.bf16.mxu0 0
    %4055 = vmatpush1.bf16.msra.mxu0 %v3911
    %4056 = vmatprep.subr.bf16.mxu0 0
    %4057 = vmatpush1.bf16.msra.mxu0 %v3910
    %4058 = vmatprep.subr.bf16.mxu0 0
    %4059 = vmatpush1.bf16.msra.mxu0 %v3909
    %4060 = vmatprep.subr.bf16.mxu0 0
    %4061 = vmatpush1.bf16.msra.mxu0 %v3908
    %4062 = vmatprep.subr.bf16.mxu0 0
    %4063 = vmatpush1.bf16.msra.mxu0 %v3907
    %4064 = vmatprep.subr.bf16.mxu0 0
    %4065 = vmatpush1.bf16.msra.mxu0 %v3906
    %4066 = vmatprep.subr.bf16.mxu0 0
    %4067 = vmatpush2.bf16.msra.mxu0 %v3921
    %4068 = vmatprep.subr.bf16.mxu0 0
    %4069 = vmatpush2.bf16.msra.mxu0 %v3920
    %4070 = vmatprep.subr.bf16.mxu0 0
    %4071 = vmatpush2.bf16.msra.mxu0 %v3919
    %4072 = vmatprep.subr.bf16.mxu0 0
    %4073 = vmatpush2.bf16.msra.mxu0 %v3918
    %4074 = vmatprep.subr.bf16.mxu0 0
    %4075 = vmatpush2.bf16.msra.mxu0 %v3917
    %4076 = vmatprep.subr.bf16.mxu0 0
    %4077 = vmatpush2.bf16.msra.mxu0 %v3916
    %4078 = vmatprep.subr.bf16.mxu0 0
    %4079 = vmatpush2.bf16.msra.mxu0 %v3915
    %4080 = vmatprep.subr.bf16.mxu0 0
    %4081 = vmatpush2.bf16.msra.mxu0 %v3914
    %4082 = vmatprep.mubr.bf16.mxu0 %v3195
    %4083 = vmatmul.mubr.bf16.gmra.mxu0 %v3163
    %v4084 = vpop.f32.mrf.mxu0
    %v4085 = vadd.f32 %v3616, %v4084
    %v4086 = vpop.f32.mrf.mxu0
    %v4087 = vpop.f32.mrf.mxu0
    %v4088 = vadd.f32 %v3616, %v4087
    %v4089 = vpop.f32.mrf.mxu0
    %4090 = vmatprep.mubr.bf16.mxu0 %v3196
    %4091 = vmatmul.mubr.bf16.gmra.mxu0 %v3164
    %v4092 = vpop.f32.mrf.mxu0
    %v4093 = vadd.f32 %v3616, %v4092
    %v4094 = vpop.f32.mrf.mxu0
    %v4095 = vpop.f32.mrf.mxu0
    %v4096 = vadd.f32 %v3616, %v4095
    %v4097 = vpop.f32.mrf.mxu0
    %4098 = vmatprep.mubr.bf16.mxu0 %v3197
    %4099 = vmatmul.mubr.bf16.gmra.mxu0 %v3165
    %v4100 = vpop.f32.mrf.mxu0
    %v4101 = vadd.f32 %v3616, %v4100
    %v4102 = vpop.f32.mrf.mxu0
    %v4103 = vpop.f32.mrf.mxu0
    %v4104 = vadd.f32 %v3616, %v4103
    %v4105 = vpop.f32.mrf.mxu0
    %4106 = vmatprep.mubr.bf16.mxu0 %v3198
    %4107 = vmatmul.mubr.bf16.gmra.mxu0 %v3166
    %v4108 = vpop.f32.mrf.mxu0
    %v4109 = vadd.f32 %v3616, %v4108
    %v4110 = vpop.f32.mrf.mxu0
    %v4111 = vpop.f32.mrf.mxu0
    %v4112 = vadd.f32 %v3616, %v4111
    %v4113 = vpop.f32.mrf.mxu0
    %4114 = vmatprep.mubr.bf16.mxu0 %v3199
    %4115 = vmatmul.mubr.bf16.gmra.mxu0 %v3167
    %v4116 = vpop.f32.mrf.mxu0
    %v4117 = vadd.f32 %v3616, %v4116
    %v4118 = vpop.f32.mrf.mxu0
    %v4119 = vpop.f32.mrf.mxu0
    %v4120 = vadd.f32 %v3616, %v4119
    %v4121 = vpop.f32.mrf.mxu0
    %4122 = vmatprep.mubr.bf16.mxu0 %v3200
    %4123 = vmatmul.mubr.bf16.gmra.mxu0 %v3168
    %v4124 = vpop.f32.mrf.mxu0
    %v4125 = vadd.f32 %v3616, %v4124
    %v4126 = vpop.f32.mrf.mxu0
    %v4127 = vpop.f32.mrf.mxu0
    %v4128 = vadd.f32 %v3616, %v4127
    %v4129 = vpop.f32.mrf.mxu0
    %4130 = vmatprep.mubr.bf16.mxu0 %v3201
    %4131 = vmatmul.mubr.bf16.gmra.mxu0 %v3169
    %v4132 = vpop.f32.mrf.mxu0
    %v4133 = vadd.f32 %v3616, %v4132
    %v4134 = vpop.f32.mrf.mxu0
    %v4135 = vpop.f32.mrf.mxu0
    %v4136 = vadd.f32 %v3616, %v4135
    %v4137 = vpop.f32.mrf.mxu0
    %4138 = vmatprep.mubr.bf16.mxu0 %v3202
    %4139 = vmatmul.mubr.bf16.gmra.mxu0 %v3170
    %v4140 = vpop.f32.mrf.mxu0
    %v4141 = vadd.f32 %v3616, %v4140
    %v4142 = vpop.f32.mrf.mxu0
    %v4143 = vpop.f32.mrf.mxu0
    %v4144 = vadd.f32 %v3616, %v4143
    %v4145 = vpop.f32.mrf.mxu0
    %4146 = vdwg.mxu0
    %4147 = vmatprep.subr.bf16.mxu0 0
    %4148 = vmatpush1.bf16.msra.mxu0 %v3929
    %4149 = vmatprep.subr.bf16.mxu0 0
    %4150 = vmatpush1.bf16.msra.mxu0 %v3928
    %4151 = vmatprep.subr.bf16.mxu0 0
    %4152 = vmatpush1.bf16.msra.mxu0 %v3927
    %4153 = vmatprep.subr.bf16.mxu0 0
    %4154 = vmatpush1.bf16.msra.mxu0 %v3926
    %4155 = vmatprep.subr.bf16.mxu0 0
    %4156 = vmatpush1.bf16.msra.mxu0 %v3925
    %4157 = vmatprep.subr.bf16.mxu0 0
    %4158 = vmatpush1.bf16.msra.mxu0 %v3924
    %4159 = vmatprep.subr.bf16.mxu0 0
    %4160 = vmatpush1.bf16.msra.mxu0 %v3923
    %4161 = vmatprep.subr.bf16.mxu0 0
    %4162 = vmatpush1.bf16.msra.mxu0 %v3922
    %4163 = vmatprep.subr.bf16.mxu0 0
    %4164 = vmatpush2.bf16.msra.mxu0 %v3937
    %4165 = vmatprep.subr.bf16.mxu0 0
    %4166 = vmatpush2.bf16.msra.mxu0 %v3936
    %4167 = vmatprep.subr.bf16.mxu0 0
    %4168 = vmatpush2.bf16.msra.mxu0 %v3935
    %4169 = vmatprep.subr.bf16.mxu0 0
    %4170 = vmatpush2.bf16.msra.mxu0 %v3934
    %4171 = vmatprep.subr.bf16.mxu0 0
    %4172 = vmatpush2.bf16.msra.mxu0 %v3933
    %4173 = vmatprep.subr.bf16.mxu0 0
    %4174 = vmatpush2.bf16.msra.mxu0 %v3932
    %4175 = vmatprep.subr.bf16.mxu0 0
    %4176 = vmatpush2.bf16.msra.mxu0 %v3931
    %4177 = vmatprep.subr.bf16.mxu0 0
    %4178 = vmatpush2.bf16.msra.mxu0 %v3930
    %4179 = vmatprep.mubr.bf16.mxu0 %v3275
    %4180 = vmatmul.mubr.bf16.gmra.mxu0 %v3227
    %v4181 = vpop.f32.mrf.mxu0
    %v4182 = vadd.f32 %v4085, %v4181
    %v4183 = vpop.f32.mrf.mxu0
    %v4184 = vpop.f32.mrf.mxu0
    %v4185 = vadd.f32 %v4088, %v4184
    %v4186 = vpop.f32.mrf.mxu0
    %4187 = vmatprep.mubr.bf16.mxu0 %v3276
    %4188 = vmatmul.mubr.bf16.gmra.mxu0 %v3228
    %v4189 = vpop.f32.mrf.mxu0
    %v4190 = vadd.f32 %v4093, %v4189
    %v4191 = vpop.f32.mrf.mxu0
    %v4192 = vpop.f32.mrf.mxu0
    %v4193 = vadd.f32 %v4096, %v4192
    %v4194 = vpop.f32.mrf.mxu0
    %4195 = vmatprep.mubr.bf16.mxu0 %v3277
    %4196 = vmatmul.mubr.bf16.gmra.mxu0 %v3229
    %v4197 = vpop.f32.mrf.mxu0
    %v4198 = vadd.f32 %v4101, %v4197
    %v4199 = vpop.f32.mrf.mxu0
    %v4200 = vpop.f32.mrf.mxu0
    %v4201 = vadd.f32 %v4104, %v4200
    %v4202 = vpop.f32.mrf.mxu0
    %4203 = vmatprep.mubr.bf16.mxu0 %v3278
    %4204 = vmatmul.mubr.bf16.gmra.mxu0 %v3230
    %v4205 = vpop.f32.mrf.mxu0
    %v4206 = vadd.f32 %v4109, %v4205
    %v4207 = vpop.f32.mrf.mxu0
    %v4208 = vpop.f32.mrf.mxu0
    %v4209 = vadd.f32 %v4112, %v4208
    %v4210 = vpop.f32.mrf.mxu0
    %4211 = vmatprep.mubr.bf16.mxu0 %v3279
    %4212 = vmatmul.mubr.bf16.gmra.mxu0 %v3231
    %v4213 = vpop.f32.mrf.mxu0
    %v4214 = vadd.f32 %v4117, %v4213
    %v4215 = vpop.f32.mrf.mxu0
    %v4216 = vpop.f32.mrf.mxu0
    %v4217 = vadd.f32 %v4120, %v4216
    %v4218 = vpop.f32.mrf.mxu0
    %4219 = vmatprep.mubr.bf16.mxu0 %v3280
    %4220 = vmatmul.mubr.bf16.gmra.mxu0 %v3232
    %v4221 = vpop.f32.mrf.mxu0
    %v4222 = vadd.f32 %v4125, %v4221
    %v4223 = vpop.f32.mrf.mxu0
    %v4224 = vpop.f32.mrf.mxu0
    %v4225 = vadd.f32 %v4128, %v4224
    %v4226 = vpop.f32.mrf.mxu0
    %4227 = vmatprep.mubr.bf16.mxu0 %v3281
    %4228 = vmatmul.mubr.bf16.gmra.mxu0 %v3233
    %v4229 = vpop.f32.mrf.mxu0
    %v4230 = vadd.f32 %v4133, %v4229
    %v4231 = vpop.f32.mrf.mxu0
    %v4232 = vpop.f32.mrf.mxu0
    %v4233 = vadd.f32 %v4136, %v4232
    %v4234 = vpop.f32.mrf.mxu0
    %4235 = vmatprep.mubr.bf16.mxu0 %v3282
    %4236 = vmatmul.mubr.bf16.gmra.mxu0 %v3234
    %v4237 = vpop.f32.mrf.mxu0
    %v4238 = vadd.f32 %v4141, %v4237
    %v4239 = vpop.f32.mrf.mxu0
    %v4240 = vpop.f32.mrf.mxu0
    %v4241 = vadd.f32 %v4144, %v4240
    %v4242 = vpop.f32.mrf.mxu0
    %4243 = vdwg.mxu0
    %4244 = vmatprep.subr.bf16.mxu0 0
    %4245 = vmatpush1.bf16.msra.mxu0 %v3945
    %4246 = vmatprep.subr.bf16.mxu0 0
    %4247 = vmatpush1.bf16.msra.mxu0 %v3944
    %4248 = vmatprep.subr.bf16.mxu0 0
    %4249 = vmatpush1.bf16.msra.mxu0 %v3943
    %4250 = vmatprep.subr.bf16.mxu0 0
    %4251 = vmatpush1.bf16.msra.mxu0 %v3942
    %4252 = vmatprep.subr.bf16.mxu0 0
    %4253 = vmatpush1.bf16.msra.mxu0 %v3941
    %4254 = vmatprep.subr.bf16.mxu0 0
    %4255 = vmatpush1.bf16.msra.mxu0 %v3940
    %4256 = vmatprep.subr.bf16.mxu0 0
    %4257 = vmatpush1.bf16.msra.mxu0 %v3939
    %4258 = vmatprep.subr.bf16.mxu0 0
    %4259 = vmatpush1.bf16.msra.mxu0 %v3938
    %4260 = vmatprep.subr.bf16.mxu0 0
    %4261 = vmatpush2.bf16.msra.mxu0 %v3953
    %4262 = vmatprep.subr.bf16.mxu0 0
    %4263 = vmatpush2.bf16.msra.mxu0 %v3952
    %4264 = vmatprep.subr.bf16.mxu0 0
    %4265 = vmatpush2.bf16.msra.mxu0 %v3951
    %4266 = vmatprep.subr.bf16.mxu0 0
    %4267 = vmatpush2.bf16.msra.mxu0 %v3950
    %4268 = vmatprep.subr.bf16.mxu0 0
    %4269 = vmatpush2.bf16.msra.mxu0 %v3949
    %4270 = vmatprep.subr.bf16.mxu0 0
    %4271 = vmatpush2.bf16.msra.mxu0 %v3948
    %4272 = vmatprep.subr.bf16.mxu0 0
    %4273 = vmatpush2.bf16.msra.mxu0 %v3947
    %4274 = vmatprep.subr.bf16.mxu0 0
    %4275 = vmatpush2.bf16.msra.mxu0 %v3946
    %4276 = vmatprep.mubr.bf16.mxu0 %v3339
    %4277 = vmatmul.mubr.bf16.gmra.mxu0 %v3307
    %v4278 = vpop.f32.mrf.mxu0
    %v4279 = vadd.f32 %v4182, %v4278
    %v4280 = vpop.f32.mrf.mxu0
    %v4281 = vpop.f32.mrf.mxu0
    %v4282 = vadd.f32 %v4185, %v4281
    %v4283 = vpop.f32.mrf.mxu0
    %4284 = vmatprep.mubr.bf16.mxu0 %v3340
    %4285 = vmatmul.mubr.bf16.gmra.mxu0 %v3308
    %v4286 = vpop.f32.mrf.mxu0
    %v4287 = vadd.f32 %v4190, %v4286
    %v4288 = vpop.f32.mrf.mxu0
    %v4289 = vpop.f32.mrf.mxu0
    %v4290 = vadd.f32 %v4193, %v4289
    %v4291 = vpop.f32.mrf.mxu0
    %4292 = vmatprep.mubr.bf16.mxu0 %v3341
    %4293 = vmatmul.mubr.bf16.gmra.mxu0 %v3309
    %v4294 = vpop.f32.mrf.mxu0
    %v4295 = vadd.f32 %v4198, %v4294
    %v4296 = vpop.f32.mrf.mxu0
    %v4297 = vpop.f32.mrf.mxu0
    %v4298 = vadd.f32 %v4201, %v4297
    %v4299 = vpop.f32.mrf.mxu0
    %4300 = vmatprep.mubr.bf16.mxu0 %v3342
    %4301 = vmatmul.mubr.bf16.gmra.mxu0 %v3310
    %v4302 = vpop.f32.mrf.mxu0
    %v4303 = vadd.f32 %v4206, %v4302
    %v4304 = vpop.f32.mrf.mxu0
    %v4305 = vpop.f32.mrf.mxu0
    %v4306 = vadd.f32 %v4209, %v4305
    %v4307 = vpop.f32.mrf.mxu0
    %4308 = vmatprep.mubr.bf16.mxu0 %v3343
    %4309 = vmatmul.mubr.bf16.gmra.mxu0 %v3311
    %v4310 = vpop.f32.mrf.mxu0
    %v4311 = vadd.f32 %v4214, %v4310
    %v4312 = vpop.f32.mrf.mxu0
    %v4313 = vpop.f32.mrf.mxu0
    %v4314 = vadd.f32 %v4217, %v4313
    %v4315 = vpop.f32.mrf.mxu0
    %4316 = vmatprep.mubr.bf16.mxu0 %v3344
    %4317 = vmatmul.mubr.bf16.gmra.mxu0 %v3312
    %v4318 = vpop.f32.mrf.mxu0
    %v4319 = vadd.f32 %v4222, %v4318
    %v4320 = vpop.f32.mrf.mxu0
    %v4321 = vpop.f32.mrf.mxu0
    %v4322 = vadd.f32 %v4225, %v4321
    %v4323 = vpop.f32.mrf.mxu0
    %4324 = vmatprep.mubr.bf16.mxu0 %v3345
    %4325 = vmatmul.mubr.bf16.gmra.mxu0 %v3313
    %v4326 = vpop.f32.mrf.mxu0
    %v4327 = vadd.f32 %v4230, %v4326
    %v4328 = vpop.f32.mrf.mxu0
    %v4329 = vpop.f32.mrf.mxu0
    %v4330 = vadd.f32 %v4233, %v4329
    %v4331 = vpop.f32.mrf.mxu0
    %4332 = vmatprep.mubr.bf16.mxu0 %v3346
    %4333 = vmatmul.mubr.bf16.gmra.mxu0 %v3314
    %v4334 = vpop.f32.mrf.mxu0
    %v4335 = vadd.f32 %v4238, %v4334
    %v4336 = vpop.f32.mrf.mxu0
    %v4337 = vpop.f32.mrf.mxu0
    %v4338 = vadd.f32 %v4241, %v4337
    %v4339 = vpop.f32.mrf.mxu0
    %4340 = vdwg.mxu0
    %4341 = vmatprep.subr.bf16.mxu0 0
    %4342 = vmatpush1.bf16.msra.mxu0 %v3961
    %4343 = vmatprep.subr.bf16.mxu0 0
    %4344 = vmatpush1.bf16.msra.mxu0 %v3960
    %4345 = vmatprep.subr.bf16.mxu0 0
    %4346 = vmatpush1.bf16.msra.mxu0 %v3959
    %4347 = vmatprep.subr.bf16.mxu0 0
    %4348 = vmatpush1.bf16.msra.mxu0 %v3958
    %4349 = vmatprep.subr.bf16.mxu0 0
    %4350 = vmatpush1.bf16.msra.mxu0 %v3957
    %4351 = vmatprep.subr.bf16.mxu0 0
    %4352 = vmatpush1.bf16.msra.mxu0 %v3956
    %4353 = vmatprep.subr.bf16.mxu0 0
    %4354 = vmatpush1.bf16.msra.mxu0 %v3955
    %4355 = vmatprep.subr.bf16.mxu0 0
    %4356 = vmatpush1.bf16.msra.mxu0 %v3954
    %4357 = vmatprep.subr.bf16.mxu0 0
    %4358 = vmatpush2.bf16.msra.mxu0 %v3969
    %4359 = vmatprep.subr.bf16.mxu0 0
    %4360 = vmatpush2.bf16.msra.mxu0 %v3968
    %4361 = vmatprep.subr.bf16.mxu0 0
    %4362 = vmatpush2.bf16.msra.mxu0 %v3967
    %4363 = vmatprep.subr.bf16.mxu0 0
    %4364 = vmatpush2.bf16.msra.mxu0 %v3966
    %4365 = vmatprep.subr.bf16.mxu0 0
    %4366 = vmatpush2.bf16.msra.mxu0 %v3965
    %4367 = vmatprep.subr.bf16.mxu0 0
    %4368 = vmatpush2.bf16.msra.mxu0 %v3964
    %4369 = vmatprep.subr.bf16.mxu0 0
    %4370 = vmatpush2.bf16.msra.mxu0 %v3963
    %4371 = vmatprep.subr.bf16.mxu0 0
    %4372 = vmatpush2.bf16.msra.mxu0 %v3962
    %4373 = vmatprep.mubr.bf16.mxu0 %v3419
    %4374 = vmatmul.mubr.bf16.gmra.mxu0 %v3387
    %v4375 = vpop.f32.mrf.mxu0
    %v4376 = vadd.f32 %v4279, %v4375
    %v4377 = vpop.f32.mrf.mxu0
    %v4378 = vpop.f32.mrf.mxu0
    %v4379 = vadd.f32 %v4282, %v4378
    %v4380 = vpop.f32.mrf.mxu0
    %4381 = vmatprep.mubr.bf16.mxu0 %v3420
    %4382 = vmatmul.mubr.bf16.gmra.mxu0 %v3388
    %v4383 = vpop.f32.mrf.mxu0
    %v4384 = vadd.f32 %v4287, %v4383
    %v4385 = vpop.f32.mrf.mxu0
    %v4386 = vpop.f32.mrf.mxu0
    %v4387 = vadd.f32 %v4290, %v4386
    %v4388 = vpop.f32.mrf.mxu0
    %4389 = vmatprep.mubr.bf16.mxu0 %v3421
    %4390 = vmatmul.mubr.bf16.gmra.mxu0 %v3389
    %v4391 = vpop.f32.mrf.mxu0
    %v4392 = vadd.f32 %v4295, %v4391
    %v4393 = vpop.f32.mrf.mxu0
    %v4394 = vpop.f32.mrf.mxu0
    %v4395 = vadd.f32 %v4298, %v4394
    %v4396 = vpop.f32.mrf.mxu0
    %4397 = vmatprep.mubr.bf16.mxu0 %v3422
    %4398 = vmatmul.mubr.bf16.gmra.mxu0 %v3390
    %v4399 = vpop.f32.mrf.mxu0
    %v4400 = vadd.f32 %v4303, %v4399
    %v4401 = vpop.f32.mrf.mxu0
    %v4402 = vpop.f32.mrf.mxu0
    %v4403 = vadd.f32 %v4306, %v4402
    %v4404 = vpop.f32.mrf.mxu0
    %4405 = vmatprep.mubr.bf16.mxu0 %v3423
    %4406 = vmatmul.mubr.bf16.gmra.mxu0 %v3391
    %v4407 = vpop.f32.mrf.mxu0
    %v4408 = vadd.f32 %v4311, %v4407
    %v4409 = vpop.f32.mrf.mxu0
    %v4410 = vpop.f32.mrf.mxu0
    %v4411 = vadd.f32 %v4314, %v4410
    %v4412 = vpop.f32.mrf.mxu0
    %4413 = vmatprep.mubr.bf16.mxu0 %v3424
    %4414 = vmatmul.mubr.bf16.gmra.mxu0 %v3392
    %v4415 = vpop.f32.mrf.mxu0
    %v4416 = vadd.f32 %v4319, %v4415
    %v4417 = vpop.f32.mrf.mxu0
    %v4418 = vpop.f32.mrf.mxu0
    %v4419 = vadd.f32 %v4322, %v4418
    %v4420 = vpop.f32.mrf.mxu0
    %4421 = vmatprep.mubr.bf16.mxu0 %v3425
    %4422 = vmatmul.mubr.bf16.gmra.mxu0 %v3393
    %v4423 = vpop.f32.mrf.mxu0
    %v4424 = vadd.f32 %v4327, %v4423
    %v4425 = vpop.f32.mrf.mxu0
    %v4426 = vpop.f32.mrf.mxu0
    %v4427 = vadd.f32 %v4330, %v4426
    %v4428 = vpop.f32.mrf.mxu0
    %4429 = vmatprep.mubr.bf16.mxu0 %v3426
    %4430 = vmatmul.mubr.bf16.gmra.mxu0 %v3394
    %v4431 = vpop.f32.mrf.mxu0
    %v4432 = vadd.f32 %v4335, %v4431
    %v4433 = vpop.f32.mrf.mxu0
    %v4434 = vpop.f32.mrf.mxu0
    %v4435 = vadd.f32 %v4338, %v4434
    %v4436 = vpop.f32.mrf.mxu0
    %4437 = vdwg.mxu0
    %4438 = vmatprep.subr.bf16.mxu0 0
    %4439 = vmatpush1.bf16.msra.mxu0 %v3977
    %4440 = vmatprep.subr.bf16.mxu0 0
    %4441 = vmatpush1.bf16.msra.mxu0 %v3976
    %4442 = vmatprep.subr.bf16.mxu0 0
    %4443 = vmatpush1.bf16.msra.mxu0 %v3975
    %4444 = vmatprep.subr.bf16.mxu0 0
    %4445 = vmatpush1.bf16.msra.mxu0 %v3974
    %4446 = vmatprep.subr.bf16.mxu0 0
    %4447 = vmatpush1.bf16.msra.mxu0 %v3973
    %4448 = vmatprep.subr.bf16.mxu0 0
    %4449 = vmatpush1.bf16.msra.mxu0 %v3972
    %4450 = vmatprep.subr.bf16.mxu0 0
    %4451 = vmatpush1.bf16.msra.mxu0 %v3971
    %4452 = vmatprep.subr.bf16.mxu0 0
    %4453 = vmatpush1.bf16.msra.mxu0 %v3970
    %4454 = vmatprep.subr.bf16.mxu0 0
    %4455 = vmatpush2.bf16.msra.mxu0 0
    %4456 = vmatprep.subr.bf16.mxu0 0
    %4457 = vmatpush2.bf16.msra.mxu0 0
    %4458 = vmatprep.subr.bf16.mxu0 0
    %4459 = vmatpush2.bf16.msra.mxu0 0
    %4460 = vmatprep.subr.bf16.mxu0 0
    %4461 = vmatpush2.bf16.msra.mxu0 0
    %4462 = vmatprep.subr.bf16.mxu0 0
    %4463 = vmatpush2.bf16.msra.mxu0 0
    %4464 = vmatprep.subr.bf16.mxu0 0
    %4465 = vmatpush2.bf16.msra.mxu0 0
    %4466 = vmatprep.subr.bf16.mxu0 0
    %4467 = vmatpush2.bf16.msra.mxu0 0
    %4468 = vmatprep.subr.bf16.mxu0 0
    %4469 = vmatpush2.bf16.msra.mxu0 0
    %4470 = vmatprep.mubr.bf16.mxu0 0
    %4471 = vmatmul.mubr.bf16.gmra.mxu0 %v3451
    %v4472 = vpop.f32.mrf.mxu0
    %v4473 = vadd.f32 %v4376, %v4472
    %v4474 = vpop.f32.mrf.mxu0
    %v4475 = vpop.f32.mrf.mxu0
    %v4476 = vadd.f32 %v4379, %v4475
    %v4477 = vpop.f32.mrf.mxu0
    %4478 = vmatprep.mubr.bf16.mxu0 0
    %4479 = vmatmul.mubr.bf16.gmra.mxu0 %v3452
    %v4480 = vpop.f32.mrf.mxu0
    %v4481 = vadd.f32 %v4384, %v4480
    %v4482 = vpop.f32.mrf.mxu0
    %v4483 = vpop.f32.mrf.mxu0
    %v4484 = vadd.f32 %v4387, %v4483
    %v4485 = vpop.f32.mrf.mxu0
    %4486 = vmatprep.mubr.bf16.mxu0 0
    %4487 = vmatmul.mubr.bf16.gmra.mxu0 %v3453
    %v4488 = vpop.f32.mrf.mxu0
    %v4489 = vadd.f32 %v4392, %v4488
    %v4490 = vpop.f32.mrf.mxu0
    %v4491 = vpop.f32.mrf.mxu0
    %v4492 = vadd.f32 %v4395, %v4491
    %v4493 = vpop.f32.mrf.mxu0
    %4494 = vmatprep.mubr.bf16.mxu0 0
    %4495 = vmatmul.mubr.bf16.gmra.mxu0 %v3454
    %v4496 = vpop.f32.mrf.mxu0
    %v4497 = vadd.f32 %v4400, %v4496
    %v4498 = vpop.f32.mrf.mxu0
    %v4499 = vpop.f32.mrf.mxu0
    %v4500 = vadd.f32 %v4403, %v4499
    %v4501 = vpop.f32.mrf.mxu0
    %4502 = vmatprep.mubr.bf16.mxu0 0
    %4503 = vmatmul.mubr.bf16.gmra.mxu0 %v3455
    %v4504 = vpop.f32.mrf.mxu0
    %v4505 = vadd.f32 %v4408, %v4504
    %v4506 = vpop.f32.mrf.mxu0
    %v4507 = vpop.f32.mrf.mxu0
    %v4508 = vadd.f32 %v4411, %v4507
    %v4509 = vpop.f32.mrf.mxu0
    %4510 = vmatprep.mubr.bf16.mxu0 0
    %4511 = vmatmul.mubr.bf16.gmra.mxu0 %v3456
    %v4512 = vpop.f32.mrf.mxu0
    %v4513 = vadd.f32 %v4416, %v4512
    %v4514 = vpop.f32.mrf.mxu0
    %v4515 = vpop.f32.mrf.mxu0
    %v4516 = vadd.f32 %v4419, %v4515
    %v4517 = vpop.f32.mrf.mxu0
    %4518 = vmatprep.mubr.bf16.mxu0 0
    %4519 = vmatmul.mubr.bf16.gmra.mxu0 %v3457
    %v4520 = vpop.f32.mrf.mxu0
    %v4521 = vadd.f32 %v4424, %v4520
    %v4522 = vpop.f32.mrf.mxu0
    %v4523 = vpop.f32.mrf.mxu0
    %v4524 = vadd.f32 %v4427, %v4523
    %v4525 = vpop.f32.mrf.mxu0
    %4526 = vmatprep.mubr.bf16.mxu0 0
    %4527 = vmatmul.mubr.bf16.gmra.mxu0 %v3458
    %v4528 = vpop.f32.mrf.mxu0
    %v4529 = vadd.f32 %v4432, %v4528
    %v4530 = vpop.f32.mrf.mxu0
    %v4531 = vpop.f32.mrf.mxu0
    %v4532 = vadd.f32 %v4435, %v4531
    %v4533 = vpop.f32.mrf.mxu0
    %4534 = vdwg.mxu0
    %v4535 = vsel %vm1286, %v1591, 0.0
    %v4536 = vsel %vm1286, %v1592, 0.0
    %v4537 = vsel %vm1286, %v1593, 0.0
    %v4538 = vsel %vm1286, %v1594, 0.0
    %v4539 = vsel %vm1286, %v1595, 0.0
    %v4540 = vsel %vm1286, %v1596, 0.0
    %v4541 = vsel %vm1286, %v1597, 0.0
    %v4542 = vsel %vm1286, %v1598, 0.0
    %v4543 = vsel %vm1286, %v1599, 0.0
    %v4544 = vsel %vm1286, %v1600, 0.0
    %v4545 = vsel %vm1286, %v1601, 0.0
    %v4546 = vsel %vm1286, %v1602, 0.0
    %v4547 = vsel %vm1286, %v1603, 0.0
    %v4548 = vsel %vm1286, %v1604, 0.0
    %v4549 = vsel %vm1286, %v1605, 0.0
    %v4550 = vsel %vm1286, %v1606, 0.0
    %v4551 = vadd.f32 %v4473, %v4535
    %v4552 = vadd.f32 %v4476, %v4536
    %v4553 = vadd.f32 %v4481, %v4537
    %v4554 = vadd.f32 %v4484, %v4538
    %v4555 = vadd.f32 %v4489, %v4539
    %v4556 = vadd.f32 %v4492, %v4540
    %v4557 = vadd.f32 %v4497, %v4541
    %v4558 = vadd.f32 %v4500, %v4542
    %v4559 = vadd.f32 %v4505, %v4543
    %v4560 = vadd.f32 %v4508, %v4544
    %v4561 = vadd.f32 %v4513, %v4545
    %v4562 = vadd.f32 %v4516, %v4546
    %v4563 = vadd.f32 %v4521, %v4547
    %v4564 = vadd.f32 %v4524, %v4548
    %v4565 = vadd.f32 %v4529, %v4549
    %v4566 = vadd.f32 %v4532, %v4550
    %v4567 = vmax.f32 %v4551, 0.0
    %v4568 = vmax.f32 %v4552, 0.0
    %v4569 = vmax.f32 %v4553, 0.0
    %v4570 = vmax.f32 %v4554, 0.0
    %v4571 = vmax.f32 %v4555, 0.0
    %v4572 = vmax.f32 %v4556, 0.0
    %v4573 = vmax.f32 %v4557, 0.0
    %v4574 = vmax.f32 %v4558, 0.0
    %v4575 = vmax.f32 %v4559, 0.0
    %v4576 = vmax.f32 %v4560, 0.0
    %v4577 = vmax.f32 %v4561, 0.0
    %v4578 = vmax.f32 %v4562, 0.0
    %v4579 = vmax.f32 %v4563, 0.0
    %v4580 = vmax.f32 %v4564, 0.0
    %v4581 = vmax.f32 %v4565, 0.0
    %v4582 = vmax.f32 %v4566, 0.0
    %4583 = vst [vmem:[#allocation3] sm:$0xff] %v4567
    %4584 = vst [vmem:[#allocation3 + $0x8] sm:$0xff] %v4568
    %4585 = vst [vmem:[#allocation3 + $0x10] sm:$0xff] %v4569
    %4586 = vst [vmem:[#allocation3 + $0x18] sm:$0xff] %v4570
    %4587 = vst [vmem:[#allocation3 + $0x20] sm:$0xff] %v4571
    %4588 = vst [vmem:[#allocation3 + $0x28] sm:$0xff] %v4572
    %4589 = vst [vmem:[#allocation3 + $0x30] sm:$0xff] %v4573
    %4590 = vst [vmem:[#allocation3 + $0x38] sm:$0xff] %v4574
    %4591 = vst [vmem:[#allocation3 + $0x40] sm:$0xff] %v4575
    %4592 = vst [vmem:[#allocation3 + $0x48] sm:$0xff] %v4576
    %4593 = vst [vmem:[#allocation3 + $0x50] sm:$0xff] %v4577
    %4594 = vst [vmem:[#allocation3 + $0x58] sm:$0xff] %v4578
    %4595 = vst [vmem:[#allocation3 + $0x60] sm:$0xff] %v4579
    %4596 = vst [vmem:[#allocation3 + $0x68] sm:$0xff] %v4580
    %4597 = vst [vmem:[#allocation3 + $0x70] sm:$0xff] %v4581
    %4598 = vst [vmem:[#allocation3 + $0x78] sm:$0xff] %v4582
    // Predicated region
    $region22: #{tpu_custom_call.1} parent=1 // pred_check
      _
    $region23: #{tpu_custom_call.1} parent=1 // pred_check_branch
      %4600 = sbr.rel (0) target = $region25
    $region24: #{tpu_custom_call.1} parent=1 // pred_region
      %s4602 = ssub.s32 2048, 2048
      %4603 = vsyncadd [#allocation4], %s4602
      %s4604 = sshll.u32 [#allocation3], 4
      %s4605 = int_to_ptr.vmem [resolvable:$true] %s4604
      %4610 = dma.vmem_to_hbm [thread:$0]  %s4605, 2048, %s5, [#allocation4], 128, 128, 8
    $region25: #{tpu_custom_call.1} parent=1 // pred_fallthru
      _
    // Predicated region
    $region26: #{tpu_custom_call.1} parent=1 // pred_check
      _
    $region27: #{tpu_custom_call.1} parent=1 // pred_check_branch
      %4612 = sbr.rel (0) target = $region29
    $region28: #{tpu_custom_call.1} parent=1 // pred_region
      %4613 = dma.done [#allocation4], 2048
    $region29: #{tpu_custom_call.1} parent=1 // pred_fallthru
      _
    %4614 = vsyncpa [#allocation4], 1

</llo_original>
